<compile_context>
chip_gen: v6e
topology: v6e:2x2x1
jax: 0.10.0
libtpu: 0.0.40
codegen_flags: <defaults>
</compile_context>

<pallas_src>
import functools

import numpy as np
import jax
import jax.numpy as jnp
from jax import lax
from jax.experimental import pallas as pl
from jax.experimental.pallas import tpu as pltpu  # noqa: F401

# ------------------------- model hyper-parameters ---------------------------
DIM = 2
IMG_SIZE = 16
IN_CHANNELS = 4
OUT_CHANNELS = 4
LATENT_DIM = 8
ENCODER = (8, 16, 32)
DECODER = (32, 16, 8)                              # reversed encoder
CODE_SHAPE = (2, 2)                                # 16 / 2**len(ENCODER)
CODE_HW = CODE_SHAPE[0] * CODE_SHAPE[1]            # 4
FLAT = ENCODER[-1] * CODE_HW                       # 128
KSIZE = 3
OUT_HW = CODE_SHAPE[0] * 2 ** (len(DECODER) - 1)   # 8  (decoder quirk: out = img/2)

# Row offsets of each layer matrix inside the packed weight slabs.
#   slab A (512 cols): conv1 (1024 rows), convT2 (256 rows)
#   slab B (256 cols): conv2 (512 rows), convT1 (128 rows), final (512 rows)
#   slab C (128 cols): conv3 (256 rows), mu|sigma head (128 rows, 16 real cols)
A_M1, A_M5 = 0, 1024
B_M2, B_M4, B_M6 = 0, 512, 640
C_M3, C_HEAD = 0, 256


# ---------------------------------------------------------------------------
# Constant 0/1 tap-selection matrices ("im2col" operators, used only at prep)
# ---------------------------------------------------------------------------
def _conv_selectors(h, w, k, stride, pad):
    """S[t, yo*Wo+xo, yi*W+xi] = 1 iff input (yi,xi) feeds output (yo,xo) at tap t."""
    ho = (h + 2 * pad - k) // stride + 1
    wo = (w + 2 * pad - k) // stride + 1
    s = np.zeros((k * k, ho * wo, h * w), np.float32)
    for i in range(k):
        for j in range(k):
            t = i * k + j
            for yo in range(ho):
                yi = yo * stride + i - pad
                if not (0 <= yi < h):
                    continue
                for xo in range(wo):
                    xi = xo * stride + j - pad
                    if not (0 <= xi < w):
                        continue
                    s[t, yo * wo + xo, yi * w + xi] = 1.0
    return s


def _convT_selectors(h, w, k, stride, pad, opad):
    """Scatter matrices for PyTorch ConvTranspose2d(k, stride, pad, output_padding)."""
    ho = (h - 1) * stride - 2 * pad + k + opad
    wo = (w - 1) * stride - 2 * pad + k + opad
    s = np.zeros((k * k, ho * wo, h * w), np.float32)
    for i in range(k):
        for j in range(k):
            t = i * k + j
            for yi in range(h):
                yo = yi * stride + i - pad
                if not (0 <= yo < ho):
                    continue
                for xi in range(w):
                    xo = xi * stride + j - pad
                    if not (0 <= xo < wo):
                        continue
                    s[t, yo * wo + xo, yi * w + xi] = 1.0
    return s


# ---------------------------------------------------------------------------
# Parameters (PyTorch layouts)
# ---------------------------------------------------------------------------
def _init(key, shape, fan_in):
    return jax.random.normal(key, shape, jnp.float32) / jnp.sqrt(float(fan_in))


def init_params(seed=0):
    keys = iter(jax.random.split(jax.random.PRNGKey(seed), 32))
    p = {}
    cin = IN_CHANNELS
    p["enc"] = []
    for cout in ENCODER:                                    # Conv2d weights (Cout,Cin,3,3)
        w = _init(next(keys), (cout, cin, 3, 3), cin * 9)
        b = _init(next(keys), (cout,), cin * 9)
        p["enc"].append((w, b))
        cin = cout
    p["mu_w"] = _init(next(keys), (LATENT_DIM, FLAT), FLAT)
    p["mu_b"] = _init(next(keys), (LATENT_DIM,), FLAT)
    p["sig_w"] = _init(next(keys), (LATENT_DIM, FLAT), FLAT)
    p["sig_b"] = _init(next(keys), (LATENT_DIM,), FLAT)
    p["din_w"] = _init(next(keys), (DECODER[0] * 4, LATENT_DIM), LATENT_DIM)
    p["din_b"] = _init(next(keys), (DECODER[0] * 4,), LATENT_DIM)
    cin = DECODER[0]
    p["dec"] = []
    for cout in DECODER[1:]:                                # ConvTranspose2d (Cin,Cout,3,3)
        w = _init(next(keys), (cin, cout, 3, 3), cin * 9)
        b = _init(next(keys), (cout,), cin * 9)
        p["dec"].append((w, b))
        cin = cout
    p["fin_w"] = _init(next(keys), (OUT_CHANNELS, DECODER[-1], 3, 3), DECODER[-1] * 9)
    p["fin_b"] = _init(next(keys), (OUT_CHANNELS,), DECODER[-1] * 9)
    return p


# ---------------------------------------------------------------------------
# One-time prep: fold every layer into a dense matrix and pack into slabs
# ---------------------------------------------------------------------------
def prepare_params(params):
    k = KSIZE

    def conv_w(w):    # (Cout, Cin, k, k) -> (k*k, Cin, Cout), tap t = i*k + j
        return jnp.transpose(w, (2, 3, 1, 0)).reshape(k * k, w.shape[1], w.shape[0])

    def convT_w(w):   # (Cin, Cout, k, k) -> (k*k, Cin, Cout)
        return jnp.transpose(w, (2, 3, 0, 1)).reshape(k * k, w.shape[0], w.shape[1])

    def dense_from_taps(sel, wt):
        # sel: (T, O, I) 0/1 selector; wt: (T, Cin, Cout)
        # M[i*Cin + c, o*Cout + d] = sum_t sel[t, o, i] * wt[t, c, d]
        T, O, I = sel.shape
        Cin, Cout = wt.shape[1], wt.shape[2]
        m = jnp.einsum("toi,tcd->icod", jnp.asarray(sel), wt)
        return m.reshape(I * Cin, O * Cout)

    (we1, be1), (we2, be2), (we3, be3) = params["enc"]
    (wt1, bt1), (wt2, bt2) = params["dec"]

    m1 = dense_from_taps(_conv_selectors(16, 16, k, 2, 1), conv_w(we1))      # (1024, 512)
    m2 = dense_from_taps(_conv_selectors(8, 8, k, 2, 1), conv_w(we2))        # (512, 256)
    m3 = dense_from_taps(_conv_selectors(4, 4, k, 2, 1), conv_w(we3))        # (256, 128)
    m4 = dense_from_taps(_convT_selectors(2, 2, k, 2, 1, 1), convT_w(wt1))   # (128, 256)
    m5 = dense_from_taps(_convT_selectors(4, 4, k, 2, 1, 1), convT_w(wt2))   # (256, 512)
    m6 = dense_from_taps(_conv_selectors(8, 8, k, 1, 1), conv_w(params["fin_w"]))  # (512, 256)

    # mu|sigma heads. PyTorch flatten(1): f = c*4 + s; our layout: i = s*32 + c.
    wcat = jnp.concatenate([params["mu_w"], params["sig_w"]], axis=0)        # (16, 128)
    w_head = jnp.transpose(wcat.reshape(2 * LATENT_DIM, ENCODER[-1], CODE_HW),
                           (2, 1, 0)).reshape(FLAT, 2 * LATENT_DIM)          # (128, 16)
    w_head = jnp.pad(w_head, ((0, 0), (0, 128 - 2 * LATENT_DIM)))            # (128, 128)
    b_head = jnp.concatenate([params["mu_b"], params["sig_b"]])              # (16,)

    # decoder-input linear: PyTorch output f = c*4 + s -> relayout to i = s*32 + c
    w_di = jnp.transpose(params["din_w"].reshape(DECODER[0], CODE_HW, LATENT_DIM),
                         (2, 1, 0)).reshape(LATENT_DIM, FLAT)                # (8, 128)
    b_di = jnp.transpose(params["din_b"].reshape(DECODER[0], CODE_HW)).reshape(FLAT)

    # conv biases replicated over output spatial positions: bias[o*Cout + d] = b[d]
    def tile_bias(b, o):
        return jnp.tile(b, (o,))

    def pad512(v):
        return jnp.pad(v, (0, 512 - v.shape[0]))

    bias_slab = jnp.stack([
        pad512(tile_bias(be1, 64)),                 # row 0: conv1   (512)
        pad512(tile_bias(be2, 16)),                 # row 1: conv2   (256)
        pad512(tile_bias(be3, 4)),                  # row 2: conv3   (128)
        pad512(b_head),                             # row 3: heads   (16)
        pad512(b_di),                               # row 4: dec-in  (128)
        pad512(tile_bias(bt1, 16)),                 # row 5: convT1  (256)
        pad512(tile_bias(bt2, 64)),                 # row 6: convT2  (512)
        pad512(tile_bias(params["fin_b"], 64)),     # row 7: final   (256)
    ], axis=0).astype(jnp.float32)                  # (8, 512)

    # bf16 weight slabs, grouped by column width (all offsets 16-row aligned).
    slab_a = jnp.concatenate([m1, m5], axis=0).astype(jnp.bfloat16)       # (1280, 512)
    slab_b = jnp.concatenate([m2, m4, m6], axis=0).astype(jnp.bfloat16)   # (1152, 256)
    slab_c = jnp.concatenate([m3, w_head], axis=0).astype(jnp.bfloat16)   # (384, 128)

    return (slab_a, slab_b, slab_c, w_di.astype(jnp.float32), bias_slab)


# ---------------------------------------------------------------------------
# The single fused Pallas kernel: 8 lane-dense matmuls + reparametrisation
# ---------------------------------------------------------------------------
def _vae_fused_kernel(x_ref, eps_ref, wa_ref, wb_ref, wc_ref, wdi_ref, b_ref,
                      out_ref, lat_ref):
    f32 = jnp.float32
    bf16 = jnp.bfloat16
    bias = b_ref[...]                                            # (8, 512) f32

    def mm(a, w, ncols, brow, act):
        """act( a @ w + bias[brow] ) with bf16 MXU operands, f32 accumulation."""
        y = jnp.dot(a.astype(bf16), w.astype(bf16), preferred_element_type=f32)
        if ncols != y.shape[1]:
            y = y[:, :ncols]
        y = y + bias[brow:brow + 1, :ncols]
        if act == "relu":
            y = jnp.maximum(y, 0.0)
        elif act == "tanh":
            y = jnp.tanh(y)
        return y

    a = x_ref[...]                                               # (B, 1024) f32
    a = mm(a, wa_ref[A_M1:A_M1 + 1024, :], 512, 0, "relu")       # conv1  -> (B, 512)
    a = mm(a, wb_ref[B_M2:B_M2 + 512, :], 256, 1, "relu")        # conv2  -> (B, 256)
    a = mm(a, wc_ref[C_M3:C_M3 + 256, :], 128, 2, "relu")        # conv3  -> (B, 128)

    ms = mm(a, wc_ref[C_HEAD:C_HEAD + 128, :], 16, 3, "none")    # mu|sigma -> (B, 16)
    mu = ms[:, :LATENT_DIM]
    sg = ms[:, LATENT_DIM:]
    z = eps_ref[...] * jnp.exp(0.5 * sg) + mu                    # (B, 8)   (EUP exp)

    d = mm(z, wdi_ref[...], 128, 4, "none")                      # dec-in -> (B, 128)
    d = mm(d, wb_ref[B_M4:B_M4 + 128, :], 256, 5, "relu")        # convT1 -> (B, 256)
    d = mm(d, wa_ref[A_M5:A_M5 + 256, :], 512, 6, "relu")        # convT2 -> (B, 512)
    y = mm(d, wb_ref[B_M6:B_M6 + 512, :], 256, 7, "tanh")        # final  -> (B, 256)

    out_ref[...] = y                                             # lane-dense (B, 256)
    lat_ref[0] = mu                                              # packed (3, B, 8)
    lat_ref[1] = sg
    lat_ref[2] = z


@functools.partial(jax.jit, static_argnames=("return_all",))
def vae_forward(prepped, x, eps, return_all=False):
    B = x.shape[0]
    # NCHW -> flattened channels-last: index i = (h*16 + w)*Cin + c
    x_flat = jnp.transpose(x, (0, 2, 3, 1)).reshape(
        B, IMG_SIZE * IMG_SIZE * IN_CHANNELS).astype(jnp.float32)
    eps2 = eps.astype(jnp.float32)

    kn_sum = (1024 * 512 + 512 * 256 + 256 * 128 + 128 * 128 + 8 * 128
              + 128 * 256 + 256 * 512 + 512 * 256)
    w_bytes = (1280 * 512 + 1152 * 256 + 384 * 128) * 2 + (8 * 128 + 8 * 512) * 4
    io_bytes = 4 * (B * 1024 + B * LATENT_DIM + B * 256 + 3 * B * LATENT_DIM)
    cost = pl.CostEstimate(flops=2 * B * kn_sum,
                           transcendentals=B * (LATENT_DIM + 256),
                           bytes_accessed=w_bytes + io_bytes)

    out_flat, lat = pl.pallas_call(
        _vae_fused_kernel,
        out_shape=(
            jax.ShapeDtypeStruct((B, OUT_HW * OUT_HW * OUT_CHANNELS), jnp.float32),
            jax.ShapeDtypeStruct((3, B, LATENT_DIM), jnp.float32),
        ),
        cost_estimate=cost,
    )(x_flat, eps2, *prepped)

    out = out_flat.reshape(B, OUT_HW, OUT_HW, OUT_CHANNELS).transpose(0, 3, 1, 2)
    mu, sigma, z = lat[0], lat[1], lat[2]
    if return_all:
        return out, x, z, mu, sigma
    return out


# ---------------------------------------------------------------------------
# Pure-JAX reference (plain XLA, HIGHEST precision) for correctness checking
# ---------------------------------------------------------------------------
def _ref_mm(x, w, b, act):
    y = jnp.dot(x, w, precision=lax.Precision.HIGHEST) + b
    if act == "relu":
        y = jnp.maximum(y, 0.0)
    elif act == "tanh":
        y = jnp.tanh(y)
    return y


def _ref_im2col(x, k, stride, padding):
    B, C, H, W = x.shape
    Ho = (H + 2 * padding - k) // stride + 1
    Wo = (W + 2 * padding - k) // stride + 1
    xp = jnp.pad(x, ((0, 0), (0, 0), (padding, padding), (padding, padding)))
    cols = []
    for i in range(k):
        for j in range(k):
            cols.append(xp[:, :, i:i + stride * Ho:stride, j:j + stride * Wo:stride])
    cols = jnp.stack(cols, axis=2)
    cols = cols.transpose(0, 3, 4, 1, 2).reshape(B * Ho * Wo, C * k * k)
    return cols, Ho, Wo


def _ref_conv2d(x, w, b, stride, padding, act):
    Cout, Cin, k, _ = w.shape
    B = x.shape[0]
    cols, Ho, Wo = _ref_im2col(x, k, stride, padding)
    y = _ref_mm(cols, w.reshape(Cout, Cin * k * k).T, b, act)
    return y.reshape(B, Ho, Wo, Cout).transpose(0, 3, 1, 2)


def _ref_convT2d(x, w, b, stride, padding, opad, act):
    Cin, Cout, k, _ = w.shape
    B, _, H, W = x.shape
    Hd, Wd = (H - 1) * stride + 1, (W - 1) * stride + 1
    xd = jnp.zeros((B, Cin, Hd, Wd), x.dtype).at[:, :, ::stride, ::stride].set(x)
    lo, hi = k - 1 - padding, k - 1 - padding + opad
    xd = jnp.pad(xd, ((0, 0), (0, 0), (lo, hi), (lo, hi)))
    w_eff = jnp.flip(w, axis=(2, 3)).transpose(1, 0, 2, 3)
    return _ref_conv2d(xd, w_eff, b, stride=1, padding=0, act=act)


def vae_forward_reference(params, x, eps):
    a = x
    for (w, b) in params["enc"]:
        a = _ref_conv2d(a, w, b, 2, 1, "relu")
    flat = a.reshape(a.shape[0], -1)
    mu = _ref_mm(flat, params["mu_w"].T, params["mu_b"], "none")
    sigma = _ref_mm(flat, params["sig_w"].T, params["sig_b"], "none")
    z = eps * jnp.exp(0.5 * sigma) + mu
    d = _ref_mm(z, params["din_w"].T, params["din_b"], "none")
    d = d.reshape(-1, DECODER[0], *CODE_SHAPE)
    for (w, b) in params["dec"]:
        d = _ref_convT2d(d, w, b, 2, 1, 1, "relu")
    out = _ref_conv2d(d, params["fin_w"], params["fin_b"], 1, 1, "tanh")
    return out, x, z, mu, sigma


# ---------------------------------------------------------------------------
if __name__ == "__main__":
    params = init_params(seed=0)
    prepped = prepare_params(params)

    key = jax.random.PRNGKey(0)
    kx, keps = jax.random.split(key)
    x = jax.random.normal(kx, (2, IN_CHANNELS, IMG_SIZE, IMG_SIZE), jnp.float32)
    # torch.randn_like(std) in reparametrise -> explicit deterministic noise input
    eps = jax.random.normal(keps, (2, LATENT_DIM), jnp.float32)

    out, x_in, z, mu, sigma = vae_forward(prepped, x, eps, return_all=True)
    jax.block_until_ready(out)

    assert out.shape == (2, OUT_CHANNELS, OUT_HW, OUT_HW)      # decoder quirk: out = img/2
    assert mu.shape == (2, LATENT_DIM) and sigma.shape == (2, LATENT_DIM)
    assert bool(jnp.all(jnp.isfinite(out)))
    assert bool(jnp.all(jnp.abs(out) <= 1.0))                  # Tanh final activation

    # cross-check against the plain-JAX reference implementation
    r_out, _, r_z, r_mu, r_sigma = vae_forward_reference(params, x, eps)
    for got, want in ((out, r_out), (mu, r_mu), (sigma, r_sigma), (z, r_z)):
        assert bool(jnp.allclose(got, want, atol=2e-2, rtol=2e-2)), \
            float(jnp.max(jnp.abs(got - want)))

    print("KERNEL_OK")
</pallas_src>

<mosaic_0001>
module attributes {stable_mosaic.version = 11 : i64} {
  func.func @_vae_fused_kernel(%arg0: memref<2x1024xf32, #tpu.memory_space<vmem>>, %arg1: memref<2x8xf32, #tpu.memory_space<vmem>>, %arg2: memref<1280x512xbf16, #tpu.memory_space<vmem>>, %arg3: memref<1152x256xbf16, #tpu.memory_space<vmem>>, %arg4: memref<384x128xbf16, #tpu.memory_space<vmem>>, %arg5: memref<8x128xf32, #tpu.memory_space<vmem>>, %arg6: memref<8x512xf32, #tpu.memory_space<vmem>>, %arg7: memref<2x256xf32, #tpu.memory_space<vmem>>, %arg8: memref<3x2x8xf32, #tpu.memory_space<vmem>>) attributes {dimension_semantics = [], scalar_prefetch = 0 : i64, scratch_operands = 0 : i64, tpu.core_type = #tpu.core_type<tc>} {
    %c0 = arith.constant 0 : index
    %c0_0 = arith.constant 0 : index
    %0 = vector.load %arg6[%c0, %c0_0] : memref<8x512xf32, #tpu.memory_space<vmem>>, vector<8x512xf32>
    %c0_1 = arith.constant 0 : index
    %c0_2 = arith.constant 0 : index
    %1 = vector.load %arg0[%c0_1, %c0_2] : memref<2x1024xf32, #tpu.memory_space<vmem>>, vector<2x1024xf32>
    %c0_3 = arith.constant 0 : index
    %c0_4 = arith.constant 0 : index
    %2 = vector.load %arg2[%c0_3, %c0_4] : memref<1280x512xbf16, #tpu.memory_space<vmem>>, vector<1024x512xbf16>
    %3 = arith.truncf %1 : vector<2x1024xf32> to vector<2x1024xbf16>
    %cst = arith.constant dense<0.000000e+00> : vector<2x512xf32>
    %4 = tpu.matmul %3, %2, %cst {dimension_numbers = #tpu.dot_dimension_numbers<[1], [0], [0], [1], [0, 0, 1, 1], [], []>} : vector<2x1024xbf16>, vector<1024x512xbf16>, vector<2x512xf32> -> vector<2x512xf32>
    %5 = vector.extract_strided_slice %0 {offsets = [0, 0], sizes = [1, 512], strides = [1, 1]} : vector<8x512xf32> to vector<1x512xf32>
    %6 = vector.broadcast %5 : vector<1x512xf32> to vector<2x512xf32>
    %7 = arith.addf %4, %6 : vector<2x512xf32>
    %cst_5 = arith.constant 0.000000e+00 : f32
    %8 = vector.broadcast %cst_5 : f32 to vector<2x512xf32>
    %9 = arith.maximumf %7, %8 : vector<2x512xf32>
    %c0_6 = arith.constant 0 : index
    %c0_7 = arith.constant 0 : index
    %10 = vector.load %arg3[%c0_6, %c0_7] : memref<1152x256xbf16, #tpu.memory_space<vmem>>, vector<512x256xbf16>
    %11 = arith.truncf %9 : vector<2x512xf32> to vector<2x512xbf16>
    %cst_8 = arith.constant dense<0.000000e+00> : vector<2x256xf32>
    %12 = tpu.matmul %11, %10, %cst_8 {dimension_numbers = #tpu.dot_dimension_numbers<[1], [0], [0], [1], [0, 0, 1, 1], [], []>} : vector<2x512xbf16>, vector<512x256xbf16>, vector<2x256xf32> -> vector<2x256xf32>
    %13 = vector.extract_strided_slice %0 {offsets = [1, 0], sizes = [1, 256], strides = [1, 1]} : vector<8x512xf32> to vector<1x256xf32>
    %14 = vector.broadcast %13 : vector<1x256xf32> to vector<2x256xf32>
    %15 = arith.addf %12, %14 : vector<2x256xf32>
    %cst_9 = arith.constant 0.000000e+00 : f32
    %16 = vector.broadcast %cst_9 : f32 to vector<2x256xf32>
    %17 = arith.maximumf %15, %16 : vector<2x256xf32>
    %c0_10 = arith.constant 0 : index
    %c0_11 = arith.constant 0 : index
    %18 = vector.load %arg4[%c0_10, %c0_11] : memref<384x128xbf16, #tpu.memory_space<vmem>>, vector<256x128xbf16>
    %19 = arith.truncf %17 : vector<2x256xf32> to vector<2x256xbf16>
    %cst_12 = arith.constant dense<0.000000e+00> : vector<2x128xf32>
    %20 = tpu.matmul %19, %18, %cst_12 {dimension_numbers = #tpu.dot_dimension_numbers<[1], [0], [0], [1], [0, 0, 1, 1], [], []>} : vector<2x256xbf16>, vector<256x128xbf16>, vector<2x128xf32> -> vector<2x128xf32>
    %21 = vector.extract_strided_slice %0 {offsets = [2, 0], sizes = [1, 128], strides = [1, 1]} : vector<8x512xf32> to vector<1x128xf32>
    %22 = vector.broadcast %21 : vector<1x128xf32> to vector<2x128xf32>
    %23 = arith.addf %20, %22 : vector<2x128xf32>
    %cst_13 = arith.constant 0.000000e+00 : f32
    %24 = vector.broadcast %cst_13 : f32 to vector<2x128xf32>
    %25 = arith.maximumf %23, %24 : vector<2x128xf32>
    %c256 = arith.constant 256 : index
    %c0_14 = arith.constant 0 : index
    %26 = vector.load %arg4[%c256, %c0_14] : memref<384x128xbf16, #tpu.memory_space<vmem>>, vector<128x128xbf16>
    %27 = arith.truncf %25 : vector<2x128xf32> to vector<2x128xbf16>
    %cst_15 = arith.constant dense<0.000000e+00> : vector<2x128xf32>
    %28 = tpu.matmul %27, %26, %cst_15 {dimension_numbers = #tpu.dot_dimension_numbers<[1], [0], [0], [1], [0, 0, 1, 1], [], []>} : vector<2x128xbf16>, vector<128x128xbf16>, vector<2x128xf32> -> vector<2x128xf32>
    %29 = vector.extract_strided_slice %28 {offsets = [0, 0], sizes = [2, 16], strides = [1, 1]} : vector<2x128xf32> to vector<2x16xf32>
    %30 = vector.extract_strided_slice %0 {offsets = [3, 0], sizes = [1, 16], strides = [1, 1]} : vector<8x512xf32> to vector<1x16xf32>
    %31 = vector.broadcast %30 : vector<1x16xf32> to vector<2x16xf32>
    %32 = arith.addf %29, %31 : vector<2x16xf32>
    %33 = vector.extract_strided_slice %32 {offsets = [0, 0], sizes = [2, 8], strides = [1, 1]} : vector<2x16xf32> to vector<2x8xf32>
    %34 = vector.extract_strided_slice %32 {offsets = [0, 8], sizes = [2, 8], strides = [1, 1]} : vector<2x16xf32> to vector<2x8xf32>
    %c0_16 = arith.constant 0 : index
    %c0_17 = arith.constant 0 : index
    %35 = vector.load %arg1[%c0_16, %c0_17] : memref<2x8xf32, #tpu.memory_space<vmem>>, vector<2x8xf32>
    %cst_18 = arith.constant 5.000000e-01 : f32
    %36 = vector.broadcast %cst_18 : f32 to vector<2x8xf32>
    %37 = arith.mulf %36, %34 : vector<2x8xf32>
    %38 = math.exp %37 : vector<2x8xf32>
    %39 = arith.mulf %35, %38 : vector<2x8xf32>
    %40 = arith.addf %39, %33 : vector<2x8xf32>
    %c0_19 = arith.constant 0 : index
    %c0_20 = arith.constant 0 : index
    %41 = vector.load %arg5[%c0_19, %c0_20] : memref<8x128xf32, #tpu.memory_space<vmem>>, vector<8x128xf32>
    %42 = arith.truncf %40 : vector<2x8xf32> to vector<2x8xbf16>
    %43 = arith.truncf %41 : vector<8x128xf32> to vector<8x128xbf16>
    %cst_21 = arith.constant dense<0.000000e+00> : vector<2x128xf32>
    %44 = tpu.matmul %42, %43, %cst_21 {dimension_numbers = #tpu.dot_dimension_numbers<[1], [0], [0], [1], [0, 0, 1, 1], [], []>} : vector<2x8xbf16>, vector<8x128xbf16>, vector<2x128xf32> -> vector<2x128xf32>
    %45 = vector.extract_strided_slice %0 {offsets = [4, 0], sizes = [1, 128], strides = [1, 1]} : vector<8x512xf32> to vector<1x128xf32>
    %46 = vector.broadcast %45 : vector<1x128xf32> to vector<2x128xf32>
    %47 = arith.addf %44, %46 : vector<2x128xf32>
    %c512 = arith.constant 512 : index
    %c0_22 = arith.constant 0 : index
    %48 = vector.load %arg3[%c512, %c0_22] : memref<1152x256xbf16, #tpu.memory_space<vmem>>, vector<128x256xbf16>
    %49 = arith.truncf %47 : vector<2x128xf32> to vector<2x128xbf16>
    %cst_23 = arith.constant dense<0.000000e+00> : vector<2x256xf32>
    %50 = tpu.matmul %49, %48, %cst_23 {dimension_numbers = #tpu.dot_dimension_numbers<[1], [0], [0], [1], [0, 0, 1, 1], [], []>} : vector<2x128xbf16>, vector<128x256xbf16>, vector<2x256xf32> -> vector<2x256xf32>
    %51 = vector.extract_strided_slice %0 {offsets = [5, 0], sizes = [1, 256], strides = [1, 1]} : vector<8x512xf32> to vector<1x256xf32>
    %52 = vector.broadcast %51 : vector<1x256xf32> to vector<2x256xf32>
    %53 = arith.addf %50, %52 : vector<2x256xf32>
    %cst_24 = arith.constant 0.000000e+00 : f32
    %54 = vector.broadcast %cst_24 : f32 to vector<2x256xf32>
    %55 = arith.maximumf %53, %54 : vector<2x256xf32>
    %c1024 = arith.constant 1024 : index
    %c0_25 = arith.constant 0 : index
    %56 = vector.load %arg2[%c1024, %c0_25] : memref<1280x512xbf16, #tpu.memory_space<vmem>>, vector<256x512xbf16>
    %57 = arith.truncf %55 : vector<2x256xf32> to vector<2x256xbf16>
    %cst_26 = arith.constant dense<0.000000e+00> : vector<2x512xf32>
    %58 = tpu.matmul %57, %56, %cst_26 {dimension_numbers = #tpu.dot_dimension_numbers<[1], [0], [0], [1], [0, 0, 1, 1], [], []>} : vector<2x256xbf16>, vector<256x512xbf16>, vector<2x512xf32> -> vector<2x512xf32>
    %59 = vector.extract_strided_slice %0 {offsets = [6, 0], sizes = [1, 512], strides = [1, 1]} : vector<8x512xf32> to vector<1x512xf32>
    %60 = vector.broadcast %59 : vector<1x512xf32> to vector<2x512xf32>
    %61 = arith.addf %58, %60 : vector<2x512xf32>
    %cst_27 = arith.constant 0.000000e+00 : f32
    %62 = vector.broadcast %cst_27 : f32 to vector<2x512xf32>
    %63 = arith.maximumf %61, %62 : vector<2x512xf32>
    %c640 = arith.constant 640 : index
    %c0_28 = arith.constant 0 : index
    %64 = vector.load %arg3[%c640, %c0_28] : memref<1152x256xbf16, #tpu.memory_space<vmem>>, vector<512x256xbf16>
    %65 = arith.truncf %63 : vector<2x512xf32> to vector<2x512xbf16>
    %cst_29 = arith.constant dense<0.000000e+00> : vector<2x256xf32>
    %66 = tpu.matmul %65, %64, %cst_29 {dimension_numbers = #tpu.dot_dimension_numbers<[1], [0], [0], [1], [0, 0, 1, 1], [], []>} : vector<2x512xbf16>, vector<512x256xbf16>, vector<2x256xf32> -> vector<2x256xf32>
    %67 = vector.extract_strided_slice %0 {offsets = [7, 0], sizes = [1, 256], strides = [1, 1]} : vector<8x512xf32> to vector<1x256xf32>
    %68 = vector.broadcast %67 : vector<1x256xf32> to vector<2x256xf32>
    %69 = arith.addf %66, %68 : vector<2x256xf32>
    %70 = math.tanh %69 : vector<2x256xf32>
    %c0_30 = arith.constant 0 : index
    %c0_31 = arith.constant 0 : index
    %71 = vector.load %arg7[%c0_30, %c0_31] : memref<2x256xf32, #tpu.memory_space<vmem>>, vector<2x256xf32>
    tpu.vector_store %arg7[%c0_30, %c0_31], %70 {strides = array<i32>} : memref<2x256xf32, #tpu.memory_space<vmem>>, vector<2x256xf32>,
    %c0_32 = arith.constant 0 : index
    %c0_33 = arith.constant 0 : index
    %c0_34 = arith.constant 0 : index
    %72 = vector.load %arg8[%c0_32, %c0_33, %c0_34] : memref<3x2x8xf32, #tpu.memory_space<vmem>>, vector<1x2x8xf32>
    %73 = vector.shape_cast %72 : vector<1x2x8xf32> to vector<2x8xf32>
    %74 = vector.shape_cast %33 : vector<2x8xf32> to vector<1x2x8xf32>
    tpu.vector_store %arg8[%c0_32, %c0_33, %c0_34], %74 {strides = array<i32>} : memref<3x2x8xf32, #tpu.memory_space<vmem>>, vector<1x2x8xf32>,
    %c1 = arith.constant 1 : index
    %c0_35 = arith.constant 0 : index
    %c0_36 = arith.constant 0 : index
    %75 = vector.load %arg8[%c1, %c0_35, %c0_36] : memref<3x2x8xf32, #tpu.memory_space<vmem>>, vector<1x2x8xf32>
    %76 = vector.shape_cast %75 : vector<1x2x8xf32> to vector<2x8xf32>
    %77 = vector.shape_cast %34 : vector<2x8xf32> to vector<1x2x8xf32>
    tpu.vector_store %arg8[%c1, %c0_35, %c0_36], %77 {strides = array<i32>} : memref<3x2x8xf32, #tpu.memory_space<vmem>>, vector<1x2x8xf32>,
    %c2 = arith.constant 2 : index
    %c0_37 = arith.constant 0 : index
    %c0_38 = arith.constant 0 : index
    %78 = vector.load %arg8[%c2, %c0_37, %c0_38] : memref<3x2x8xf32, #tpu.memory_space<vmem>>, vector<1x2x8xf32>
    %79 = vector.shape_cast %78 : vector<1x2x8xf32> to vector<2x8xf32>
    %80 = vector.shape_cast %40 : vector<2x8xf32> to vector<1x2x8xf32>
    tpu.vector_store %arg8[%c2, %c0_37, %c0_38], %80 {strides = array<i32>} : memref<3x2x8xf32, #tpu.memory_space<vmem>>, vector<1x2x8xf32>,
    return
  }
}

</mosaic_0001>

<llo_original>
// kernel: vae_forward.1
$region0: #{vae_forward.1}
  #allocation0 [shape = 'u32[]', space=smem, size = 0x4, offset = 0x4, fixed_abs, tag = 'smem constant byte address 0x4 - core index']
  #allocation1 [shape = 'u32[144,128]{1,0:T(1,128)}', space=vmem, size = 0x12000, scoped, tag = 'internal scratch']
  %s0 = inlined_call_operand.vmem [shape: f32[2,1024], index: 0, kind: input, shape index: {}]
  %s1 = inlined_call_operand.hbm [shape: f32[2,8], index: 1, kind: input, shape index: {}]
  %s2 = inlined_call_operand.hbm [shape: bf16[1280,512], index: 2, kind: input, shape index: {}]
  %s3 = inlined_call_operand.hbm [shape: bf16[1152,256], index: 3, kind: input, shape index: {}]
  %s4 = inlined_call_operand.hbm [shape: bf16[384,128], index: 4, kind: input, shape index: {}]
  %s5 = inlined_call_operand.hbm [shape: f32[8,128], index: 5, kind: input, shape index: {}]
  %s6 = inlined_call_operand.hbm [shape: f32[8,512], index: 6, kind: input, shape index: {}]
  %s7 = inlined_call_operand.vmem [shape: f32[2,256], index: 7, kind: output, shape index: {0}]
  %s8 = inlined_call_operand.vmem [shape: f32[3,2,8], index: 8, kind: output, shape index: {1}]
  %9 = xla_tuple %s7, %s8
  %s10 = sld [smem:[#allocation0]]
  $region70: #{vae_forward.1} parent=0
    _
  %s12 = ssub.s32 1, %s10
  %s13 = scalar_select 0, %s12, %s10
  $region1: #{vae_forward.1} parent=0
    #allocation2 [shape = 'u8[1024]{0}', space=vmem, size = 0x400, scoped, tag = 'input window, operand 1, single buffered']
    #allocation3 [shape = 's32[1]{0}', space=sflag, size = 0x4, scoped, tag = 'scoped memory for vae_forward.1']
    #allocation4 [shape = 'u8[1310720]{0}', space=vmem, size = 0x140000, scoped, tag = 'input window, operand 2, single buffered']
    #allocation5 [shape = 's32[1]{0}', space=sflag, size = 0x4, scoped, tag = 'scoped memory for vae_forward.1']
    #allocation6 [shape = 'u8[589824]{0}', space=vmem, size = 0x90000, scoped, tag = 'input window, operand 3, single buffered']
    #allocation7 [shape = 'u8[98304]{0}', space=vmem, size = 0x18000, scoped, tag = 'input window, operand 4, single buffered']
    #allocation8 [shape = 's32[1]{0}', space=sflag, size = 0x4, scoped, tag = 'scoped memory for vae_forward.1']
    #allocation9 [shape = 'u8[4096]{0}', space=vmem, size = 0x1000, scoped, tag = 'input window, operand 5, single buffered']
    #allocation10 [shape = 'u8[16384]{0}', space=vmem, size = 0x4000, scoped, tag = 'input window, operand 6, single buffered']
    #allocation11 [shape = 's32[1]{0}', space=sflag, size = 0x4, scoped, tag = 'scoped memory for vae_forward.1']
    %14 = vsyncpa [#allocation3], 0
    %15 = vsyncpa [#allocation5], 0
    %16 = vsyncpa [#allocation8], 0
    %17 = vsyncpa [#allocation11], 0
    // Predicated region
    $region2: #{vae_forward.1} parent=1 // pred_check
      _
    $region3: #{vae_forward.1} parent=1 // pred_check_branch
      %19 = sbr.rel (0) target = $region5
    $region4: #{vae_forward.1} parent=1 // pred_region
      _
    $region5: #{vae_forward.1} parent=1 // pred_fallthru
      _
    // Predicated region
    $region6: #{vae_forward.1} parent=1 // pred_check
      _
    $region7: #{vae_forward.1} parent=1 // pred_check_branch
      %21 = sbr.rel (0) target = $region9
    $region8: #{vae_forward.1} parent=1 // pred_region
      %s23 = ssub.s32 32, 32
      %24 = vsyncadd [#allocation3], %s23
      %s26 = sshll.u32 [#allocation2], 4
      %s27 = int_to_ptr.vmem [resolvable:$true] %s26
      %29 = dma.hbm_to_vmem [thread:$0]  %s1, 32, %s27, [#allocation3]
    $region9: #{vae_forward.1} parent=1 // pred_fallthru
      _
    // Predicated region
    $region10: #{vae_forward.1} parent=1 // pred_check
      _
    $region11: #{vae_forward.1} parent=1 // pred_check_branch
      %31 = sbr.rel (0) target = $region13
    $region12: #{vae_forward.1} parent=1 // pred_region
      %s33 = ssub.s32 40960, 40960
      %34 = vsyncadd [#allocation5], %s33
      %s35 = sshll.u32 [#allocation4], 4
      %s36 = int_to_ptr.vmem [resolvable:$true] %s35
      %41 = dma.hbm_to_vmem [thread:$0]  %s2, 40960, %s36, [#allocation5], 256, 256, 16
    $region13: #{vae_forward.1} parent=1 // pred_fallthru
      _
    // Predicated region
    $region14: #{vae_forward.1} parent=1 // pred_check
      _
    $region15: #{vae_forward.1} parent=1 // pred_check_branch
      %43 = sbr.rel (0) target = $region17
    $region16: #{vae_forward.1} parent=1 // pred_region
      %s45 = ssub.s32 18432, 18432
      %46 = vsyncadd [#allocation5], %s45
      %s47 = sshll.u32 [#allocation6], 4
      %s48 = int_to_ptr.vmem [resolvable:$true] %s47
      %53 = dma.hbm_to_vmem [thread:$0]  %s3, 18432, %s48, [#allocation5], 128, 128, 8
    $region17: #{vae_forward.1} parent=1 // pred_fallthru
      _
    // Predicated region
    $region18: #{vae_forward.1} parent=1 // pred_check
      _
    $region19: #{vae_forward.1} parent=1 // pred_check_branch
      %55 = sbr.rel (0) target = $region21
    $region20: #{vae_forward.1} parent=1 // pred_region
      %s57 = ssub.s32 3072, 3072
      %58 = vsyncadd [#allocation8], %s57
      %s59 = sshll.u32 [#allocation7], 4
      %s60 = int_to_ptr.vmem [resolvable:$true] %s59
      %65 = dma.hbm_to_vmem [thread:$0]  %s4, 3072, %s60, [#allocation8], 64, 64, 4
    $region21: #{vae_forward.1} parent=1 // pred_fallthru
      _
    // Predicated region
    $region22: #{vae_forward.1} parent=1 // pred_check
      _
    $region23: #{vae_forward.1} parent=1 // pred_check_branch
      %67 = sbr.rel (0) target = $region25
    $region24: #{vae_forward.1} parent=1 // pred_region
      %s69 = ssub.s32 128, 128
      %70 = vsyncadd [#allocation8], %s69
      %s72 = sshll.u32 [#allocation9], 4
      %s73 = int_to_ptr.vmem [resolvable:$true] %s72
      %75 = dma.hbm_to_vmem [thread:$0]  %s5, 128, %s73, [#allocation8]
    $region25: #{vae_forward.1} parent=1 // pred_fallthru
      _
    // Predicated region
    $region26: #{vae_forward.1} parent=1 // pred_check
      _
    $region27: #{vae_forward.1} parent=1 // pred_check_branch
      %77 = sbr.rel (0) target = $region29
    $region28: #{vae_forward.1} parent=1 // pred_region
      %s79 = ssub.s32 512, 512
      %80 = vsyncadd [#allocation11], %s79
      %s82 = sshll.u32 [#allocation10], 4
      %s83 = int_to_ptr.vmem [resolvable:$true] %s82
      %85 = dma.hbm_to_vmem [thread:$0]  %s6, 512, %s83, [#allocation11]
    $region29: #{vae_forward.1} parent=1 // pred_fallthru
      _
    // Predicated region
    $region30: #{vae_forward.1} parent=1 // pred_check
      _
    $region31: #{vae_forward.1} parent=1 // pred_check_branch
      %87 = sbr.rel (0) target = $region33
    $region32: #{vae_forward.1} parent=1 // pred_region
      %88 = dma.done [#allocation3], 32
    $region33: #{vae_forward.1} parent=1 // pred_fallthru
      _
    // Predicated region
    $region34: #{vae_forward.1} parent=1 // pred_check
      _
    $region35: #{vae_forward.1} parent=1 // pred_check_branch
      %90 = sbr.rel (0) target = $region37
    $region36: #{vae_forward.1} parent=1 // pred_region
      %91 = dma.done [#allocation5], 40960
    $region37: #{vae_forward.1} parent=1 // pred_fallthru
      _
    // Predicated region
    $region38: #{vae_forward.1} parent=1 // pred_check
      _
    $region39: #{vae_forward.1} parent=1 // pred_check_branch
      %93 = sbr.rel (0) target = $region41
    $region40: #{vae_forward.1} parent=1 // pred_region
      %94 = dma.done [#allocation5], 18432
    $region41: #{vae_forward.1} parent=1 // pred_fallthru
      _
    // Predicated region
    $region42: #{vae_forward.1} parent=1 // pred_check
      _
    $region43: #{vae_forward.1} parent=1 // pred_check_branch
      %96 = sbr.rel (0) target = $region45
    $region44: #{vae_forward.1} parent=1 // pred_region
      %97 = dma.done [#allocation8], 3072
    $region45: #{vae_forward.1} parent=1 // pred_fallthru
      _
    // Predicated region
    $region46: #{vae_forward.1} parent=1 // pred_check
      _
    $region47: #{vae_forward.1} parent=1 // pred_check_branch
      %99 = sbr.rel (0) target = $region49
    $region48: #{vae_forward.1} parent=1 // pred_region
      %100 = dma.done [#allocation8], 128
    $region49: #{vae_forward.1} parent=1 // pred_fallthru
      _
    // Predicated region
    $region50: #{vae_forward.1} parent=1 // pred_check
      _
    $region51: #{vae_forward.1} parent=1 // pred_check_branch
      %102 = sbr.rel (0) target = $region53
    $region52: #{vae_forward.1} parent=1 // pred_region
      %103 = dma.done [#allocation11], 512
    $region53: #{vae_forward.1} parent=1 // pred_fallthru
      _
    %v105 = vld [vmem:[#allocation10] sm:$0xff]
    %v106 = vld [vmem:[#allocation10 + $0x8] sm:$0xff]
    %v107 = vld [vmem:[#allocation10 + $0x10] sm:$0xff]
    %v108 = vld [vmem:[#allocation10 + $0x18] sm:$0xff]
    %v109 = vld [vmem:[%s0] sm:$0xff]
    %v110 = vld [vmem:[%s0 + $0x8] sm:$0xff]
    %v111 = vld [vmem:[#allocation4] sm:$0xff]
    %v112 = vld [vmem:[#allocation4 + $0x8] sm:$0xff]
    %v113 = vld [vmem:[#allocation4 + $0x10] sm:$0xff]
    %v114 = vld [vmem:[#allocation4 + $0x18] sm:$0xff]
    %v115 = vld [vmem:[#allocation4 + $0x20] sm:$0xff]
    %v116 = vld [vmem:[#allocation4 + $0x28] sm:$0xff]
    %v117 = vld [vmem:[#allocation4 + $0x30] sm:$0xff]
    %v118 = vld [vmem:[#allocation4 + $0x38] sm:$0xff]
    %v119 = vld [vmem:[#allocation4 + $0x40] sm:$0xff]
    %v120 = vld [vmem:[#allocation4 + $0x48] sm:$0xff]
    %v121 = vld [vmem:[#allocation4 + $0x50] sm:$0xff]
    %v122 = vld [vmem:[#allocation4 + $0x58] sm:$0xff]
    %v123 = vld [vmem:[#allocation4 + $0x60] sm:$0xff]
    %v124 = vld [vmem:[#allocation4 + $0x68] sm:$0xff]
    %v125 = vld [vmem:[#allocation4 + $0x70] sm:$0xff]
    %v126 = vld [vmem:[#allocation4 + $0x78] sm:$0xff]
    %v127 = vld [vmem:[#allocation4 + $0x80] sm:$0xff]
    %v128 = vld [vmem:[#allocation4 + $0x88] sm:$0xff]
    %v129 = vld [vmem:[#allocation4 + $0x90] sm:$0xff]
    %v130 = vld [vmem:[#allocation4 + $0x98] sm:$0xff]
    %v131 = vld [vmem:[#allocation4 + $0xa0] sm:$0xff]
    %v132 = vld [vmem:[#allocation4 + $0xa8] sm:$0xff]
    %v133 = vld [vmem:[#allocation4 + $0xb0] sm:$0xff]
    %v134 = vld [vmem:[#allocation4 + $0xb8] sm:$0xff]
    %v135 = vld [vmem:[#allocation4 + $0xc0] sm:$0xff]
    %v136 = vld [vmem:[#allocation4 + $0xc8] sm:$0xff]
    %v137 = vld [vmem:[#allocation4 + $0xd0] sm:$0xff]
    %v138 = vld [vmem:[#allocation4 + $0xd8] sm:$0xff]
    %v139 = vld [vmem:[#allocation4 + $0xe0] sm:$0xff]
    %v140 = vld [vmem:[#allocation4 + $0xe8] sm:$0xff]
    %v141 = vld [vmem:[#allocation4 + $0xf0] sm:$0xff]
    %v142 = vld [vmem:[#allocation4 + $0xf8] sm:$0xff]
    %v143 = vld [vmem:[#allocation4 + $0x100] sm:$0xff]
    %v144 = vld [vmem:[#allocation4 + $0x108] sm:$0xff]
    %v145 = vld [vmem:[#allocation4 + $0x110] sm:$0xff]
    %v146 = vld [vmem:[#allocation4 + $0x118] sm:$0xff]
    %v147 = vld [vmem:[#allocation4 + $0x120] sm:$0xff]
    %v148 = vld [vmem:[#allocation4 + $0x128] sm:$0xff]
    %v149 = vld [vmem:[#allocation4 + $0x130] sm:$0xff]
    %v150 = vld [vmem:[#allocation4 + $0x138] sm:$0xff]
    %v151 = vld [vmem:[#allocation4 + $0x140] sm:$0xff]
    %v152 = vld [vmem:[#allocation4 + $0x148] sm:$0xff]
    %v153 = vld [vmem:[#allocation4 + $0x150] sm:$0xff]
    %v154 = vld [vmem:[#allocation4 + $0x158] sm:$0xff]
    %v155 = vld [vmem:[#allocation4 + $0x160] sm:$0xff]
    %v156 = vld [vmem:[#allocation4 + $0x168] sm:$0xff]
    %v157 = vld [vmem:[#allocation4 + $0x170] sm:$0xff]
    %v158 = vld [vmem:[#allocation4 + $0x178] sm:$0xff]
    %v159 = vld [vmem:[#allocation4 + $0x180] sm:$0xff]
    %v160 = vld [vmem:[#allocation4 + $0x188] sm:$0xff]
    %v161 = vld [vmem:[#allocation4 + $0x190] sm:$0xff]
    %v162 = vld [vmem:[#allocation4 + $0x198] sm:$0xff]
    %v163 = vld [vmem:[#allocation4 + $0x1a0] sm:$0xff]
    %v164 = vld [vmem:[#allocation4 + $0x1a8] sm:$0xff]
    %v165 = vld [vmem:[#allocation4 + $0x1b0] sm:$0xff]
    %v166 = vld [vmem:[#allocation4 + $0x1b8] sm:$0xff]
    %v167 = vld [vmem:[#allocation4 + $0x1c0] sm:$0xff]
    %v168 = vld [vmem:[#allocation4 + $0x1c8] sm:$0xff]
    %v169 = vld [vmem:[#allocation4 + $0x1d0] sm:$0xff]
    %v170 = vld [vmem:[#allocation4 + $0x1d8] sm:$0xff]
    %v171 = vld [vmem:[#allocation4 + $0x1e0] sm:$0xff]
    %v172 = vld [vmem:[#allocation4 + $0x1e8] sm:$0xff]
    %v173 = vld [vmem:[#allocation4 + $0x1f0] sm:$0xff]
    %v174 = vld [vmem:[#allocation4 + $0x1f8] sm:$0xff]
    %v175 = vld [vmem:[#allocation4 + $0x200] sm:$0xff]
    %v176 = vld [vmem:[#allocation4 + $0x208] sm:$0xff]
    %v177 = vld [vmem:[#allocation4 + $0x210] sm:$0xff]
    %v178 = vld [vmem:[#allocation4 + $0x218] sm:$0xff]
    %v179 = vld [vmem:[#allocation4 + $0x220] sm:$0xff]
    %v180 = vld [vmem:[#allocation4 + $0x228] sm:$0xff]
    %v181 = vld [vmem:[#allocation4 + $0x230] sm:$0xff]
    %v182 = vld [vmem:[#allocation4 + $0x238] sm:$0xff]
    %v183 = vld [vmem:[#allocation4 + $0x240] sm:$0xff]
    %v184 = vld [vmem:[#allocation4 + $0x248] sm:$0xff]
    %v185 = vld [vmem:[#allocation4 + $0x250] sm:$0xff]
    %v186 = vld [vmem:[#allocation4 + $0x258] sm:$0xff]
    %v187 = vld [vmem:[#allocation4 + $0x260] sm:$0xff]
    %v188 = vld [vmem:[#allocation4 + $0x268] sm:$0xff]
    %v189 = vld [vmem:[#allocation4 + $0x270] sm:$0xff]
    %v190 = vld [vmem:[#allocation4 + $0x278] sm:$0xff]
    %v191 = vld [vmem:[#allocation4 + $0x280] sm:$0xff]
    %v192 = vld [vmem:[#allocation4 + $0x288] sm:$0xff]
    %v193 = vld [vmem:[#allocation4 + $0x290] sm:$0xff]
    %v194 = vld [vmem:[#allocation4 + $0x298] sm:$0xff]
    %v195 = vld [vmem:[#allocation4 + $0x2a0] sm:$0xff]
    %v196 = vld [vmem:[#allocation4 + $0x2a8] sm:$0xff]
    %v197 = vld [vmem:[#allocation4 + $0x2b0] sm:$0xff]
    %v198 = vld [vmem:[#allocation4 + $0x2b8] sm:$0xff]
    %v199 = vld [vmem:[#allocation4 + $0x2c0] sm:$0xff]
    %v200 = vld [vmem:[#allocation4 + $0x2c8] sm:$0xff]
    %v201 = vld [vmem:[#allocation4 + $0x2d0] sm:$0xff]
    %v202 = vld [vmem:[#allocation4 + $0x2d8] sm:$0xff]
    %v203 = vld [vmem:[#allocation4 + $0x2e0] sm:$0xff]
    %v204 = vld [vmem:[#allocation4 + $0x2e8] sm:$0xff]
    %v205 = vld [vmem:[#allocation4 + $0x2f0] sm:$0xff]
    %v206 = vld [vmem:[#allocation4 + $0x2f8] sm:$0xff]
    %v207 = vld [vmem:[#allocation4 + $0x300] sm:$0xff]
    %v208 = vld [vmem:[#allocation4 + $0x308] sm:$0xff]
    %v209 = vld [vmem:[#allocation4 + $0x310] sm:$0xff]
    %v210 = vld [vmem:[#allocation4 + $0x318] sm:$0xff]
    %v211 = vld [vmem:[#allocation4 + $0x320] sm:$0xff]
    %v212 = vld [vmem:[#allocation4 + $0x328] sm:$0xff]
    %v213 = vld [vmem:[#allocation4 + $0x330] sm:$0xff]
    %v214 = vld [vmem:[#allocation4 + $0x338] sm:$0xff]
    %v215 = vld [vmem:[#allocation4 + $0x340] sm:$0xff]
    %v216 = vld [vmem:[#allocation4 + $0x348] sm:$0xff]
    %v217 = vld [vmem:[#allocation4 + $0x350] sm:$0xff]
    %v218 = vld [vmem:[#allocation4 + $0x358] sm:$0xff]
    %v219 = vld [vmem:[#allocation4 + $0x360] sm:$0xff]
    %v220 = vld [vmem:[#allocation4 + $0x368] sm:$0xff]
    %v221 = vld [vmem:[#allocation4 + $0x370] sm:$0xff]
    %v222 = vld [vmem:[#allocation4 + $0x378] sm:$0xff]
    %v223 = vld [vmem:[#allocation4 + $0x380] sm:$0xff]
    %v224 = vld [vmem:[#allocation4 + $0x388] sm:$0xff]
    %v225 = vld [vmem:[#allocation4 + $0x390] sm:$0xff]
    %v226 = vld [vmem:[#allocation4 + $0x398] sm:$0xff]
    %v227 = vld [vmem:[#allocation4 + $0x3a0] sm:$0xff]
    %v228 = vld [vmem:[#allocation4 + $0x3a8] sm:$0xff]
    %v229 = vld [vmem:[#allocation4 + $0x3b0] sm:$0xff]
    %v230 = vld [vmem:[#allocation4 + $0x3b8] sm:$0xff]
    %v231 = vld [vmem:[#allocation4 + $0x3c0] sm:$0xff]
    %v232 = vld [vmem:[#allocation4 + $0x3c8] sm:$0xff]
    %v233 = vld [vmem:[#allocation4 + $0x3d0] sm:$0xff]
    %v234 = vld [vmem:[#allocation4 + $0x3d8] sm:$0xff]
    %v235 = vld [vmem:[#allocation4 + $0x3e0] sm:$0xff]
    %v236 = vld [vmem:[#allocation4 + $0x3e8] sm:$0xff]
    %v237 = vld [vmem:[#allocation4 + $0x3f0] sm:$0xff]
    %v238 = vld [vmem:[#allocation4 + $0x3f8] sm:$0xff]
    %v239 = vld [vmem:[#allocation4 + $0x400] sm:$0xff]
    %v240 = vld [vmem:[#allocation4 + $0x408] sm:$0xff]
    %v241 = vld [vmem:[#allocation4 + $0x410] sm:$0xff]
    %v242 = vld [vmem:[#allocation4 + $0x418] sm:$0xff]
    %v243 = vld [vmem:[#allocation4 + $0x420] sm:$0xff]
    %v244 = vld [vmem:[#allocation4 + $0x428] sm:$0xff]
    %v245 = vld [vmem:[#allocation4 + $0x430] sm:$0xff]
    %v246 = vld [vmem:[#allocation4 + $0x438] sm:$0xff]
    %v247 = vld [vmem:[#allocation4 + $0x440] sm:$0xff]
    %v248 = vld [vmem:[#allocation4 + $0x448] sm:$0xff]
    %v249 = vld [vmem:[#allocation4 + $0x450] sm:$0xff]
    %v250 = vld [vmem:[#allocation4 + $0x458] sm:$0xff]
    %v251 = vld [vmem:[#allocation4 + $0x460] sm:$0xff]
    %v252 = vld [vmem:[#allocation4 + $0x468] sm:$0xff]
    %v253 = vld [vmem:[#allocation4 + $0x470] sm:$0xff]
    %v254 = vld [vmem:[#allocation4 + $0x478] sm:$0xff]
    %v255 = vld [vmem:[#allocation4 + $0x480] sm:$0xff]
    %v256 = vld [vmem:[#allocation4 + $0x488] sm:$0xff]
    %v257 = vld [vmem:[#allocation4 + $0x490] sm:$0xff]
    %v258 = vld [vmem:[#allocation4 + $0x498] sm:$0xff]
    %v259 = vld [vmem:[#allocation4 + $0x4a0] sm:$0xff]
    %v260 = vld [vmem:[#allocation4 + $0x4a8] sm:$0xff]
    %v261 = vld [vmem:[#allocation4 + $0x4b0] sm:$0xff]
    %v262 = vld [vmem:[#allocation4 + $0x4b8] sm:$0xff]
    %v263 = vld [vmem:[#allocation4 + $0x4c0] sm:$0xff]
    %v264 = vld [vmem:[#allocation4 + $0x4c8] sm:$0xff]
    %v265 = vld [vmem:[#allocation4 + $0x4d0] sm:$0xff]
    %v266 = vld [vmem:[#allocation4 + $0x4d8] sm:$0xff]
    %v267 = vld [vmem:[#allocation4 + $0x4e0] sm:$0xff]
    %v268 = vld [vmem:[#allocation4 + $0x4e8] sm:$0xff]
    %v269 = vld [vmem:[#allocation4 + $0x4f0] sm:$0xff]
    %v270 = vld [vmem:[#allocation4 + $0x4f8] sm:$0xff]
    %v271 = vld [vmem:[#allocation4 + $0x500] sm:$0xff]
    %v272 = vld [vmem:[#allocation4 + $0x508] sm:$0xff]
    %v273 = vld [vmem:[#allocation4 + $0x510] sm:$0xff]
    %v274 = vld [vmem:[#allocation4 + $0x518] sm:$0xff]
    %v275 = vld [vmem:[#allocation4 + $0x520] sm:$0xff]
    %v276 = vld [vmem:[#allocation4 + $0x528] sm:$0xff]
    %v277 = vld [vmem:[#allocation4 + $0x530] sm:$0xff]
    %v278 = vld [vmem:[#allocation4 + $0x538] sm:$0xff]
    %v279 = vld [vmem:[#allocation4 + $0x540] sm:$0xff]
    %v280 = vld [vmem:[#allocation4 + $0x548] sm:$0xff]
    %v281 = vld [vmem:[#allocation4 + $0x550] sm:$0xff]
    %v282 = vld [vmem:[#allocation4 + $0x558] sm:$0xff]
    %v283 = vld [vmem:[#allocation4 + $0x560] sm:$0xff]
    %v284 = vld [vmem:[#allocation4 + $0x568] sm:$0xff]
    %v285 = vld [vmem:[#allocation4 + $0x570] sm:$0xff]
    %v286 = vld [vmem:[#allocation4 + $0x578] sm:$0xff]
    %v287 = vld [vmem:[#allocation4 + $0x580] sm:$0xff]
    %v288 = vld [vmem:[#allocation4 + $0x588] sm:$0xff]
    %v289 = vld [vmem:[#allocation4 + $0x590] sm:$0xff]
    %v290 = vld [vmem:[#allocation4 + $0x598] sm:$0xff]
    %v291 = vld [vmem:[#allocation4 + $0x5a0] sm:$0xff]
    %v292 = vld [vmem:[#allocation4 + $0x5a8] sm:$0xff]
    %v293 = vld [vmem:[#allocation4 + $0x5b0] sm:$0xff]
    %v294 = vld [vmem:[#allocation4 + $0x5b8] sm:$0xff]
    %v295 = vld [vmem:[#allocation4 + $0x5c0] sm:$0xff]
    %v296 = vld [vmem:[#allocation4 + $0x5c8] sm:$0xff]
    %v297 = vld [vmem:[#allocation4 + $0x5d0] sm:$0xff]
    %v298 = vld [vmem:[#allocation4 + $0x5d8] sm:$0xff]
    %v299 = vld [vmem:[#allocation4 + $0x5e0] sm:$0xff]
    %v300 = vld [vmem:[#allocation4 + $0x5e8] sm:$0xff]
    %v301 = vld [vmem:[#allocation4 + $0x5f0] sm:$0xff]
    %v302 = vld [vmem:[#allocation4 + $0x5f8] sm:$0xff]
    %v303 = vld [vmem:[#allocation4 + $0x600] sm:$0xff]
    %v304 = vld [vmem:[#allocation4 + $0x608] sm:$0xff]
    %v305 = vld [vmem:[#allocation4 + $0x610] sm:$0xff]
    %v306 = vld [vmem:[#allocation4 + $0x618] sm:$0xff]
    %v307 = vld [vmem:[#allocation4 + $0x620] sm:$0xff]
    %v308 = vld [vmem:[#allocation4 + $0x628] sm:$0xff]
    %v309 = vld [vmem:[#allocation4 + $0x630] sm:$0xff]
    %v310 = vld [vmem:[#allocation4 + $0x638] sm:$0xff]
    %v311 = vld [vmem:[#allocation4 + $0x640] sm:$0xff]
    %v312 = vld [vmem:[#allocation4 + $0x648] sm:$0xff]
    %v313 = vld [vmem:[#allocation4 + $0x650] sm:$0xff]
    %v314 = vld [vmem:[#allocation4 + $0x658] sm:$0xff]
    %v315 = vld [vmem:[#allocation4 + $0x660] sm:$0xff]
    %v316 = vld [vmem:[#allocation4 + $0x668] sm:$0xff]
    %v317 = vld [vmem:[#allocation4 + $0x670] sm:$0xff]
    %v318 = vld [vmem:[#allocation4 + $0x678] sm:$0xff]
    %v319 = vld [vmem:[#allocation4 + $0x680] sm:$0xff]
    %v320 = vld [vmem:[#allocation4 + $0x688] sm:$0xff]
    %v321 = vld [vmem:[#allocation4 + $0x690] sm:$0xff]
    %v322 = vld [vmem:[#allocation4 + $0x698] sm:$0xff]
    %v323 = vld [vmem:[#allocation4 + $0x6a0] sm:$0xff]
    %v324 = vld [vmem:[#allocation4 + $0x6a8] sm:$0xff]
    %v325 = vld [vmem:[#allocation4 + $0x6b0] sm:$0xff]
    %v326 = vld [vmem:[#allocation4 + $0x6b8] sm:$0xff]
    %v327 = vld [vmem:[#allocation4 + $0x6c0] sm:$0xff]
    %v328 = vld [vmem:[#allocation4 + $0x6c8] sm:$0xff]
    %v329 = vld [vmem:[#allocation4 + $0x6d0] sm:$0xff]
    %v330 = vld [vmem:[#allocation4 + $0x6d8] sm:$0xff]
    %v331 = vld [vmem:[#allocation4 + $0x6e0] sm:$0xff]
    %v332 = vld [vmem:[#allocation4 + $0x6e8] sm:$0xff]
    %v333 = vld [vmem:[#allocation4 + $0x6f0] sm:$0xff]
    %v334 = vld [vmem:[#allocation4 + $0x6f8] sm:$0xff]
    %v335 = vld [vmem:[#allocation4 + $0x700] sm:$0xff]
    %v336 = vld [vmem:[#allocation4 + $0x708] sm:$0xff]
    %v337 = vld [vmem:[#allocation4 + $0x710] sm:$0xff]
    %v338 = vld [vmem:[#allocation4 + $0x718] sm:$0xff]
    %v339 = vld [vmem:[#allocation4 + $0x720] sm:$0xff]
    %v340 = vld [vmem:[#allocation4 + $0x728] sm:$0xff]
    %v341 = vld [vmem:[#allocation4 + $0x730] sm:$0xff]
    %v342 = vld [vmem:[#allocation4 + $0x738] sm:$0xff]
    %v343 = vld [vmem:[#allocation4 + $0x740] sm:$0xff]
    %v344 = vld [vmem:[#allocation4 + $0x748] sm:$0xff]
    %v345 = vld [vmem:[#allocation4 + $0x750] sm:$0xff]
    %v346 = vld [vmem:[#allocation4 + $0x758] sm:$0xff]
    %v347 = vld [vmem:[#allocation4 + $0x760] sm:$0xff]
    %v348 = vld [vmem:[#allocation4 + $0x768] sm:$0xff]
    %v349 = vld [vmem:[#allocation4 + $0x770] sm:$0xff]
    %v350 = vld [vmem:[#allocation4 + $0x778] sm:$0xff]
    %v351 = vld [vmem:[#allocation4 + $0x780] sm:$0xff]
    %v352 = vld [vmem:[#allocation4 + $0x788] sm:$0xff]
    %v353 = vld [vmem:[#allocation4 + $0x790] sm:$0xff]
    %v354 = vld [vmem:[#allocation4 + $0x798] sm:$0xff]
    %v355 = vld [vmem:[#allocation4 + $0x7a0] sm:$0xff]
    %v356 = vld [vmem:[#allocation4 + $0x7a8] sm:$0xff]
    %v357 = vld [vmem:[#allocation4 + $0x7b0] sm:$0xff]
    %v358 = vld [vmem:[#allocation4 + $0x7b8] sm:$0xff]
    %v359 = vld [vmem:[#allocation4 + $0x7c0] sm:$0xff]
    %v360 = vld [vmem:[#allocation4 + $0x7c8] sm:$0xff]
    %v361 = vld [vmem:[#allocation4 + $0x7d0] sm:$0xff]
    %v362 = vld [vmem:[#allocation4 + $0x7d8] sm:$0xff]
    %v363 = vld [vmem:[#allocation4 + $0x7e0] sm:$0xff]
    %v364 = vld [vmem:[#allocation4 + $0x7e8] sm:$0xff]
    %v365 = vld [vmem:[#allocation4 + $0x7f0] sm:$0xff]
    %v366 = vld [vmem:[#allocation4 + $0x7f8] sm:$0xff]
    %v369 = vcombine.high %v109, %v109
    %v371 = vunpack.c.l.s4 1983009808
    %v372 = vunpack.c.0.s8 %v371
    %v373 = vlaneseq
    %v374 = vshrl.u32 %v373, 7
    %v375 = vsub.s32 %v372, %v374
    %v376 = vrot.slane %v109, %v375
    %v378 = vunpack.c.l.s4 1983009808
    %v379 = vunpack.c.0.s8 %v378
    %v380 = vlaneseq
    %v381 = vshrl.u32 %v380, 7
    %v382 = vsub.s32 %v379, %v381
    %v383 = vrot.slane %v369, %v382
    %v384 = vcombine.high %v376, %v376
    %v385 = vcombine.high %v383, %v383
    %v386 = vcombine.high %v110, %v110
    %v388 = vunpack.c.l.s4 1983009808
    %v389 = vunpack.c.0.s8 %v388
    %v390 = vlaneseq
    %v391 = vshrl.u32 %v390, 7
    %v392 = vsub.s32 %v389, %v391
    %v393 = vrot.slane %v110, %v392
    %v395 = vunpack.c.l.s4 1983009808
    %v396 = vunpack.c.0.s8 %v395
    %v397 = vlaneseq
    %v398 = vshrl.u32 %v397, 7
    %v399 = vsub.s32 %v396, %v398
    %v400 = vrot.slane %v386, %v399
    %v401 = vcombine.high %v393, %v393
    %v402 = vcombine.high %v400, %v400
    %v411 = vpack.c.bf16 %v376, %v376
    %v412 = vpack.c.bf16 %v384, %v384
    %v413 = vpack.c.bf16 %v383, %v383
    %v414 = vpack.c.bf16 %v385, %v385
    %v415 = vpack.c.bf16 %v393, %v393
    %v416 = vpack.c.bf16 %v401, %v401
    %v417 = vpack.c.bf16 %v400, %v400
    %v418 = vpack.c.bf16 %v402, %v402
    %v419 = vlaneseq
    %v420 = vshrl.u32 %v419, 7
    %v421 = vsub.s32 0, %v420
    %v422 = vrot.slane %v105, %v421
    %v423 = vlaneseq
    %v424 = vshrl.u32 %v423, 7
    %v425 = vsub.s32 0, %v424
    %v426 = vrot.slane %v106, %v425
    %v427 = vlaneseq
    %v428 = vshrl.u32 %v427, 7
    %v429 = vsub.s32 0, %v428
    %v430 = vrot.slane %v107, %v429
    %v431 = vlaneseq
    %v432 = vshrl.u32 %v431, 7
    %v433 = vsub.s32 0, %v432
    %v434 = vrot.slane %v108, %v433
    %v691 = vunpack.c.l.b16 %v111
    %v692 = vunpack.c.h.b16 %v111
    %v693 = vunpack.c.l.b16 %v112
    %v694 = vunpack.c.h.b16 %v112
    %v695 = vunpack.c.l.b16 %v113
    %v696 = vunpack.c.h.b16 %v113
    %v697 = vunpack.c.l.b16 %v114
    %v698 = vunpack.c.h.b16 %v114
    %v699 = vunpack.c.l.b16 %v115
    %v700 = vunpack.c.h.b16 %v115
    %v701 = vunpack.c.l.b16 %v116
    %v702 = vunpack.c.h.b16 %v116
    %v703 = vunpack.c.l.b16 %v117
    %v704 = vunpack.c.h.b16 %v117
    %v705 = vunpack.c.l.b16 %v118
    %v706 = vunpack.c.h.b16 %v118
    %v707 = vunpack.c.l.b16 %v119
    %v708 = vunpack.c.h.b16 %v119
    %v709 = vunpack.c.l.b16 %v120
    %v710 = vunpack.c.h.b16 %v120
    %v711 = vunpack.c.l.b16 %v121
    %v712 = vunpack.c.h.b16 %v121
    %v713 = vunpack.c.l.b16 %v122
    %v714 = vunpack.c.h.b16 %v122
    %v715 = vunpack.c.l.b16 %v123
    %v716 = vunpack.c.h.b16 %v123
    %v717 = vunpack.c.l.b16 %v124
    %v718 = vunpack.c.h.b16 %v124
    %v719 = vunpack.c.l.b16 %v125
    %v720 = vunpack.c.h.b16 %v125
    %v721 = vunpack.c.l.b16 %v126
    %v722 = vunpack.c.h.b16 %v126
    %v723 = vunpack.c.l.b16 %v127
    %v724 = vunpack.c.h.b16 %v127
    %v725 = vunpack.c.l.b16 %v128
    %v726 = vunpack.c.h.b16 %v128
    %v727 = vunpack.c.l.b16 %v129
    %v728 = vunpack.c.h.b16 %v129
    %v729 = vunpack.c.l.b16 %v130
    %v730 = vunpack.c.h.b16 %v130
    %v731 = vunpack.c.l.b16 %v131
    %v732 = vunpack.c.h.b16 %v131
    %v733 = vunpack.c.l.b16 %v132
    %v734 = vunpack.c.h.b16 %v132
    %v735 = vunpack.c.l.b16 %v133
    %v736 = vunpack.c.h.b16 %v133
    %v737 = vunpack.c.l.b16 %v134
    %v738 = vunpack.c.h.b16 %v134
    %v739 = vunpack.c.l.b16 %v135
    %v740 = vunpack.c.h.b16 %v135
    %v741 = vunpack.c.l.b16 %v136
    %v742 = vunpack.c.h.b16 %v136
    %v743 = vunpack.c.l.b16 %v137
    %v744 = vunpack.c.h.b16 %v137
    %v745 = vunpack.c.l.b16 %v138
    %v746 = vunpack.c.h.b16 %v138
    %v747 = vunpack.c.l.b16 %v139
    %v748 = vunpack.c.h.b16 %v139
    %v749 = vunpack.c.l.b16 %v140
    %v750 = vunpack.c.h.b16 %v140
    %v751 = vunpack.c.l.b16 %v141
    %v752 = vunpack.c.h.b16 %v141
    %v753 = vunpack.c.l.b16 %v142
    %v754 = vunpack.c.h.b16 %v142
    %v755 = vunpack.c.l.b16 %v143
    %v756 = vunpack.c.h.b16 %v143
    %v757 = vunpack.c.l.b16 %v144
    %v758 = vunpack.c.h.b16 %v144
    %v759 = vunpack.c.l.b16 %v145
    %v760 = vunpack.c.h.b16 %v145
    %v761 = vunpack.c.l.b16 %v146
    %v762 = vunpack.c.h.b16 %v146
    %v763 = vunpack.c.l.b16 %v147
    %v764 = vunpack.c.h.b16 %v147
    %v765 = vunpack.c.l.b16 %v148
    %v766 = vunpack.c.h.b16 %v148
    %v767 = vunpack.c.l.b16 %v149
    %v768 = vunpack.c.h.b16 %v149
    %v769 = vunpack.c.l.b16 %v150
    %v770 = vunpack.c.h.b16 %v150
    %v771 = vunpack.c.l.b16 %v151
    %v772 = vunpack.c.h.b16 %v151
    %v773 = vunpack.c.l.b16 %v152
    %v774 = vunpack.c.h.b16 %v152
    %v775 = vunpack.c.l.b16 %v153
    %v776 = vunpack.c.h.b16 %v153
    %v777 = vunpack.c.l.b16 %v154
    %v778 = vunpack.c.h.b16 %v154
    %v779 = vunpack.c.l.b16 %v155
    %v780 = vunpack.c.h.b16 %v155
    %v781 = vunpack.c.l.b16 %v156
    %v782 = vunpack.c.h.b16 %v156
    %v783 = vunpack.c.l.b16 %v157
    %v784 = vunpack.c.h.b16 %v157
    %v785 = vunpack.c.l.b16 %v158
    %v786 = vunpack.c.h.b16 %v158
    %v787 = vunpack.c.l.b16 %v159
    %v788 = vunpack.c.h.b16 %v159
    %v789 = vunpack.c.l.b16 %v160
    %v790 = vunpack.c.h.b16 %v160
    %v791 = vunpack.c.l.b16 %v161
    %v792 = vunpack.c.h.b16 %v161
    %v793 = vunpack.c.l.b16 %v162
    %v794 = vunpack.c.h.b16 %v162
    %v795 = vunpack.c.l.b16 %v163
    %v796 = vunpack.c.h.b16 %v163
    %v797 = vunpack.c.l.b16 %v164
    %v798 = vunpack.c.h.b16 %v164
    %v799 = vunpack.c.l.b16 %v165
    %v800 = vunpack.c.h.b16 %v165
    %v801 = vunpack.c.l.b16 %v166
    %v802 = vunpack.c.h.b16 %v166
    %v803 = vunpack.c.l.b16 %v167
    %v804 = vunpack.c.h.b16 %v167
    %v805 = vunpack.c.l.b16 %v168
    %v806 = vunpack.c.h.b16 %v168
    %v807 = vunpack.c.l.b16 %v169
    %v808 = vunpack.c.h.b16 %v169
    %v809 = vunpack.c.l.b16 %v170
    %v810 = vunpack.c.h.b16 %v170
    %v811 = vunpack.c.l.b16 %v171
    %v812 = vunpack.c.h.b16 %v171
    %v813 = vunpack.c.l.b16 %v172
    %v814 = vunpack.c.h.b16 %v172
    %v815 = vunpack.c.l.b16 %v173
    %v816 = vunpack.c.h.b16 %v173
    %v817 = vunpack.c.l.b16 %v174
    %v818 = vunpack.c.h.b16 %v174
    %v819 = vunpack.c.l.b16 %v175
    %v820 = vunpack.c.h.b16 %v175
    %v821 = vunpack.c.l.b16 %v176
    %v822 = vunpack.c.h.b16 %v176
    %v823 = vunpack.c.l.b16 %v177
    %v824 = vunpack.c.h.b16 %v177
    %v825 = vunpack.c.l.b16 %v178
    %v826 = vunpack.c.h.b16 %v178
    %v827 = vunpack.c.l.b16 %v179
    %v828 = vunpack.c.h.b16 %v179
    %v829 = vunpack.c.l.b16 %v180
    %v830 = vunpack.c.h.b16 %v180
    %v831 = vunpack.c.l.b16 %v181
    %v832 = vunpack.c.h.b16 %v181
    %v833 = vunpack.c.l.b16 %v182
    %v834 = vunpack.c.h.b16 %v182
    %v835 = vunpack.c.l.b16 %v183
    %v836 = vunpack.c.h.b16 %v183
    %v837 = vunpack.c.l.b16 %v184
    %v838 = vunpack.c.h.b16 %v184
    %v839 = vunpack.c.l.b16 %v185
    %v840 = vunpack.c.h.b16 %v185
    %v841 = vunpack.c.l.b16 %v186
    %v842 = vunpack.c.h.b16 %v186
    %v843 = vunpack.c.l.b16 %v187
    %v844 = vunpack.c.h.b16 %v187
    %v845 = vunpack.c.l.b16 %v188
    %v846 = vunpack.c.h.b16 %v188
    %v847 = vunpack.c.l.b16 %v189
    %v848 = vunpack.c.h.b16 %v189
    %v849 = vunpack.c.l.b16 %v190
    %v850 = vunpack.c.h.b16 %v190
    %v851 = vunpack.c.l.b16 %v191
    %v852 = vunpack.c.h.b16 %v191
    %v853 = vunpack.c.l.b16 %v192
    %v854 = vunpack.c.h.b16 %v192
    %v855 = vunpack.c.l.b16 %v193
    %v856 = vunpack.c.h.b16 %v193
    %v857 = vunpack.c.l.b16 %v194
    %v858 = vunpack.c.h.b16 %v194
    %v859 = vunpack.c.l.b16 %v195
    %v860 = vunpack.c.h.b16 %v195
    %v861 = vunpack.c.l.b16 %v196
    %v862 = vunpack.c.h.b16 %v196
    %v863 = vunpack.c.l.b16 %v197
    %v864 = vunpack.c.h.b16 %v197
    %v865 = vunpack.c.l.b16 %v198
    %v866 = vunpack.c.h.b16 %v198
    %v867 = vunpack.c.l.b16 %v199
    %v868 = vunpack.c.h.b16 %v199
    %v869 = vunpack.c.l.b16 %v200
    %v870 = vunpack.c.h.b16 %v200
    %v871 = vunpack.c.l.b16 %v201
    %v872 = vunpack.c.h.b16 %v201
    %v873 = vunpack.c.l.b16 %v202
    %v874 = vunpack.c.h.b16 %v202
    %v875 = vunpack.c.l.b16 %v203
    %v876 = vunpack.c.h.b16 %v203
    %v877 = vunpack.c.l.b16 %v204
    %v878 = vunpack.c.h.b16 %v204
    %v879 = vunpack.c.l.b16 %v205
    %v880 = vunpack.c.h.b16 %v205
    %v881 = vunpack.c.l.b16 %v206
    %v882 = vunpack.c.h.b16 %v206
    %v883 = vunpack.c.l.b16 %v207
    %v884 = vunpack.c.h.b16 %v207
    %v885 = vunpack.c.l.b16 %v208
    %v886 = vunpack.c.h.b16 %v208
    %v887 = vunpack.c.l.b16 %v209
    %v888 = vunpack.c.h.b16 %v209
    %v889 = vunpack.c.l.b16 %v210
    %v890 = vunpack.c.h.b16 %v210
    %v891 = vunpack.c.l.b16 %v211
    %v892 = vunpack.c.h.b16 %v211
    %v893 = vunpack.c.l.b16 %v212
    %v894 = vunpack.c.h.b16 %v212
    %v895 = vunpack.c.l.b16 %v213
    %v896 = vunpack.c.h.b16 %v213
    %v897 = vunpack.c.l.b16 %v214
    %v898 = vunpack.c.h.b16 %v214
    %v899 = vunpack.c.l.b16 %v215
    %v900 = vunpack.c.h.b16 %v215
    %v901 = vunpack.c.l.b16 %v216
    %v902 = vunpack.c.h.b16 %v216
    %v903 = vunpack.c.l.b16 %v217
    %v904 = vunpack.c.h.b16 %v217
    %v905 = vunpack.c.l.b16 %v218
    %v906 = vunpack.c.h.b16 %v218
    %v907 = vunpack.c.l.b16 %v219
    %v908 = vunpack.c.h.b16 %v219
    %v909 = vunpack.c.l.b16 %v220
    %v910 = vunpack.c.h.b16 %v220
    %v911 = vunpack.c.l.b16 %v221
    %v912 = vunpack.c.h.b16 %v221
    %v913 = vunpack.c.l.b16 %v222
    %v914 = vunpack.c.h.b16 %v222
    %v915 = vunpack.c.l.b16 %v223
    %v916 = vunpack.c.h.b16 %v223
    %v917 = vunpack.c.l.b16 %v224
    %v918 = vunpack.c.h.b16 %v224
    %v919 = vunpack.c.l.b16 %v225
    %v920 = vunpack.c.h.b16 %v225
    %v921 = vunpack.c.l.b16 %v226
    %v922 = vunpack.c.h.b16 %v226
    %v923 = vunpack.c.l.b16 %v227
    %v924 = vunpack.c.h.b16 %v227
    %v925 = vunpack.c.l.b16 %v228
    %v926 = vunpack.c.h.b16 %v228
    %v927 = vunpack.c.l.b16 %v229
    %v928 = vunpack.c.h.b16 %v229
    %v929 = vunpack.c.l.b16 %v230
    %v930 = vunpack.c.h.b16 %v230
    %v931 = vunpack.c.l.b16 %v231
    %v932 = vunpack.c.h.b16 %v231
    %v933 = vunpack.c.l.b16 %v232
    %v934 = vunpack.c.h.b16 %v232
    %v935 = vunpack.c.l.b16 %v233
    %v936 = vunpack.c.h.b16 %v233
    %v937 = vunpack.c.l.b16 %v234
    %v938 = vunpack.c.h.b16 %v234
    %v939 = vunpack.c.l.b16 %v235
    %v940 = vunpack.c.h.b16 %v235
    %v941 = vunpack.c.l.b16 %v236
    %v942 = vunpack.c.h.b16 %v236
    %v943 = vunpack.c.l.b16 %v237
    %v944 = vunpack.c.h.b16 %v237
    %v945 = vunpack.c.l.b16 %v238
    %v946 = vunpack.c.h.b16 %v238
    %v947 = vunpack.c.l.b16 %v239
    %v948 = vunpack.c.h.b16 %v239
    %v949 = vunpack.c.l.b16 %v240
    %v950 = vunpack.c.h.b16 %v240
    %v951 = vunpack.c.l.b16 %v241
    %v952 = vunpack.c.h.b16 %v241
    %v953 = vunpack.c.l.b16 %v242
    %v954 = vunpack.c.h.b16 %v242
    %v955 = vunpack.c.l.b16 %v243
    %v956 = vunpack.c.h.b16 %v243
    %v957 = vunpack.c.l.b16 %v244
    %v958 = vunpack.c.h.b16 %v244
    %v959 = vunpack.c.l.b16 %v245
    %v960 = vunpack.c.h.b16 %v245
    %v961 = vunpack.c.l.b16 %v246
    %v962 = vunpack.c.h.b16 %v246
    %v963 = vunpack.c.l.b16 %v247
    %v964 = vunpack.c.h.b16 %v247
    %v965 = vunpack.c.l.b16 %v248
    %v966 = vunpack.c.h.b16 %v248
    %v967 = vunpack.c.l.b16 %v249
    %v968 = vunpack.c.h.b16 %v249
    %v969 = vunpack.c.l.b16 %v250
    %v970 = vunpack.c.h.b16 %v250
    %v971 = vunpack.c.l.b16 %v251
    %v972 = vunpack.c.h.b16 %v251
    %v973 = vunpack.c.l.b16 %v252
    %v974 = vunpack.c.h.b16 %v252
    %v975 = vunpack.c.l.b16 %v253
    %v976 = vunpack.c.h.b16 %v253
    %v977 = vunpack.c.l.b16 %v254
    %v978 = vunpack.c.h.b16 %v254
    %v979 = vunpack.c.l.b16 %v255
    %v980 = vunpack.c.h.b16 %v255
    %v981 = vunpack.c.l.b16 %v256
    %v982 = vunpack.c.h.b16 %v256
    %v983 = vunpack.c.l.b16 %v257
    %v984 = vunpack.c.h.b16 %v257
    %v985 = vunpack.c.l.b16 %v258
    %v986 = vunpack.c.h.b16 %v258
    %v987 = vunpack.c.l.b16 %v259
    %v988 = vunpack.c.h.b16 %v259
    %v989 = vunpack.c.l.b16 %v260
    %v990 = vunpack.c.h.b16 %v260
    %v991 = vunpack.c.l.b16 %v261
    %v992 = vunpack.c.h.b16 %v261
    %v993 = vunpack.c.l.b16 %v262
    %v994 = vunpack.c.h.b16 %v262
    %v995 = vunpack.c.l.b16 %v263
    %v996 = vunpack.c.h.b16 %v263
    %v997 = vunpack.c.l.b16 %v264
    %v998 = vunpack.c.h.b16 %v264
    %v999 = vunpack.c.l.b16 %v265
    %v1000 = vunpack.c.h.b16 %v265
    %v1001 = vunpack.c.l.b16 %v266
    %v1002 = vunpack.c.h.b16 %v266
    %v1003 = vunpack.c.l.b16 %v267
    %v1004 = vunpack.c.h.b16 %v267
    %v1005 = vunpack.c.l.b16 %v268
    %v1006 = vunpack.c.h.b16 %v268
    %v1007 = vunpack.c.l.b16 %v269
    %v1008 = vunpack.c.h.b16 %v269
    %v1009 = vunpack.c.l.b16 %v270
    %v1010 = vunpack.c.h.b16 %v270
    %v1011 = vunpack.c.l.b16 %v271
    %v1012 = vunpack.c.h.b16 %v271
    %v1013 = vunpack.c.l.b16 %v272
    %v1014 = vunpack.c.h.b16 %v272
    %v1015 = vunpack.c.l.b16 %v273
    %v1016 = vunpack.c.h.b16 %v273
    %v1017 = vunpack.c.l.b16 %v274
    %v1018 = vunpack.c.h.b16 %v274
    %v1019 = vunpack.c.l.b16 %v275
    %v1020 = vunpack.c.h.b16 %v275
    %v1021 = vunpack.c.l.b16 %v276
    %v1022 = vunpack.c.h.b16 %v276
    %v1023 = vunpack.c.l.b16 %v277
    %v1024 = vunpack.c.h.b16 %v277
    %v1025 = vunpack.c.l.b16 %v278
    %v1026 = vunpack.c.h.b16 %v278
    %v1027 = vunpack.c.l.b16 %v279
    %v1028 = vunpack.c.h.b16 %v279
    %v1029 = vunpack.c.l.b16 %v280
    %v1030 = vunpack.c.h.b16 %v280
    %v1031 = vunpack.c.l.b16 %v281
    %v1032 = vunpack.c.h.b16 %v281
    %v1033 = vunpack.c.l.b16 %v282
    %v1034 = vunpack.c.h.b16 %v282
    %v1035 = vunpack.c.l.b16 %v283
    %v1036 = vunpack.c.h.b16 %v283
    %v1037 = vunpack.c.l.b16 %v284
    %v1038 = vunpack.c.h.b16 %v284
    %v1039 = vunpack.c.l.b16 %v285
    %v1040 = vunpack.c.h.b16 %v285
    %v1041 = vunpack.c.l.b16 %v286
    %v1042 = vunpack.c.h.b16 %v286
    %v1043 = vunpack.c.l.b16 %v287
    %v1044 = vunpack.c.h.b16 %v287
    %v1045 = vunpack.c.l.b16 %v288
    %v1046 = vunpack.c.h.b16 %v288
    %v1047 = vunpack.c.l.b16 %v289
    %v1048 = vunpack.c.h.b16 %v289
    %v1049 = vunpack.c.l.b16 %v290
    %v1050 = vunpack.c.h.b16 %v290
    %v1051 = vunpack.c.l.b16 %v291
    %v1052 = vunpack.c.h.b16 %v291
    %v1053 = vunpack.c.l.b16 %v292
    %v1054 = vunpack.c.h.b16 %v292
    %v1055 = vunpack.c.l.b16 %v293
    %v1056 = vunpack.c.h.b16 %v293
    %v1057 = vunpack.c.l.b16 %v294
    %v1058 = vunpack.c.h.b16 %v294
    %v1059 = vunpack.c.l.b16 %v295
    %v1060 = vunpack.c.h.b16 %v295
    %v1061 = vunpack.c.l.b16 %v296
    %v1062 = vunpack.c.h.b16 %v296
    %v1063 = vunpack.c.l.b16 %v297
    %v1064 = vunpack.c.h.b16 %v297
    %v1065 = vunpack.c.l.b16 %v298
    %v1066 = vunpack.c.h.b16 %v298
    %v1067 = vunpack.c.l.b16 %v299
    %v1068 = vunpack.c.h.b16 %v299
    %v1069 = vunpack.c.l.b16 %v300
    %v1070 = vunpack.c.h.b16 %v300
    %v1071 = vunpack.c.l.b16 %v301
    %v1072 = vunpack.c.h.b16 %v301
    %v1073 = vunpack.c.l.b16 %v302
    %v1074 = vunpack.c.h.b16 %v302
    %v1075 = vunpack.c.l.b16 %v303
    %v1076 = vunpack.c.h.b16 %v303
    %v1077 = vunpack.c.l.b16 %v304
    %v1078 = vunpack.c.h.b16 %v304
    %v1079 = vunpack.c.l.b16 %v305
    %v1080 = vunpack.c.h.b16 %v305
    %v1081 = vunpack.c.l.b16 %v306
    %v1082 = vunpack.c.h.b16 %v306
    %v1083 = vunpack.c.l.b16 %v307
    %v1084 = vunpack.c.h.b16 %v307
    %v1085 = vunpack.c.l.b16 %v308
    %v1086 = vunpack.c.h.b16 %v308
    %v1087 = vunpack.c.l.b16 %v309
    %v1088 = vunpack.c.h.b16 %v309
    %v1089 = vunpack.c.l.b16 %v310
    %v1090 = vunpack.c.h.b16 %v310
    %v1091 = vunpack.c.l.b16 %v311
    %v1092 = vunpack.c.h.b16 %v311
    %v1093 = vunpack.c.l.b16 %v312
    %v1094 = vunpack.c.h.b16 %v312
    %v1095 = vunpack.c.l.b16 %v313
    %v1096 = vunpack.c.h.b16 %v313
    %v1097 = vunpack.c.l.b16 %v314
    %v1098 = vunpack.c.h.b16 %v314
    %v1099 = vunpack.c.l.b16 %v315
    %v1100 = vunpack.c.h.b16 %v315
    %v1101 = vunpack.c.l.b16 %v316
    %v1102 = vunpack.c.h.b16 %v316
    %v1103 = vunpack.c.l.b16 %v317
    %v1104 = vunpack.c.h.b16 %v317
    %v1105 = vunpack.c.l.b16 %v318
    %v1106 = vunpack.c.h.b16 %v318
    %v1107 = vunpack.c.l.b16 %v319
    %v1108 = vunpack.c.h.b16 %v319
    %v1109 = vunpack.c.l.b16 %v320
    %v1110 = vunpack.c.h.b16 %v320
    %v1111 = vunpack.c.l.b16 %v321
    %v1112 = vunpack.c.h.b16 %v321
    %v1113 = vunpack.c.l.b16 %v322
    %v1114 = vunpack.c.h.b16 %v322
    %v1115 = vunpack.c.l.b16 %v323
    %v1116 = vunpack.c.h.b16 %v323
    %v1117 = vunpack.c.l.b16 %v324
    %v1118 = vunpack.c.h.b16 %v324
    %v1119 = vunpack.c.l.b16 %v325
    %v1120 = vunpack.c.h.b16 %v325
    %v1121 = vunpack.c.l.b16 %v326
    %v1122 = vunpack.c.h.b16 %v326
    %v1123 = vunpack.c.l.b16 %v327
    %v1124 = vunpack.c.h.b16 %v327
    %v1125 = vunpack.c.l.b16 %v328
    %v1126 = vunpack.c.h.b16 %v328
    %v1127 = vunpack.c.l.b16 %v329
    %v1128 = vunpack.c.h.b16 %v329
    %v1129 = vunpack.c.l.b16 %v330
    %v1130 = vunpack.c.h.b16 %v330
    %v1131 = vunpack.c.l.b16 %v331
    %v1132 = vunpack.c.h.b16 %v331
    %v1133 = vunpack.c.l.b16 %v332
    %v1134 = vunpack.c.h.b16 %v332
    %v1135 = vunpack.c.l.b16 %v333
    %v1136 = vunpack.c.h.b16 %v333
    %v1137 = vunpack.c.l.b16 %v334
    %v1138 = vunpack.c.h.b16 %v334
    %v1139 = vunpack.c.l.b16 %v335
    %v1140 = vunpack.c.h.b16 %v335
    %v1141 = vunpack.c.l.b16 %v336
    %v1142 = vunpack.c.h.b16 %v336
    %v1143 = vunpack.c.l.b16 %v337
    %v1144 = vunpack.c.h.b16 %v337
    %v1145 = vunpack.c.l.b16 %v338
    %v1146 = vunpack.c.h.b16 %v338
    %v1147 = vunpack.c.l.b16 %v339
    %v1148 = vunpack.c.h.b16 %v339
    %v1149 = vunpack.c.l.b16 %v340
    %v1150 = vunpack.c.h.b16 %v340
    %v1151 = vunpack.c.l.b16 %v341
    %v1152 = vunpack.c.h.b16 %v341
    %v1153 = vunpack.c.l.b16 %v342
    %v1154 = vunpack.c.h.b16 %v342
    %v1155 = vunpack.c.l.b16 %v343
    %v1156 = vunpack.c.h.b16 %v343
    %v1157 = vunpack.c.l.b16 %v344
    %v1158 = vunpack.c.h.b16 %v344
    %v1159 = vunpack.c.l.b16 %v345
    %v1160 = vunpack.c.h.b16 %v345
    %v1161 = vunpack.c.l.b16 %v346
    %v1162 = vunpack.c.h.b16 %v346
    %v1163 = vunpack.c.l.b16 %v347
    %v1164 = vunpack.c.h.b16 %v347
    %v1165 = vunpack.c.l.b16 %v348
    %v1166 = vunpack.c.h.b16 %v348
    %v1167 = vunpack.c.l.b16 %v349
    %v1168 = vunpack.c.h.b16 %v349
    %v1169 = vunpack.c.l.b16 %v350
    %v1170 = vunpack.c.h.b16 %v350
    %v1171 = vunpack.c.l.b16 %v351
    %v1172 = vunpack.c.h.b16 %v351
    %v1173 = vunpack.c.l.b16 %v352
    %v1174 = vunpack.c.h.b16 %v352
    %v1175 = vunpack.c.l.b16 %v353
    %v1176 = vunpack.c.h.b16 %v353
    %v1177 = vunpack.c.l.b16 %v354
    %v1178 = vunpack.c.h.b16 %v354
    %v1179 = vunpack.c.l.b16 %v355
    %v1180 = vunpack.c.h.b16 %v355
    %v1181 = vunpack.c.l.b16 %v356
    %v1182 = vunpack.c.h.b16 %v356
    %v1183 = vunpack.c.l.b16 %v357
    %v1184 = vunpack.c.h.b16 %v357
    %v1185 = vunpack.c.l.b16 %v358
    %v1186 = vunpack.c.h.b16 %v358
    %v1187 = vunpack.c.l.b16 %v359
    %v1188 = vunpack.c.h.b16 %v359
    %v1189 = vunpack.c.l.b16 %v360
    %v1190 = vunpack.c.h.b16 %v360
    %v1191 = vunpack.c.l.b16 %v361
    %v1192 = vunpack.c.h.b16 %v361
    %v1193 = vunpack.c.l.b16 %v362
    %v1194 = vunpack.c.h.b16 %v362
    %v1195 = vunpack.c.l.b16 %v363
    %v1196 = vunpack.c.h.b16 %v363
    %v1197 = vunpack.c.l.b16 %v364
    %v1198 = vunpack.c.h.b16 %v364
    %v1199 = vunpack.c.l.b16 %v365
    %v1200 = vunpack.c.h.b16 %v365
    %v1201 = vunpack.c.l.b16 %v366
    %v1202 = vunpack.c.h.b16 %v366
    %v1203 = vpack.c.b16 %v695, %v691
    %v1204 = vpack.c.b16 %v696, %v692
    %v1205 = vpack.c.b16 %v697, %v693
    %v1206 = vpack.c.b16 %v698, %v694
    %v1207 = vpack.c.b16 %v703, %v699
    %v1208 = vpack.c.b16 %v704, %v700
    %v1209 = vpack.c.b16 %v705, %v701
    %v1210 = vpack.c.b16 %v706, %v702
    %v1211 = vpack.c.b16 %v711, %v707
    %v1212 = vpack.c.b16 %v712, %v708
    %v1213 = vpack.c.b16 %v713, %v709
    %v1214 = vpack.c.b16 %v714, %v710
    %v1215 = vpack.c.b16 %v719, %v715
    %v1216 = vpack.c.b16 %v720, %v716
    %v1217 = vpack.c.b16 %v721, %v717
    %v1218 = vpack.c.b16 %v722, %v718
    %v1219 = vpack.c.b16 %v727, %v723
    %v1220 = vpack.c.b16 %v728, %v724
    %v1221 = vpack.c.b16 %v729, %v725
    %v1222 = vpack.c.b16 %v730, %v726
    %v1223 = vpack.c.b16 %v735, %v731
    %v1224 = vpack.c.b16 %v736, %v732
    %v1225 = vpack.c.b16 %v737, %v733
    %v1226 = vpack.c.b16 %v738, %v734
    %v1227 = vpack.c.b16 %v743, %v739
    %v1228 = vpack.c.b16 %v744, %v740
    %v1229 = vpack.c.b16 %v745, %v741
    %v1230 = vpack.c.b16 %v746, %v742
    %v1231 = vpack.c.b16 %v751, %v747
    %v1232 = vpack.c.b16 %v752, %v748
    %v1233 = vpack.c.b16 %v753, %v749
    %v1234 = vpack.c.b16 %v754, %v750
    %v1235 = vpack.c.b16 %v759, %v755
    %v1236 = vpack.c.b16 %v760, %v756
    %v1237 = vpack.c.b16 %v761, %v757
    %v1238 = vpack.c.b16 %v762, %v758
    %v1239 = vpack.c.b16 %v767, %v763
    %v1240 = vpack.c.b16 %v768, %v764
    %v1241 = vpack.c.b16 %v769, %v765
    %v1242 = vpack.c.b16 %v770, %v766
    %v1243 = vpack.c.b16 %v775, %v771
    %v1244 = vpack.c.b16 %v776, %v772
    %v1245 = vpack.c.b16 %v777, %v773
    %v1246 = vpack.c.b16 %v778, %v774
    %v1247 = vpack.c.b16 %v783, %v779
    %v1248 = vpack.c.b16 %v784, %v780
    %v1249 = vpack.c.b16 %v785, %v781
    %v1250 = vpack.c.b16 %v786, %v782
    %v1251 = vpack.c.b16 %v791, %v787
    %v1252 = vpack.c.b16 %v792, %v788
    %v1253 = vpack.c.b16 %v793, %v789
    %v1254 = vpack.c.b16 %v794, %v790
    %v1255 = vpack.c.b16 %v799, %v795
    %v1256 = vpack.c.b16 %v800, %v796
    %v1257 = vpack.c.b16 %v801, %v797
    %v1258 = vpack.c.b16 %v802, %v798
    %v1259 = vpack.c.b16 %v807, %v803
    %v1260 = vpack.c.b16 %v808, %v804
    %v1261 = vpack.c.b16 %v809, %v805
    %v1262 = vpack.c.b16 %v810, %v806
    %v1263 = vpack.c.b16 %v815, %v811
    %v1264 = vpack.c.b16 %v816, %v812
    %v1265 = vpack.c.b16 %v817, %v813
    %v1266 = vpack.c.b16 %v818, %v814
    %v1267 = vpack.c.b16 %v823, %v819
    %v1268 = vpack.c.b16 %v824, %v820
    %v1269 = vpack.c.b16 %v825, %v821
    %v1270 = vpack.c.b16 %v826, %v822
    %v1271 = vpack.c.b16 %v831, %v827
    %v1272 = vpack.c.b16 %v832, %v828
    %v1273 = vpack.c.b16 %v833, %v829
    %v1274 = vpack.c.b16 %v834, %v830
    %v1275 = vpack.c.b16 %v839, %v835
    %v1276 = vpack.c.b16 %v840, %v836
    %v1277 = vpack.c.b16 %v841, %v837
    %v1278 = vpack.c.b16 %v842, %v838
    %v1279 = vpack.c.b16 %v847, %v843
    %v1280 = vpack.c.b16 %v848, %v844
    %v1281 = vpack.c.b16 %v849, %v845
    %v1282 = vpack.c.b16 %v850, %v846
    %v1283 = vpack.c.b16 %v855, %v851
    %v1284 = vpack.c.b16 %v856, %v852
    %v1285 = vpack.c.b16 %v857, %v853
    %v1286 = vpack.c.b16 %v858, %v854
    %v1287 = vpack.c.b16 %v863, %v859
    %v1288 = vpack.c.b16 %v864, %v860
    %v1289 = vpack.c.b16 %v865, %v861
    %v1290 = vpack.c.b16 %v866, %v862
    %v1291 = vpack.c.b16 %v871, %v867
    %v1292 = vpack.c.b16 %v872, %v868
    %v1293 = vpack.c.b16 %v873, %v869
    %v1294 = vpack.c.b16 %v874, %v870
    %v1295 = vpack.c.b16 %v879, %v875
    %v1296 = vpack.c.b16 %v880, %v876
    %v1297 = vpack.c.b16 %v881, %v877
    %v1298 = vpack.c.b16 %v882, %v878
    %v1299 = vpack.c.b16 %v887, %v883
    %v1300 = vpack.c.b16 %v888, %v884
    %v1301 = vpack.c.b16 %v889, %v885
    %v1302 = vpack.c.b16 %v890, %v886
    %v1303 = vpack.c.b16 %v895, %v891
    %v1304 = vpack.c.b16 %v896, %v892
    %v1305 = vpack.c.b16 %v897, %v893
    %v1306 = vpack.c.b16 %v898, %v894
    %v1307 = vpack.c.b16 %v903, %v899
    %v1308 = vpack.c.b16 %v904, %v900
    %v1309 = vpack.c.b16 %v905, %v901
    %v1310 = vpack.c.b16 %v906, %v902
    %v1311 = vpack.c.b16 %v911, %v907
    %v1312 = vpack.c.b16 %v912, %v908
    %v1313 = vpack.c.b16 %v913, %v909
    %v1314 = vpack.c.b16 %v914, %v910
    %v1315 = vpack.c.b16 %v919, %v915
    %v1316 = vpack.c.b16 %v920, %v916
    %v1317 = vpack.c.b16 %v921, %v917
    %v1318 = vpack.c.b16 %v922, %v918
    %v1319 = vpack.c.b16 %v927, %v923
    %v1320 = vpack.c.b16 %v928, %v924
    %v1321 = vpack.c.b16 %v929, %v925
    %v1322 = vpack.c.b16 %v930, %v926
    %v1323 = vpack.c.b16 %v935, %v931
    %v1324 = vpack.c.b16 %v936, %v932
    %v1325 = vpack.c.b16 %v937, %v933
    %v1326 = vpack.c.b16 %v938, %v934
    %v1327 = vpack.c.b16 %v943, %v939
    %v1328 = vpack.c.b16 %v944, %v940
    %v1329 = vpack.c.b16 %v945, %v941
    %v1330 = vpack.c.b16 %v946, %v942
    %v1331 = vpack.c.b16 %v951, %v947
    %v1332 = vpack.c.b16 %v952, %v948
    %v1333 = vpack.c.b16 %v953, %v949
    %v1334 = vpack.c.b16 %v954, %v950
    %v1335 = vpack.c.b16 %v959, %v955
    %v1336 = vpack.c.b16 %v960, %v956
    %v1337 = vpack.c.b16 %v961, %v957
    %v1338 = vpack.c.b16 %v962, %v958
    %v1339 = vpack.c.b16 %v967, %v963
    %v1340 = vpack.c.b16 %v968, %v964
    %v1341 = vpack.c.b16 %v969, %v965
    %v1342 = vpack.c.b16 %v970, %v966
    %v1343 = vpack.c.b16 %v975, %v971
    %v1344 = vpack.c.b16 %v976, %v972
    %v1345 = vpack.c.b16 %v977, %v973
    %v1346 = vpack.c.b16 %v978, %v974
    %v1347 = vpack.c.b16 %v983, %v979
    %v1348 = vpack.c.b16 %v984, %v980
    %v1349 = vpack.c.b16 %v985, %v981
    %v1350 = vpack.c.b16 %v986, %v982
    %v1351 = vpack.c.b16 %v991, %v987
    %v1352 = vpack.c.b16 %v992, %v988
    %v1353 = vpack.c.b16 %v993, %v989
    %v1354 = vpack.c.b16 %v994, %v990
    %v1355 = vpack.c.b16 %v999, %v995
    %v1356 = vpack.c.b16 %v1000, %v996
    %v1357 = vpack.c.b16 %v1001, %v997
    %v1358 = vpack.c.b16 %v1002, %v998
    %v1359 = vpack.c.b16 %v1007, %v1003
    %v1360 = vpack.c.b16 %v1008, %v1004
    %v1361 = vpack.c.b16 %v1009, %v1005
    %v1362 = vpack.c.b16 %v1010, %v1006
    %v1363 = vpack.c.b16 %v1015, %v1011
    %v1364 = vpack.c.b16 %v1016, %v1012
    %v1365 = vpack.c.b16 %v1017, %v1013
    %v1366 = vpack.c.b16 %v1018, %v1014
    %v1367 = vpack.c.b16 %v1023, %v1019
    %v1368 = vpack.c.b16 %v1024, %v1020
    %v1369 = vpack.c.b16 %v1025, %v1021
    %v1370 = vpack.c.b16 %v1026, %v1022
    %v1371 = vpack.c.b16 %v1031, %v1027
    %v1372 = vpack.c.b16 %v1032, %v1028
    %v1373 = vpack.c.b16 %v1033, %v1029
    %v1374 = vpack.c.b16 %v1034, %v1030
    %v1375 = vpack.c.b16 %v1039, %v1035
    %v1376 = vpack.c.b16 %v1040, %v1036
    %v1377 = vpack.c.b16 %v1041, %v1037
    %v1378 = vpack.c.b16 %v1042, %v1038
    %v1379 = vpack.c.b16 %v1047, %v1043
    %v1380 = vpack.c.b16 %v1048, %v1044
    %v1381 = vpack.c.b16 %v1049, %v1045
    %v1382 = vpack.c.b16 %v1050, %v1046
    %v1383 = vpack.c.b16 %v1055, %v1051
    %v1384 = vpack.c.b16 %v1056, %v1052
    %v1385 = vpack.c.b16 %v1057, %v1053
    %v1386 = vpack.c.b16 %v1058, %v1054
    %v1387 = vpack.c.b16 %v1063, %v1059
    %v1388 = vpack.c.b16 %v1064, %v1060
    %v1389 = vpack.c.b16 %v1065, %v1061
    %v1390 = vpack.c.b16 %v1066, %v1062
    %v1391 = vpack.c.b16 %v1071, %v1067
    %v1392 = vpack.c.b16 %v1072, %v1068
    %v1393 = vpack.c.b16 %v1073, %v1069
    %v1394 = vpack.c.b16 %v1074, %v1070
    %v1395 = vpack.c.b16 %v1079, %v1075
    %v1396 = vpack.c.b16 %v1080, %v1076
    %v1397 = vpack.c.b16 %v1081, %v1077
    %v1398 = vpack.c.b16 %v1082, %v1078
    %v1399 = vpack.c.b16 %v1087, %v1083
    %v1400 = vpack.c.b16 %v1088, %v1084
    %v1401 = vpack.c.b16 %v1089, %v1085
    %v1402 = vpack.c.b16 %v1090, %v1086
    %v1403 = vpack.c.b16 %v1095, %v1091
    %v1404 = vpack.c.b16 %v1096, %v1092
    %v1405 = vpack.c.b16 %v1097, %v1093
    %v1406 = vpack.c.b16 %v1098, %v1094
    %v1407 = vpack.c.b16 %v1103, %v1099
    %v1408 = vpack.c.b16 %v1104, %v1100
    %v1409 = vpack.c.b16 %v1105, %v1101
    %v1410 = vpack.c.b16 %v1106, %v1102
    %v1411 = vpack.c.b16 %v1111, %v1107
    %v1412 = vpack.c.b16 %v1112, %v1108
    %v1413 = vpack.c.b16 %v1113, %v1109
    %v1414 = vpack.c.b16 %v1114, %v1110
    %v1415 = vpack.c.b16 %v1119, %v1115
    %v1416 = vpack.c.b16 %v1120, %v1116
    %v1417 = vpack.c.b16 %v1121, %v1117
    %v1418 = vpack.c.b16 %v1122, %v1118
    %v1419 = vpack.c.b16 %v1127, %v1123
    %v1420 = vpack.c.b16 %v1128, %v1124
    %v1421 = vpack.c.b16 %v1129, %v1125
    %v1422 = vpack.c.b16 %v1130, %v1126
    %v1423 = vpack.c.b16 %v1135, %v1131
    %v1424 = vpack.c.b16 %v1136, %v1132
    %v1425 = vpack.c.b16 %v1137, %v1133
    %v1426 = vpack.c.b16 %v1138, %v1134
    %v1427 = vpack.c.b16 %v1143, %v1139
    %v1428 = vpack.c.b16 %v1144, %v1140
    %v1429 = vpack.c.b16 %v1145, %v1141
    %v1430 = vpack.c.b16 %v1146, %v1142
    %v1431 = vpack.c.b16 %v1151, %v1147
    %v1432 = vpack.c.b16 %v1152, %v1148
    %v1433 = vpack.c.b16 %v1153, %v1149
    %v1434 = vpack.c.b16 %v1154, %v1150
    %v1435 = vpack.c.b16 %v1159, %v1155
    %v1436 = vpack.c.b16 %v1160, %v1156
    %v1437 = vpack.c.b16 %v1161, %v1157
    %v1438 = vpack.c.b16 %v1162, %v1158
    %v1439 = vpack.c.b16 %v1167, %v1163
    %v1440 = vpack.c.b16 %v1168, %v1164
    %v1441 = vpack.c.b16 %v1169, %v1165
    %v1442 = vpack.c.b16 %v1170, %v1166
    %v1443 = vpack.c.b16 %v1175, %v1171
    %v1444 = vpack.c.b16 %v1176, %v1172
    %v1445 = vpack.c.b16 %v1177, %v1173
    %v1446 = vpack.c.b16 %v1178, %v1174
    %v1447 = vpack.c.b16 %v1183, %v1179
    %v1448 = vpack.c.b16 %v1184, %v1180
    %v1449 = vpack.c.b16 %v1185, %v1181
    %v1450 = vpack.c.b16 %v1186, %v1182
    %v1451 = vpack.c.b16 %v1191, %v1187
    %v1452 = vpack.c.b16 %v1192, %v1188
    %v1453 = vpack.c.b16 %v1193, %v1189
    %v1454 = vpack.c.b16 %v1194, %v1190
    %v1455 = vpack.c.b16 %v1199, %v1195
    %v1456 = vpack.c.b16 %v1200, %v1196
    %v1457 = vpack.c.b16 %v1201, %v1197
    %v1458 = vpack.c.b16 %v1202, %v1198
    %1715 = vmatprep.subr.bf16.mxu0 %v1232
    %1716 = vmatpush1.bf16.msra.mxu0 %v1231
    %1717 = vmatprep.subr.bf16.mxu0 %v1228
    %1718 = vmatpush1.bf16.msra.mxu0 %v1227
    %1719 = vmatprep.subr.bf16.mxu0 %v1224
    %1720 = vmatpush1.bf16.msra.mxu0 %v1223
    %1721 = vmatprep.subr.bf16.mxu0 %v1220
    %1722 = vmatpush1.bf16.msra.mxu0 %v1219
    %1723 = vmatprep.subr.bf16.mxu0 %v1216
    %1724 = vmatpush1.bf16.msra.mxu0 %v1215
    %1725 = vmatprep.subr.bf16.mxu0 %v1212
    %1726 = vmatpush1.bf16.msra.mxu0 %v1211
    %1727 = vmatprep.subr.bf16.mxu0 %v1208
    %1728 = vmatpush1.bf16.msra.mxu0 %v1207
    %1729 = vmatprep.subr.bf16.mxu0 %v1204
    %1730 = vmatpush1.bf16.msra.mxu0 %v1203
    %1731 = vmatprep.subr.bf16.mxu0 %v1264
    %1732 = vmatpush2.bf16.msra.mxu0 %v1263
    %1733 = vmatprep.subr.bf16.mxu0 %v1260
    %1734 = vmatpush2.bf16.msra.mxu0 %v1259
    %1735 = vmatprep.subr.bf16.mxu0 %v1256
    %1736 = vmatpush2.bf16.msra.mxu0 %v1255
    %1737 = vmatprep.subr.bf16.mxu0 %v1252
    %1738 = vmatpush2.bf16.msra.mxu0 %v1251
    %1739 = vmatprep.subr.bf16.mxu0 %v1248
    %1740 = vmatpush2.bf16.msra.mxu0 %v1247
    %1741 = vmatprep.subr.bf16.mxu0 %v1244
    %1742 = vmatpush2.bf16.msra.mxu0 %v1243
    %1743 = vmatprep.subr.bf16.mxu0 %v1240
    %1744 = vmatpush2.bf16.msra.mxu0 %v1239
    %1745 = vmatprep.subr.bf16.mxu0 %v1236
    %1746 = vmatpush2.bf16.msra.mxu0 %v1235
    %1747 = vmatprep.mubr.bf16.mxu0 %v412
    %1748 = vmatmul.mubr.bf16.gmra.mxu0 %v411
    %v1749 = vpop.f32.mrf.mxu0
    %v1750 = vadd.f32 %v422, %v1749
    %v1751 = vpop.f32.mrf.mxu0
    %v1752 = vadd.f32 %v426, %v1751
    %v1753 = vpop.f32.mrf.mxu0
    %v1754 = vpop.f32.mrf.mxu0
    %1755 = vdwg.mxu0
    %1756 = vmatprep.subr.bf16.mxu0 %v1296
    %1757 = vmatpush1.bf16.msra.mxu0 %v1295
    %1758 = vmatprep.subr.bf16.mxu0 %v1292
    %1759 = vmatpush1.bf16.msra.mxu0 %v1291
    %1760 = vmatprep.subr.bf16.mxu0 %v1288
    %1761 = vmatpush1.bf16.msra.mxu0 %v1287
    %1762 = vmatprep.subr.bf16.mxu0 %v1284
    %1763 = vmatpush1.bf16.msra.mxu0 %v1283
    %1764 = vmatprep.subr.bf16.mxu0 %v1280
    %1765 = vmatpush1.bf16.msra.mxu0 %v1279
    %1766 = vmatprep.subr.bf16.mxu0 %v1276
    %1767 = vmatpush1.bf16.msra.mxu0 %v1275
    %1768 = vmatprep.subr.bf16.mxu0 %v1272
    %1769 = vmatpush1.bf16.msra.mxu0 %v1271
    %1770 = vmatprep.subr.bf16.mxu0 %v1268
    %1771 = vmatpush1.bf16.msra.mxu0 %v1267
    %1772 = vmatprep.subr.bf16.mxu0 %v1328
    %1773 = vmatpush2.bf16.msra.mxu0 %v1327
    %1774 = vmatprep.subr.bf16.mxu0 %v1324
    %1775 = vmatpush2.bf16.msra.mxu0 %v1323
    %1776 = vmatprep.subr.bf16.mxu0 %v1320
    %1777 = vmatpush2.bf16.msra.mxu0 %v1319
    %1778 = vmatprep.subr.bf16.mxu0 %v1316
    %1779 = vmatpush2.bf16.msra.mxu0 %v1315
    %1780 = vmatprep.subr.bf16.mxu0 %v1312
    %1781 = vmatpush2.bf16.msra.mxu0 %v1311
    %1782 = vmatprep.subr.bf16.mxu0 %v1308
    %1783 = vmatpush2.bf16.msra.mxu0 %v1307
    %1784 = vmatprep.subr.bf16.mxu0 %v1304
    %1785 = vmatpush2.bf16.msra.mxu0 %v1303
    %1786 = vmatprep.subr.bf16.mxu0 %v1300
    %1787 = vmatpush2.bf16.msra.mxu0 %v1299
    %1788 = vmatprep.mubr.bf16.mxu0 %v414
    %1789 = vmatmul.mubr.bf16.gmra.mxu0 %v413
    %v1790 = vpop.f32.mrf.mxu0
    %v1791 = vadd.f32 %v1750, %v1790
    %v1792 = vpop.f32.mrf.mxu0
    %v1793 = vadd.f32 %v1752, %v1792
    %v1794 = vpop.f32.mrf.mxu0
    %v1795 = vpop.f32.mrf.mxu0
    %1796 = vdwg.mxu0
    %1797 = vmatprep.subr.bf16.mxu0 %v1360
    %1798 = vmatpush1.bf16.msra.mxu0 %v1359
    %1799 = vmatprep.subr.bf16.mxu0 %v1356
    %1800 = vmatpush1.bf16.msra.mxu0 %v1355
    %1801 = vmatprep.subr.bf16.mxu0 %v1352
    %1802 = vmatpush1.bf16.msra.mxu0 %v1351
    %1803 = vmatprep.subr.bf16.mxu0 %v1348
    %1804 = vmatpush1.bf16.msra.mxu0 %v1347
    %1805 = vmatprep.subr.bf16.mxu0 %v1344
    %1806 = vmatpush1.bf16.msra.mxu0 %v1343
    %1807 = vmatprep.subr.bf16.mxu0 %v1340
    %1808 = vmatpush1.bf16.msra.mxu0 %v1339
    %1809 = vmatprep.subr.bf16.mxu0 %v1336
    %1810 = vmatpush1.bf16.msra.mxu0 %v1335
    %1811 = vmatprep.subr.bf16.mxu0 %v1332
    %1812 = vmatpush1.bf16.msra.mxu0 %v1331
    %1813 = vmatprep.subr.bf16.mxu0 %v1392
    %1814 = vmatpush2.bf16.msra.mxu0 %v1391
    %1815 = vmatprep.subr.bf16.mxu0 %v1388
    %1816 = vmatpush2.bf16.msra.mxu0 %v1387
    %1817 = vmatprep.subr.bf16.mxu0 %v1384
    %1818 = vmatpush2.bf16.msra.mxu0 %v1383
    %1819 = vmatprep.subr.bf16.mxu0 %v1380
    %1820 = vmatpush2.bf16.msra.mxu0 %v1379
    %1821 = vmatprep.subr.bf16.mxu0 %v1376
    %1822 = vmatpush2.bf16.msra.mxu0 %v1375
    %1823 = vmatprep.subr.bf16.mxu0 %v1372
    %1824 = vmatpush2.bf16.msra.mxu0 %v1371
    %1825 = vmatprep.subr.bf16.mxu0 %v1368
    %1826 = vmatpush2.bf16.msra.mxu0 %v1367
    %1827 = vmatprep.subr.bf16.mxu0 %v1364
    %1828 = vmatpush2.bf16.msra.mxu0 %v1363
    %1829 = vmatprep.mubr.bf16.mxu0 %v416
    %1830 = vmatmul.mubr.bf16.gmra.mxu0 %v415
    %v1831 = vpop.f32.mrf.mxu0
    %v1832 = vadd.f32 %v1791, %v1831
    %v1833 = vpop.f32.mrf.mxu0
    %v1834 = vadd.f32 %v1793, %v1833
    %v1835 = vpop.f32.mrf.mxu0
    %v1836 = vpop.f32.mrf.mxu0
    %1837 = vdwg.mxu0
    %1838 = vmatprep.subr.bf16.mxu0 %v1424
    %1839 = vmatpush1.bf16.msra.mxu0 %v1423
    %1840 = vmatprep.subr.bf16.mxu0 %v1420
    %1841 = vmatpush1.bf16.msra.mxu0 %v1419
    %1842 = vmatprep.subr.bf16.mxu0 %v1416
    %1843 = vmatpush1.bf16.msra.mxu0 %v1415
    %1844 = vmatprep.subr.bf16.mxu0 %v1412
    %1845 = vmatpush1.bf16.msra.mxu0 %v1411
    %1846 = vmatprep.subr.bf16.mxu0 %v1408
    %1847 = vmatpush1.bf16.msra.mxu0 %v1407
    %1848 = vmatprep.subr.bf16.mxu0 %v1404
    %1849 = vmatpush1.bf16.msra.mxu0 %v1403
    %1850 = vmatprep.subr.bf16.mxu0 %v1400
    %1851 = vmatpush1.bf16.msra.mxu0 %v1399
    %1852 = vmatprep.subr.bf16.mxu0 %v1396
    %1853 = vmatpush1.bf16.msra.mxu0 %v1395
    %1854 = vmatprep.subr.bf16.mxu0 %v1456
    %1855 = vmatpush2.bf16.msra.mxu0 %v1455
    %1856 = vmatprep.subr.bf16.mxu0 %v1452
    %1857 = vmatpush2.bf16.msra.mxu0 %v1451
    %1858 = vmatprep.subr.bf16.mxu0 %v1448
    %1859 = vmatpush2.bf16.msra.mxu0 %v1447
    %1860 = vmatprep.subr.bf16.mxu0 %v1444
    %1861 = vmatpush2.bf16.msra.mxu0 %v1443
    %1862 = vmatprep.subr.bf16.mxu0 %v1440
    %1863 = vmatpush2.bf16.msra.mxu0 %v1439
    %1864 = vmatprep.subr.bf16.mxu0 %v1436
    %1865 = vmatpush2.bf16.msra.mxu0 %v1435
    %1866 = vmatprep.subr.bf16.mxu0 %v1432
    %1867 = vmatpush2.bf16.msra.mxu0 %v1431
    %1868 = vmatprep.subr.bf16.mxu0 %v1428
    %1869 = vmatpush2.bf16.msra.mxu0 %v1427
    %1870 = vmatprep.mubr.bf16.mxu0 %v418
    %1871 = vmatmul.mubr.bf16.gmra.mxu0 %v417
    %v1872 = vpop.f32.mrf.mxu0
    %v1873 = vadd.f32 %v1832, %v1872
    %v1874 = vpop.f32.mrf.mxu0
    %v1875 = vadd.f32 %v1834, %v1874
    %v1876 = vpop.f32.mrf.mxu0
    %v1877 = vpop.f32.mrf.mxu0
    %1878 = vdwg.mxu0
    %1879 = vmatprep.subr.bf16.mxu0 %v1234
    %1880 = vmatpush1.bf16.msra.mxu0 %v1233
    %1881 = vmatprep.subr.bf16.mxu0 %v1230
    %1882 = vmatpush1.bf16.msra.mxu0 %v1229
    %1883 = vmatprep.subr.bf16.mxu0 %v1226
    %1884 = vmatpush1.bf16.msra.mxu0 %v1225
    %1885 = vmatprep.subr.bf16.mxu0 %v1222
    %1886 = vmatpush1.bf16.msra.mxu0 %v1221
    %1887 = vmatprep.subr.bf16.mxu0 %v1218
    %1888 = vmatpush1.bf16.msra.mxu0 %v1217
    %1889 = vmatprep.subr.bf16.mxu0 %v1214
    %1890 = vmatpush1.bf16.msra.mxu0 %v1213
    %1891 = vmatprep.subr.bf16.mxu0 %v1210
    %1892 = vmatpush1.bf16.msra.mxu0 %v1209
    %1893 = vmatprep.subr.bf16.mxu0 %v1206
    %1894 = vmatpush1.bf16.msra.mxu0 %v1205
    %1895 = vmatprep.subr.bf16.mxu0 %v1266
    %1896 = vmatpush2.bf16.msra.mxu0 %v1265
    %1897 = vmatprep.subr.bf16.mxu0 %v1262
    %1898 = vmatpush2.bf16.msra.mxu0 %v1261
    %1899 = vmatprep.subr.bf16.mxu0 %v1258
    %1900 = vmatpush2.bf16.msra.mxu0 %v1257
    %1901 = vmatprep.subr.bf16.mxu0 %v1254
    %1902 = vmatpush2.bf16.msra.mxu0 %v1253
    %1903 = vmatprep.subr.bf16.mxu0 %v1250
    %1904 = vmatpush2.bf16.msra.mxu0 %v1249
    %1905 = vmatprep.subr.bf16.mxu0 %v1246
    %1906 = vmatpush2.bf16.msra.mxu0 %v1245
    %1907 = vmatprep.subr.bf16.mxu0 %v1242
    %1908 = vmatpush2.bf16.msra.mxu0 %v1241
    %1909 = vmatprep.subr.bf16.mxu0 %v1238
    %1910 = vmatpush2.bf16.msra.mxu0 %v1237
    %1911 = vmatprep.mubr.bf16.mxu0 %v412
    %1912 = vmatmul.mubr.bf16.gmra.mxu0 %v411
    %v1913 = vpop.f32.mrf.mxu0
    %v1914 = vadd.f32 %v430, %v1913
    %v1915 = vpop.f32.mrf.mxu0
    %v1916 = vadd.f32 %v434, %v1915
    %v1917 = vpop.f32.mrf.mxu0
    %v1918 = vpop.f32.mrf.mxu0
    %1919 = vdwg.mxu0
    %1920 = vmatprep.subr.bf16.mxu0 %v1298
    %1921 = vmatpush1.bf16.msra.mxu0 %v1297
    %1922 = vmatprep.subr.bf16.mxu0 %v1294
    %1923 = vmatpush1.bf16.msra.mxu0 %v1293
    %1924 = vmatprep.subr.bf16.mxu0 %v1290
    %1925 = vmatpush1.bf16.msra.mxu0 %v1289
    %1926 = vmatprep.subr.bf16.mxu0 %v1286
    %1927 = vmatpush1.bf16.msra.mxu0 %v1285
    %1928 = vmatprep.subr.bf16.mxu0 %v1282
    %1929 = vmatpush1.bf16.msra.mxu0 %v1281
    %1930 = vmatprep.subr.bf16.mxu0 %v1278
    %1931 = vmatpush1.bf16.msra.mxu0 %v1277
    %1932 = vmatprep.subr.bf16.mxu0 %v1274
    %1933 = vmatpush1.bf16.msra.mxu0 %v1273
    %1934 = vmatprep.subr.bf16.mxu0 %v1270
    %1935 = vmatpush1.bf16.msra.mxu0 %v1269
    %1936 = vmatprep.subr.bf16.mxu0 %v1330
    %1937 = vmatpush2.bf16.msra.mxu0 %v1329
    %1938 = vmatprep.subr.bf16.mxu0 %v1326
    %1939 = vmatpush2.bf16.msra.mxu0 %v1325
    %1940 = vmatprep.subr.bf16.mxu0 %v1322
    %1941 = vmatpush2.bf16.msra.mxu0 %v1321
    %1942 = vmatprep.subr.bf16.mxu0 %v1318
    %1943 = vmatpush2.bf16.msra.mxu0 %v1317
    %1944 = vmatprep.subr.bf16.mxu0 %v1314
    %1945 = vmatpush2.bf16.msra.mxu0 %v1313
    %1946 = vmatprep.subr.bf16.mxu0 %v1310
    %1947 = vmatpush2.bf16.msra.mxu0 %v1309
    %1948 = vmatprep.subr.bf16.mxu0 %v1306
    %1949 = vmatpush2.bf16.msra.mxu0 %v1305
    %1950 = vmatprep.subr.bf16.mxu0 %v1302
    %1951 = vmatpush2.bf16.msra.mxu0 %v1301
    %1952 = vmatprep.mubr.bf16.mxu0 %v414
    %1953 = vmatmul.mubr.bf16.gmra.mxu0 %v413
    %v1954 = vpop.f32.mrf.mxu0
    %v1955 = vadd.f32 %v1914, %v1954
    %v1956 = vpop.f32.mrf.mxu0
    %v1957 = vadd.f32 %v1916, %v1956
    %v1958 = vpop.f32.mrf.mxu0
    %v1959 = vpop.f32.mrf.mxu0
    %1960 = vdwg.mxu0
    %1961 = vmatprep.subr.bf16.mxu0 %v1362
    %1962 = vmatpush1.bf16.msra.mxu0 %v1361
    %1963 = vmatprep.subr.bf16.mxu0 %v1358
    %1964 = vmatpush1.bf16.msra.mxu0 %v1357
    %1965 = vmatprep.subr.bf16.mxu0 %v1354
    %1966 = vmatpush1.bf16.msra.mxu0 %v1353
    %1967 = vmatprep.subr.bf16.mxu0 %v1350
    %1968 = vmatpush1.bf16.msra.mxu0 %v1349
    %1969 = vmatprep.subr.bf16.mxu0 %v1346
    %1970 = vmatpush1.bf16.msra.mxu0 %v1345
    %1971 = vmatprep.subr.bf16.mxu0 %v1342
    %1972 = vmatpush1.bf16.msra.mxu0 %v1341
    %1973 = vmatprep.subr.bf16.mxu0 %v1338
    %1974 = vmatpush1.bf16.msra.mxu0 %v1337
    %1975 = vmatprep.subr.bf16.mxu0 %v1334
    %1976 = vmatpush1.bf16.msra.mxu0 %v1333
    %1977 = vmatprep.subr.bf16.mxu0 %v1394
    %1978 = vmatpush2.bf16.msra.mxu0 %v1393
    %1979 = vmatprep.subr.bf16.mxu0 %v1390
    %1980 = vmatpush2.bf16.msra.mxu0 %v1389
    %1981 = vmatprep.subr.bf16.mxu0 %v1386
    %1982 = vmatpush2.bf16.msra.mxu0 %v1385
    %1983 = vmatprep.subr.bf16.mxu0 %v1382
    %1984 = vmatpush2.bf16.msra.mxu0 %v1381
    %1985 = vmatprep.subr.bf16.mxu0 %v1378
    %1986 = vmatpush2.bf16.msra.mxu0 %v1377
    %1987 = vmatprep.subr.bf16.mxu0 %v1374
    %1988 = vmatpush2.bf16.msra.mxu0 %v1373
    %1989 = vmatprep.subr.bf16.mxu0 %v1370
    %1990 = vmatpush2.bf16.msra.mxu0 %v1369
    %1991 = vmatprep.subr.bf16.mxu0 %v1366
    %1992 = vmatpush2.bf16.msra.mxu0 %v1365
    %1993 = vmatprep.mubr.bf16.mxu0 %v416
    %1994 = vmatmul.mubr.bf16.gmra.mxu0 %v415
    %v1995 = vpop.f32.mrf.mxu0
    %v1996 = vadd.f32 %v1955, %v1995
    %v1997 = vpop.f32.mrf.mxu0
    %v1998 = vadd.f32 %v1957, %v1997
    %v1999 = vpop.f32.mrf.mxu0
    %v2000 = vpop.f32.mrf.mxu0
    %2001 = vdwg.mxu0
    %2002 = vmatprep.subr.bf16.mxu0 %v1426
    %2003 = vmatpush1.bf16.msra.mxu0 %v1425
    %2004 = vmatprep.subr.bf16.mxu0 %v1422
    %2005 = vmatpush1.bf16.msra.mxu0 %v1421
    %2006 = vmatprep.subr.bf16.mxu0 %v1418
    %2007 = vmatpush1.bf16.msra.mxu0 %v1417
    %2008 = vmatprep.subr.bf16.mxu0 %v1414
    %2009 = vmatpush1.bf16.msra.mxu0 %v1413
    %2010 = vmatprep.subr.bf16.mxu0 %v1410
    %2011 = vmatpush1.bf16.msra.mxu0 %v1409
    %2012 = vmatprep.subr.bf16.mxu0 %v1406
    %2013 = vmatpush1.bf16.msra.mxu0 %v1405
    %2014 = vmatprep.subr.bf16.mxu0 %v1402
    %2015 = vmatpush1.bf16.msra.mxu0 %v1401
    %2016 = vmatprep.subr.bf16.mxu0 %v1398
    %2017 = vmatpush1.bf16.msra.mxu0 %v1397
    %2018 = vmatprep.subr.bf16.mxu0 %v1458
    %2019 = vmatpush2.bf16.msra.mxu0 %v1457
    %2020 = vmatprep.subr.bf16.mxu0 %v1454
    %2021 = vmatpush2.bf16.msra.mxu0 %v1453
    %2022 = vmatprep.subr.bf16.mxu0 %v1450
    %2023 = vmatpush2.bf16.msra.mxu0 %v1449
    %2024 = vmatprep.subr.bf16.mxu0 %v1446
    %2025 = vmatpush2.bf16.msra.mxu0 %v1445
    %2026 = vmatprep.subr.bf16.mxu0 %v1442
    %2027 = vmatpush2.bf16.msra.mxu0 %v1441
    %2028 = vmatprep.subr.bf16.mxu0 %v1438
    %2029 = vmatpush2.bf16.msra.mxu0 %v1437
    %2030 = vmatprep.subr.bf16.mxu0 %v1434
    %2031 = vmatpush2.bf16.msra.mxu0 %v1433
    %2032 = vmatprep.subr.bf16.mxu0 %v1430
    %2033 = vmatpush2.bf16.msra.mxu0 %v1429
    %2034 = vmatprep.mubr.bf16.mxu0 %v418
    %2035 = vmatmul.mubr.bf16.gmra.mxu0 %v417
    %v2036 = vpop.f32.mrf.mxu0
    %v2037 = vadd.f32 %v1996, %v2036
    %v2038 = vpop.f32.mrf.mxu0
    %v2039 = vadd.f32 %v1998, %v2038
    %v2040 = vpop.f32.mrf.mxu0
    %v2041 = vpop.f32.mrf.mxu0
    %2042 = vdwg.mxu0
    %v2043 = vmax.f32 %v1873, 0.0
    %v2044 = vmax.f32 %v1875, 0.0
    %v2045 = vmax.f32 %v2037, 0.0
    %v2046 = vmax.f32 %v2039, 0.0
    %v2047 = vld [vmem:[#allocation6] sm:$0xff]
    %v2048 = vld [vmem:[#allocation6 + $0x8] sm:$0xff]
    %v2049 = vld [vmem:[#allocation6 + $0x10] sm:$0xff]
    %v2050 = vld [vmem:[#allocation6 + $0x18] sm:$0xff]
    %v2051 = vld [vmem:[#allocation6 + $0x20] sm:$0xff]
    %v2052 = vld [vmem:[#allocation6 + $0x28] sm:$0xff]
    %v2053 = vld [vmem:[#allocation6 + $0x30] sm:$0xff]
    %v2054 = vld [vmem:[#allocation6 + $0x38] sm:$0xff]
    %v2055 = vld [vmem:[#allocation6 + $0x40] sm:$0xff]
    %v2056 = vld [vmem:[#allocation6 + $0x48] sm:$0xff]
    %v2057 = vld [vmem:[#allocation6 + $0x50] sm:$0xff]
    %v2058 = vld [vmem:[#allocation6 + $0x58] sm:$0xff]
    %v2059 = vld [vmem:[#allocation6 + $0x60] sm:$0xff]
    %v2060 = vld [vmem:[#allocation6 + $0x68] sm:$0xff]
    %v2061 = vld [vmem:[#allocation6 + $0x70] sm:$0xff]
    %v2062 = vld [vmem:[#allocation6 + $0x78] sm:$0xff]
    %v2063 = vld [vmem:[#allocation6 + $0x80] sm:$0xff]
    %v2064 = vld [vmem:[#allocation6 + $0x88] sm:$0xff]
    %v2065 = vld [vmem:[#allocation6 + $0x90] sm:$0xff]
    %v2066 = vld [vmem:[#allocation6 + $0x98] sm:$0xff]
    %v2067 = vld [vmem:[#allocation6 + $0xa0] sm:$0xff]
    %v2068 = vld [vmem:[#allocation6 + $0xa8] sm:$0xff]
    %v2069 = vld [vmem:[#allocation6 + $0xb0] sm:$0xff]
    %v2070 = vld [vmem:[#allocation6 + $0xb8] sm:$0xff]
    %v2071 = vld [vmem:[#allocation6 + $0xc0] sm:$0xff]
    %v2072 = vld [vmem:[#allocation6 + $0xc8] sm:$0xff]
    %v2073 = vld [vmem:[#allocation6 + $0xd0] sm:$0xff]
    %v2074 = vld [vmem:[#allocation6 + $0xd8] sm:$0xff]
    %v2075 = vld [vmem:[#allocation6 + $0xe0] sm:$0xff]
    %v2076 = vld [vmem:[#allocation6 + $0xe8] sm:$0xff]
    %v2077 = vld [vmem:[#allocation6 + $0xf0] sm:$0xff]
    %v2078 = vld [vmem:[#allocation6 + $0xf8] sm:$0xff]
    %v2079 = vld [vmem:[#allocation6 + $0x100] sm:$0xff]
    %v2080 = vld [vmem:[#allocation6 + $0x108] sm:$0xff]
    %v2081 = vld [vmem:[#allocation6 + $0x110] sm:$0xff]
    %v2082 = vld [vmem:[#allocation6 + $0x118] sm:$0xff]
    %v2083 = vld [vmem:[#allocation6 + $0x120] sm:$0xff]
    %v2084 = vld [vmem:[#allocation6 + $0x128] sm:$0xff]
    %v2085 = vld [vmem:[#allocation6 + $0x130] sm:$0xff]
    %v2086 = vld [vmem:[#allocation6 + $0x138] sm:$0xff]
    %v2087 = vld [vmem:[#allocation6 + $0x140] sm:$0xff]
    %v2088 = vld [vmem:[#allocation6 + $0x148] sm:$0xff]
    %v2089 = vld [vmem:[#allocation6 + $0x150] sm:$0xff]
    %v2090 = vld [vmem:[#allocation6 + $0x158] sm:$0xff]
    %v2091 = vld [vmem:[#allocation6 + $0x160] sm:$0xff]
    %v2092 = vld [vmem:[#allocation6 + $0x168] sm:$0xff]
    %v2093 = vld [vmem:[#allocation6 + $0x170] sm:$0xff]
    %v2094 = vld [vmem:[#allocation6 + $0x178] sm:$0xff]
    %v2095 = vld [vmem:[#allocation6 + $0x180] sm:$0xff]
    %v2096 = vld [vmem:[#allocation6 + $0x188] sm:$0xff]
    %v2097 = vld [vmem:[#allocation6 + $0x190] sm:$0xff]
    %v2098 = vld [vmem:[#allocation6 + $0x198] sm:$0xff]
    %v2099 = vld [vmem:[#allocation6 + $0x1a0] sm:$0xff]
    %v2100 = vld [vmem:[#allocation6 + $0x1a8] sm:$0xff]
    %v2101 = vld [vmem:[#allocation6 + $0x1b0] sm:$0xff]
    %v2102 = vld [vmem:[#allocation6 + $0x1b8] sm:$0xff]
    %v2103 = vld [vmem:[#allocation6 + $0x1c0] sm:$0xff]
    %v2104 = vld [vmem:[#allocation6 + $0x1c8] sm:$0xff]
    %v2105 = vld [vmem:[#allocation6 + $0x1d0] sm:$0xff]
    %v2106 = vld [vmem:[#allocation6 + $0x1d8] sm:$0xff]
    %v2107 = vld [vmem:[#allocation6 + $0x1e0] sm:$0xff]
    %v2108 = vld [vmem:[#allocation6 + $0x1e8] sm:$0xff]
    %v2109 = vld [vmem:[#allocation6 + $0x1f0] sm:$0xff]
    %v2110 = vld [vmem:[#allocation6 + $0x1f8] sm:$0xff]
    %v2111 = vpack.c.bf16 %v2043, %v2043
    %v2112 = vpack.c.bf16 %v2044, %v2044
    %v2113 = vpack.c.bf16 %v2045, %v2045
    %v2114 = vpack.c.bf16 %v2046, %v2046
    %v2115 = vlaneseq
    %v2116 = vshrl.u32 %v2115, 7
    %v2117 = vsub.s32 1, %v2116
    %v2118 = vrot.slane %v105, %v2117
    %v2119 = vlaneseq
    %v2120 = vshrl.u32 %v2119, 7
    %v2121 = vsub.s32 1, %v2120
    %v2122 = vrot.slane %v106, %v2121
    %v2187 = vunpack.c.l.b16 %v2047
    %v2188 = vunpack.c.h.b16 %v2047
    %v2189 = vunpack.c.l.b16 %v2048
    %v2190 = vunpack.c.h.b16 %v2048
    %v2191 = vunpack.c.l.b16 %v2049
    %v2192 = vunpack.c.h.b16 %v2049
    %v2193 = vunpack.c.l.b16 %v2050
    %v2194 = vunpack.c.h.b16 %v2050
    %v2195 = vunpack.c.l.b16 %v2051
    %v2196 = vunpack.c.h.b16 %v2051
    %v2197 = vunpack.c.l.b16 %v2052
    %v2198 = vunpack.c.h.b16 %v2052
    %v2199 = vunpack.c.l.b16 %v2053
    %v2200 = vunpack.c.h.b16 %v2053
    %v2201 = vunpack.c.l.b16 %v2054
    %v2202 = vunpack.c.h.b16 %v2054
    %v2203 = vunpack.c.l.b16 %v2055
    %v2204 = vunpack.c.h.b16 %v2055
    %v2205 = vunpack.c.l.b16 %v2056
    %v2206 = vunpack.c.h.b16 %v2056
    %v2207 = vunpack.c.l.b16 %v2057
    %v2208 = vunpack.c.h.b16 %v2057
    %v2209 = vunpack.c.l.b16 %v2058
    %v2210 = vunpack.c.h.b16 %v2058
    %v2211 = vunpack.c.l.b16 %v2059
    %v2212 = vunpack.c.h.b16 %v2059
    %v2213 = vunpack.c.l.b16 %v2060
    %v2214 = vunpack.c.h.b16 %v2060
    %v2215 = vunpack.c.l.b16 %v2061
    %v2216 = vunpack.c.h.b16 %v2061
    %v2217 = vunpack.c.l.b16 %v2062
    %v2218 = vunpack.c.h.b16 %v2062
    %v2219 = vunpack.c.l.b16 %v2063
    %v2220 = vunpack.c.h.b16 %v2063
    %v2221 = vunpack.c.l.b16 %v2064
    %v2222 = vunpack.c.h.b16 %v2064
    %v2223 = vunpack.c.l.b16 %v2065
    %v2224 = vunpack.c.h.b16 %v2065
    %v2225 = vunpack.c.l.b16 %v2066
    %v2226 = vunpack.c.h.b16 %v2066
    %v2227 = vunpack.c.l.b16 %v2067
    %v2228 = vunpack.c.h.b16 %v2067
    %v2229 = vunpack.c.l.b16 %v2068
    %v2230 = vunpack.c.h.b16 %v2068
    %v2231 = vunpack.c.l.b16 %v2069
    %v2232 = vunpack.c.h.b16 %v2069
    %v2233 = vunpack.c.l.b16 %v2070
    %v2234 = vunpack.c.h.b16 %v2070
    %v2235 = vunpack.c.l.b16 %v2071
    %v2236 = vunpack.c.h.b16 %v2071
    %v2237 = vunpack.c.l.b16 %v2072
    %v2238 = vunpack.c.h.b16 %v2072
    %v2239 = vunpack.c.l.b16 %v2073
    %v2240 = vunpack.c.h.b16 %v2073
    %v2241 = vunpack.c.l.b16 %v2074
    %v2242 = vunpack.c.h.b16 %v2074
    %v2243 = vunpack.c.l.b16 %v2075
    %v2244 = vunpack.c.h.b16 %v2075
    %v2245 = vunpack.c.l.b16 %v2076
    %v2246 = vunpack.c.h.b16 %v2076
    %v2247 = vunpack.c.l.b16 %v2077
    %v2248 = vunpack.c.h.b16 %v2077
    %v2249 = vunpack.c.l.b16 %v2078
    %v2250 = vunpack.c.h.b16 %v2078
    %v2251 = vunpack.c.l.b16 %v2079
    %v2252 = vunpack.c.h.b16 %v2079
    %v2253 = vunpack.c.l.b16 %v2080
    %v2254 = vunpack.c.h.b16 %v2080
    %v2255 = vunpack.c.l.b16 %v2081
    %v2256 = vunpack.c.h.b16 %v2081
    %v2257 = vunpack.c.l.b16 %v2082
    %v2258 = vunpack.c.h.b16 %v2082
    %v2259 = vunpack.c.l.b16 %v2083
    %v2260 = vunpack.c.h.b16 %v2083
    %v2261 = vunpack.c.l.b16 %v2084
    %v2262 = vunpack.c.h.b16 %v2084
    %v2263 = vunpack.c.l.b16 %v2085
    %v2264 = vunpack.c.h.b16 %v2085
    %v2265 = vunpack.c.l.b16 %v2086
    %v2266 = vunpack.c.h.b16 %v2086
    %v2267 = vunpack.c.l.b16 %v2087
    %v2268 = vunpack.c.h.b16 %v2087
    %v2269 = vunpack.c.l.b16 %v2088
    %v2270 = vunpack.c.h.b16 %v2088
    %v2271 = vunpack.c.l.b16 %v2089
    %v2272 = vunpack.c.h.b16 %v2089
    %v2273 = vunpack.c.l.b16 %v2090
    %v2274 = vunpack.c.h.b16 %v2090
    %v2275 = vunpack.c.l.b16 %v2091
    %v2276 = vunpack.c.h.b16 %v2091
    %v2277 = vunpack.c.l.b16 %v2092
    %v2278 = vunpack.c.h.b16 %v2092
    %v2279 = vunpack.c.l.b16 %v2093
    %v2280 = vunpack.c.h.b16 %v2093
    %v2281 = vunpack.c.l.b16 %v2094
    %v2282 = vunpack.c.h.b16 %v2094
    %v2283 = vunpack.c.l.b16 %v2095
    %v2284 = vunpack.c.h.b16 %v2095
    %v2285 = vunpack.c.l.b16 %v2096
    %v2286 = vunpack.c.h.b16 %v2096
    %v2287 = vunpack.c.l.b16 %v2097
    %v2288 = vunpack.c.h.b16 %v2097
    %v2289 = vunpack.c.l.b16 %v2098
    %v2290 = vunpack.c.h.b16 %v2098
    %v2291 = vunpack.c.l.b16 %v2099
    %v2292 = vunpack.c.h.b16 %v2099
    %v2293 = vunpack.c.l.b16 %v2100
    %v2294 = vunpack.c.h.b16 %v2100
    %v2295 = vunpack.c.l.b16 %v2101
    %v2296 = vunpack.c.h.b16 %v2101
    %v2297 = vunpack.c.l.b16 %v2102
    %v2298 = vunpack.c.h.b16 %v2102
    %v2299 = vunpack.c.l.b16 %v2103
    %v2300 = vunpack.c.h.b16 %v2103
    %v2301 = vunpack.c.l.b16 %v2104
    %v2302 = vunpack.c.h.b16 %v2104
    %v2303 = vunpack.c.l.b16 %v2105
    %v2304 = vunpack.c.h.b16 %v2105
    %v2305 = vunpack.c.l.b16 %v2106
    %v2306 = vunpack.c.h.b16 %v2106
    %v2307 = vunpack.c.l.b16 %v2107
    %v2308 = vunpack.c.h.b16 %v2107
    %v2309 = vunpack.c.l.b16 %v2108
    %v2310 = vunpack.c.h.b16 %v2108
    %v2311 = vunpack.c.l.b16 %v2109
    %v2312 = vunpack.c.h.b16 %v2109
    %v2313 = vunpack.c.l.b16 %v2110
    %v2314 = vunpack.c.h.b16 %v2110
    %v2315 = vpack.c.b16 %v2189, %v2187
    %v2316 = vpack.c.b16 %v2190, %v2188
    %v2317 = vpack.c.b16 %v2193, %v2191
    %v2318 = vpack.c.b16 %v2194, %v2192
    %v2319 = vpack.c.b16 %v2197, %v2195
    %v2320 = vpack.c.b16 %v2198, %v2196
    %v2321 = vpack.c.b16 %v2201, %v2199
    %v2322 = vpack.c.b16 %v2202, %v2200
    %v2323 = vpack.c.b16 %v2205, %v2203
    %v2324 = vpack.c.b16 %v2206, %v2204
    %v2325 = vpack.c.b16 %v2209, %v2207
    %v2326 = vpack.c.b16 %v2210, %v2208
    %v2327 = vpack.c.b16 %v2213, %v2211
    %v2328 = vpack.c.b16 %v2214, %v2212
    %v2329 = vpack.c.b16 %v2217, %v2215
    %v2330 = vpack.c.b16 %v2218, %v2216
    %v2331 = vpack.c.b16 %v2221, %v2219
    %v2332 = vpack.c.b16 %v2222, %v2220
    %v2333 = vpack.c.b16 %v2225, %v2223
    %v2334 = vpack.c.b16 %v2226, %v2224
    %v2335 = vpack.c.b16 %v2229, %v2227
    %v2336 = vpack.c.b16 %v2230, %v2228
    %v2337 = vpack.c.b16 %v2233, %v2231
    %v2338 = vpack.c.b16 %v2234, %v2232
    %v2339 = vpack.c.b16 %v2237, %v2235
    %v2340 = vpack.c.b16 %v2238, %v2236
    %v2341 = vpack.c.b16 %v2241, %v2239
    %v2342 = vpack.c.b16 %v2242, %v2240
    %v2343 = vpack.c.b16 %v2245, %v2243
    %v2344 = vpack.c.b16 %v2246, %v2244
    %v2345 = vpack.c.b16 %v2249, %v2247
    %v2346 = vpack.c.b16 %v2250, %v2248
    %v2347 = vpack.c.b16 %v2253, %v2251
    %v2348 = vpack.c.b16 %v2254, %v2252
    %v2349 = vpack.c.b16 %v2257, %v2255
    %v2350 = vpack.c.b16 %v2258, %v2256
    %v2351 = vpack.c.b16 %v2261, %v2259
    %v2352 = vpack.c.b16 %v2262, %v2260
    %v2353 = vpack.c.b16 %v2265, %v2263
    %v2354 = vpack.c.b16 %v2266, %v2264
    %v2355 = vpack.c.b16 %v2269, %v2267
    %v2356 = vpack.c.b16 %v2270, %v2268
    %v2357 = vpack.c.b16 %v2273, %v2271
    %v2358 = vpack.c.b16 %v2274, %v2272
    %v2359 = vpack.c.b16 %v2277, %v2275
    %v2360 = vpack.c.b16 %v2278, %v2276
    %v2361 = vpack.c.b16 %v2281, %v2279
    %v2362 = vpack.c.b16 %v2282, %v2280
    %v2363 = vpack.c.b16 %v2285, %v2283
    %v2364 = vpack.c.b16 %v2286, %v2284
    %v2365 = vpack.c.b16 %v2289, %v2287
    %v2366 = vpack.c.b16 %v2290, %v2288
    %v2367 = vpack.c.b16 %v2293, %v2291
    %v2368 = vpack.c.b16 %v2294, %v2292
    %v2369 = vpack.c.b16 %v2297, %v2295
    %v2370 = vpack.c.b16 %v2298, %v2296
    %v2371 = vpack.c.b16 %v2301, %v2299
    %v2372 = vpack.c.b16 %v2302, %v2300
    %v2373 = vpack.c.b16 %v2305, %v2303
    %v2374 = vpack.c.b16 %v2306, %v2304
    %v2375 = vpack.c.b16 %v2309, %v2307
    %v2376 = vpack.c.b16 %v2310, %v2308
    %v2377 = vpack.c.b16 %v2313, %v2311
    %v2378 = vpack.c.b16 %v2314, %v2312
    %2443 = vmatprep.subr.bf16.mxu0 %v2330
    %2444 = vmatpush1.bf16.msra.mxu0 %v2329
    %2445 = vmatprep.subr.bf16.mxu0 %v2328
    %2446 = vmatpush1.bf16.msra.mxu0 %v2327
    %2447 = vmatprep.subr.bf16.mxu0 %v2326
    %2448 = vmatpush1.bf16.msra.mxu0 %v2325
    %2449 = vmatprep.subr.bf16.mxu0 %v2324
    %2450 = vmatpush1.bf16.msra.mxu0 %v2323
    %2451 = vmatprep.subr.bf16.mxu0 %v2322
    %2452 = vmatpush1.bf16.msra.mxu0 %v2321
    %2453 = vmatprep.subr.bf16.mxu0 %v2320
    %2454 = vmatpush1.bf16.msra.mxu0 %v2319
    %2455 = vmatprep.subr.bf16.mxu0 %v2318
    %2456 = vmatpush1.bf16.msra.mxu0 %v2317
    %2457 = vmatprep.subr.bf16.mxu0 %v2316
    %2458 = vmatpush1.bf16.msra.mxu0 %v2315
    %2459 = vmatprep.subr.bf16.mxu0 %v2346
    %2460 = vmatpush2.bf16.msra.mxu0 %v2345
    %2461 = vmatprep.subr.bf16.mxu0 %v2344
    %2462 = vmatpush2.bf16.msra.mxu0 %v2343
    %2463 = vmatprep.subr.bf16.mxu0 %v2342
    %2464 = vmatpush2.bf16.msra.mxu0 %v2341
    %2465 = vmatprep.subr.bf16.mxu0 %v2340
    %2466 = vmatpush2.bf16.msra.mxu0 %v2339
    %2467 = vmatprep.subr.bf16.mxu0 %v2338
    %2468 = vmatpush2.bf16.msra.mxu0 %v2337
    %2469 = vmatprep.subr.bf16.mxu0 %v2336
    %2470 = vmatpush2.bf16.msra.mxu0 %v2335
    %2471 = vmatprep.subr.bf16.mxu0 %v2334
    %2472 = vmatpush2.bf16.msra.mxu0 %v2333
    %2473 = vmatprep.subr.bf16.mxu0 %v2332
    %2474 = vmatpush2.bf16.msra.mxu0 %v2331
    %2475 = vmatprep.mubr.bf16.mxu0 %v2112
    %2476 = vmatmul.mubr.bf16.gmra.mxu0 %v2111
    %v2477 = vpop.f32.mrf.mxu0
    %v2478 = vadd.f32 %v2118, %v2477
    %v2479 = vpop.f32.mrf.mxu0
    %v2480 = vadd.f32 %v2122, %v2479
    %v2481 = vpop.f32.mrf.mxu0
    %v2482 = vpop.f32.mrf.mxu0
    %2483 = vdwg.mxu0
    %2484 = vmatprep.subr.bf16.mxu0 %v2362
    %2485 = vmatpush1.bf16.msra.mxu0 %v2361
    %2486 = vmatprep.subr.bf16.mxu0 %v2360
    %2487 = vmatpush1.bf16.msra.mxu0 %v2359
    %2488 = vmatprep.subr.bf16.mxu0 %v2358
    %2489 = vmatpush1.bf16.msra.mxu0 %v2357
    %2490 = vmatprep.subr.bf16.mxu0 %v2356
    %2491 = vmatpush1.bf16.msra.mxu0 %v2355
    %2492 = vmatprep.subr.bf16.mxu0 %v2354
    %2493 = vmatpush1.bf16.msra.mxu0 %v2353
    %2494 = vmatprep.subr.bf16.mxu0 %v2352
    %2495 = vmatpush1.bf16.msra.mxu0 %v2351
    %2496 = vmatprep.subr.bf16.mxu0 %v2350
    %2497 = vmatpush1.bf16.msra.mxu0 %v2349
    %2498 = vmatprep.subr.bf16.mxu0 %v2348
    %2499 = vmatpush1.bf16.msra.mxu0 %v2347
    %2500 = vmatprep.subr.bf16.mxu0 %v2378
    %2501 = vmatpush2.bf16.msra.mxu0 %v2377
    %2502 = vmatprep.subr.bf16.mxu0 %v2376
    %2503 = vmatpush2.bf16.msra.mxu0 %v2375
    %2504 = vmatprep.subr.bf16.mxu0 %v2374
    %2505 = vmatpush2.bf16.msra.mxu0 %v2373
    %2506 = vmatprep.subr.bf16.mxu0 %v2372
    %2507 = vmatpush2.bf16.msra.mxu0 %v2371
    %2508 = vmatprep.subr.bf16.mxu0 %v2370
    %2509 = vmatpush2.bf16.msra.mxu0 %v2369
    %2510 = vmatprep.subr.bf16.mxu0 %v2368
    %2511 = vmatpush2.bf16.msra.mxu0 %v2367
    %2512 = vmatprep.subr.bf16.mxu0 %v2366
    %2513 = vmatpush2.bf16.msra.mxu0 %v2365
    %2514 = vmatprep.subr.bf16.mxu0 %v2364
    %2515 = vmatpush2.bf16.msra.mxu0 %v2363
    %2516 = vmatprep.mubr.bf16.mxu0 %v2114
    %2517 = vmatmul.mubr.bf16.gmra.mxu0 %v2113
    %v2518 = vpop.f32.mrf.mxu0
    %v2519 = vadd.f32 %v2478, %v2518
    %v2520 = vpop.f32.mrf.mxu0
    %v2521 = vadd.f32 %v2480, %v2520
    %v2522 = vpop.f32.mrf.mxu0
    %v2523 = vpop.f32.mrf.mxu0
    %2524 = vdwg.mxu0
    %v2525 = vmax.f32 %v2519, 0.0
    %v2526 = vmax.f32 %v2521, 0.0
    %v2527 = vld [vmem:[#allocation7] sm:$0xf]
    %v2528 = vld [vmem:[#allocation7 + $0x4] sm:$0xf]
    %v2529 = vld [vmem:[#allocation7 + $0x8] sm:$0xf]
    %v2530 = vld [vmem:[#allocation7 + $0xc] sm:$0xf]
    %v2531 = vld [vmem:[#allocation7 + $0x10] sm:$0xf]
    %v2532 = vld [vmem:[#allocation7 + $0x14] sm:$0xf]
    %v2533 = vld [vmem:[#allocation7 + $0x18] sm:$0xf]
    %v2534 = vld [vmem:[#allocation7 + $0x1c] sm:$0xf]
    %v2535 = vld [vmem:[#allocation7 + $0x20] sm:$0xf]
    %v2536 = vld [vmem:[#allocation7 + $0x24] sm:$0xf]
    %v2537 = vld [vmem:[#allocation7 + $0x28] sm:$0xf]
    %v2538 = vld [vmem:[#allocation7 + $0x2c] sm:$0xf]
    %v2539 = vld [vmem:[#allocation7 + $0x30] sm:$0xf]
    %v2540 = vld [vmem:[#allocation7 + $0x34] sm:$0xf]
    %v2541 = vld [vmem:[#allocation7 + $0x38] sm:$0xf]
    %v2542 = vld [vmem:[#allocation7 + $0x3c] sm:$0xf]
    %v2543 = vld [vmem:[#allocation7 + $0x40] sm:$0xf]
    %v2544 = vld [vmem:[#allocation7 + $0x44] sm:$0xf]
    %v2545 = vld [vmem:[#allocation7 + $0x48] sm:$0xf]
    %v2546 = vld [vmem:[#allocation7 + $0x4c] sm:$0xf]
    %v2547 = vld [vmem:[#allocation7 + $0x50] sm:$0xf]
    %v2548 = vld [vmem:[#allocation7 + $0x54] sm:$0xf]
    %v2549 = vld [vmem:[#allocation7 + $0x58] sm:$0xf]
    %v2550 = vld [vmem:[#allocation7 + $0x5c] sm:$0xf]
    %v2551 = vld [vmem:[#allocation7 + $0x60] sm:$0xf]
    %v2552 = vld [vmem:[#allocation7 + $0x64] sm:$0xf]
    %v2553 = vld [vmem:[#allocation7 + $0x68] sm:$0xf]
    %v2554 = vld [vmem:[#allocation7 + $0x6c] sm:$0xf]
    %v2555 = vld [vmem:[#allocation7 + $0x70] sm:$0xf]
    %v2556 = vld [vmem:[#allocation7 + $0x74] sm:$0xf]
    %v2557 = vld [vmem:[#allocation7 + $0x78] sm:$0xf]
    %v2558 = vld [vmem:[#allocation7 + $0x7c] sm:$0xf]
    %v2559 = vpack.c.bf16 %v2525, %v2525
    %v2560 = vpack.c.bf16 %v2526, %v2526
    %v2561 = vlaneseq
    %v2562 = vshrl.u32 %v2561, 7
    %v2563 = vsub.s32 2, %v2562
    %v2564 = vrot.slane %v105, %v2563
    %v2597 = vunpack.c.l.b16 %v2527
    %v2598 = vunpack.c.l.b16 %v2528
    %v2599 = vunpack.c.l.b16 %v2529
    %v2600 = vunpack.c.l.b16 %v2530
    %v2601 = vunpack.c.l.b16 %v2531
    %v2602 = vunpack.c.l.b16 %v2532
    %v2603 = vunpack.c.l.b16 %v2533
    %v2604 = vunpack.c.l.b16 %v2534
    %v2605 = vunpack.c.l.b16 %v2535
    %v2606 = vunpack.c.l.b16 %v2536
    %v2607 = vunpack.c.l.b16 %v2537
    %v2608 = vunpack.c.l.b16 %v2538
    %v2609 = vunpack.c.l.b16 %v2539
    %v2610 = vunpack.c.l.b16 %v2540
    %v2611 = vunpack.c.l.b16 %v2541
    %v2612 = vunpack.c.l.b16 %v2542
    %v2613 = vunpack.c.l.b16 %v2543
    %v2614 = vunpack.c.l.b16 %v2544
    %v2615 = vunpack.c.l.b16 %v2545
    %v2616 = vunpack.c.l.b16 %v2546
    %v2617 = vunpack.c.l.b16 %v2547
    %v2618 = vunpack.c.l.b16 %v2548
    %v2619 = vunpack.c.l.b16 %v2549
    %v2620 = vunpack.c.l.b16 %v2550
    %v2621 = vunpack.c.l.b16 %v2551
    %v2622 = vunpack.c.l.b16 %v2552
    %v2623 = vunpack.c.l.b16 %v2553
    %v2624 = vunpack.c.l.b16 %v2554
    %v2625 = vunpack.c.l.b16 %v2555
    %v2626 = vunpack.c.l.b16 %v2556
    %v2627 = vunpack.c.l.b16 %v2557
    %v2628 = vunpack.c.l.b16 %v2558
    %v2629 = vpack.c.b16 %v2598, %v2597
    %v2630 = vpack.c.b16 %v2600, %v2599
    %v2631 = vpack.c.b16 %v2602, %v2601
    %v2632 = vpack.c.b16 %v2604, %v2603
    %v2633 = vpack.c.b16 %v2606, %v2605
    %v2634 = vpack.c.b16 %v2608, %v2607
    %v2635 = vpack.c.b16 %v2610, %v2609
    %v2636 = vpack.c.b16 %v2612, %v2611
    %v2637 = vpack.c.b16 %v2614, %v2613
    %v2638 = vpack.c.b16 %v2616, %v2615
    %v2639 = vpack.c.b16 %v2618, %v2617
    %v2640 = vpack.c.b16 %v2620, %v2619
    %v2641 = vpack.c.b16 %v2622, %v2621
    %v2642 = vpack.c.b16 %v2624, %v2623
    %v2643 = vpack.c.b16 %v2626, %v2625
    %v2644 = vpack.c.b16 %v2628, %v2627
    %2661 = vmatprep.subr.bf16.mxu0 0
    %2662 = vmatpush1.bf16.msra.mxu0 %v2636
    %2663 = vmatprep.subr.bf16.mxu0 0
    %2664 = vmatpush1.bf16.msra.mxu0 %v2635
    %2665 = vmatprep.subr.bf16.mxu0 0
    %2666 = vmatpush1.bf16.msra.mxu0 %v2634
    %2667 = vmatprep.subr.bf16.mxu0 0
    %2668 = vmatpush1.bf16.msra.mxu0 %v2633
    %2669 = vmatprep.subr.bf16.mxu0 0
    %2670 = vmatpush1.bf16.msra.mxu0 %v2632
    %2671 = vmatprep.subr.bf16.mxu0 0
    %2672 = vmatpush1.bf16.msra.mxu0 %v2631
    %2673 = vmatprep.subr.bf16.mxu0 0
    %2674 = vmatpush1.bf16.msra.mxu0 %v2630
    %2675 = vmatprep.subr.bf16.mxu0 0
    %2676 = vmatpush1.bf16.msra.mxu0 %v2629
    %2677 = vmatprep.subr.bf16.mxu0 0
    %2678 = vmatpush2.bf16.msra.mxu0 %v2644
    %2679 = vmatprep.subr.bf16.mxu0 0
    %2680 = vmatpush2.bf16.msra.mxu0 %v2643
    %2681 = vmatprep.subr.bf16.mxu0 0
    %2682 = vmatpush2.bf16.msra.mxu0 %v2642
    %2683 = vmatprep.subr.bf16.mxu0 0
    %2684 = vmatpush2.bf16.msra.mxu0 %v2641
    %2685 = vmatprep.subr.bf16.mxu0 0
    %2686 = vmatpush2.bf16.msra.mxu0 %v2640
    %2687 = vmatprep.subr.bf16.mxu0 0
    %2688 = vmatpush2.bf16.msra.mxu0 %v2639
    %2689 = vmatprep.subr.bf16.mxu0 0
    %2690 = vmatpush2.bf16.msra.mxu0 %v2638
    %2691 = vmatprep.subr.bf16.mxu0 0
    %2692 = vmatpush2.bf16.msra.mxu0 %v2637
    %2693 = vmatprep.mubr.bf16.mxu0 %v2560
    %2694 = vmatmul.mubr.bf16.gmra.mxu0 %v2559
    %v2695 = vpop.f32.mrf.mxu0
    %v2696 = vadd.f32 %v2564, %v2695
    %v2697 = vpop.f32.mrf.mxu0
    %v2698 = vpop.f32.mrf.mxu0
    %v2699 = vpop.f32.mrf.mxu0
    %2700 = vdwg.mxu0
    %v2701 = vmax.f32 %v2696, 0.0
    %v2702 = vld [vmem:[#allocation7 + $0x80] sm:$0xf]
    %v2703 = vld [vmem:[#allocation7 + $0x84] sm:$0xf]
    %v2704 = vld [vmem:[#allocation7 + $0x88] sm:$0xf]
    %v2705 = vld [vmem:[#allocation7 + $0x8c] sm:$0xf]
    %v2706 = vld [vmem:[#allocation7 + $0x90] sm:$0xf]
    %v2707 = vld [vmem:[#allocation7 + $0x94] sm:$0xf]
    %v2708 = vld [vmem:[#allocation7 + $0x98] sm:$0xf]
    %v2709 = vld [vmem:[#allocation7 + $0x9c] sm:$0xf]
    %v2710 = vld [vmem:[#allocation7 + $0xa0] sm:$0xf]
    %v2711 = vld [vmem:[#allocation7 + $0xa4] sm:$0xf]
    %v2712 = vld [vmem:[#allocation7 + $0xa8] sm:$0xf]
    %v2713 = vld [vmem:[#allocation7 + $0xac] sm:$0xf]
    %v2714 = vld [vmem:[#allocation7 + $0xb0] sm:$0xf]
    %v2715 = vld [vmem:[#allocation7 + $0xb4] sm:$0xf]
    %v2716 = vld [vmem:[#allocation7 + $0xb8] sm:$0xf]
    %v2717 = vld [vmem:[#allocation7 + $0xbc] sm:$0xf]
    %v2718 = vpack.c.bf16 %v2701, %v2701
    %v2735 = vunpack.c.l.b16 %v2702
    %v2736 = vunpack.c.l.b16 %v2703
    %v2737 = vunpack.c.l.b16 %v2704
    %v2738 = vunpack.c.l.b16 %v2705
    %v2739 = vunpack.c.l.b16 %v2706
    %v2740 = vunpack.c.l.b16 %v2707
    %v2741 = vunpack.c.l.b16 %v2708
    %v2742 = vunpack.c.l.b16 %v2709
    %v2743 = vunpack.c.l.b16 %v2710
    %v2744 = vunpack.c.l.b16 %v2711
    %v2745 = vunpack.c.l.b16 %v2712
    %v2746 = vunpack.c.l.b16 %v2713
    %v2747 = vunpack.c.l.b16 %v2714
    %v2748 = vunpack.c.l.b16 %v2715
    %v2749 = vunpack.c.l.b16 %v2716
    %v2750 = vunpack.c.l.b16 %v2717
    %v2751 = vpack.c.b16 %v2736, %v2735
    %v2752 = vpack.c.b16 %v2738, %v2737
    %v2753 = vpack.c.b16 %v2740, %v2739
    %v2754 = vpack.c.b16 %v2742, %v2741
    %v2755 = vpack.c.b16 %v2744, %v2743
    %v2756 = vpack.c.b16 %v2746, %v2745
    %v2757 = vpack.c.b16 %v2748, %v2747
    %v2758 = vpack.c.b16 %v2750, %v2749
    %2767 = vmatprep.subr.bf16.mxu0 0
    %2768 = vmatpush1.bf16.msra.mxu0 %v2758
    %2769 = vmatprep.subr.bf16.mxu0 0
    %2770 = vmatpush1.bf16.msra.mxu0 %v2757
    %2771 = vmatprep.subr.bf16.mxu0 0
    %2772 = vmatpush1.bf16.msra.mxu0 %v2756
    %2773 = vmatprep.subr.bf16.mxu0 0
    %2774 = vmatpush1.bf16.msra.mxu0 %v2755
    %2775 = vmatprep.subr.bf16.mxu0 0
    %2776 = vmatpush1.bf16.msra.mxu0 %v2754
    %2777 = vmatprep.subr.bf16.mxu0 0
    %2778 = vmatpush1.bf16.msra.mxu0 %v2753
    %2779 = vmatprep.subr.bf16.mxu0 0
    %2780 = vmatpush1.bf16.msra.mxu0 %v2752
    %2781 = vmatprep.subr.bf16.mxu0 0
    %2782 = vmatpush1.bf16.msra.mxu0 %v2751
    %2783 = vmatprep.subr.bf16.mxu0 0
    %2784 = vmatpush2.bf16.msra.mxu0 0
    %2785 = vmatprep.subr.bf16.mxu0 0
    %2786 = vmatpush2.bf16.msra.mxu0 0
    %2787 = vmatprep.subr.bf16.mxu0 0
    %2788 = vmatpush2.bf16.msra.mxu0 0
    %2789 = vmatprep.subr.bf16.mxu0 0
    %2790 = vmatpush2.bf16.msra.mxu0 0
    %2791 = vmatprep.subr.bf16.mxu0 0
    %2792 = vmatpush2.bf16.msra.mxu0 0
    %2793 = vmatprep.subr.bf16.mxu0 0
    %2794 = vmatpush2.bf16.msra.mxu0 0
    %2795 = vmatprep.subr.bf16.mxu0 0
    %2796 = vmatpush2.bf16.msra.mxu0 0
    %2797 = vmatprep.subr.bf16.mxu0 0
    %2798 = vmatpush2.bf16.msra.mxu0 0
    %2799 = vmatprep.mubr.bf16.mxu0 0
    %2800 = vmatmul.mubr.bf16.gmra.mxu0 %v2718
    %v2801 = vpop.f32.mrf.mxu0
    %v2802 = vadd.f32 0.0, %v2801
    %v2803 = vpop.f32.mrf.mxu0
    %v2804 = vpop.f32.mrf.mxu0
    %v2805 = vpop.f32.mrf.mxu0
    %2806 = vdwg.mxu0
    %v2807 = vlaneseq
    %v2808 = vshrl.u32 %v2807, 7
    %v2809 = vsub.s32 3, %v2808
    %v2810 = vrot.slane %v105, %v2809
    %v2811 = vadd.f32 %v2802, %v2810
    %v2812 = vld [vmem:[#allocation2] sm:$0x3]
    %v2813 = vmul.f32 %v2811, 0.5
    %v2814 = vmul.f32 %v2813, 1.442695
    %v2815 = vpow.pop %v2814
    %2817 = vrot.lane.b32.xlu0 %v2815, 120
    %v2818 = vpop.permute.xlu0 %2817
    %v2820 = vmul.f32 %v2812, %v2818
    %v2821 = vadd.f32 %v2820, %v2811
    %v2822 = vld [vmem:[#allocation9] sm:$0xff]
    %v2823 = vpack.c.bf16 %v2821, %v2821
    %v2824 = vpack.c.bf16 %v2822, %v2822
    %v2825 = vlaneseq
    %v2826 = vshrl.u32 %v2825, 7
    %v2827 = vsub.s32 4, %v2826
    %v2828 = vrot.slane %v105, %v2827
    %vm2829 = vcmask 64512
    %v2831 = vsel %vm2829, %v2823, 0
    %vm2833 = vcmask 1043456
    %v2835 = vsel %vm2833, %v2824, 0
    %2837 = vmatprep.subr.bf16.mxu0 0
    %2838 = vmatpush1.bf16.msra.mxu0 0
    %2839 = vmatprep.subr.bf16.mxu0 0
    %2840 = vmatpush1.bf16.msra.mxu0 0
    %2841 = vmatprep.subr.bf16.mxu0 0
    %2842 = vmatpush1.bf16.msra.mxu0 0
    %2843 = vmatprep.subr.bf16.mxu0 0
    %2844 = vmatpush1.bf16.msra.mxu0 0
    %2845 = vmatprep.subr.bf16.mxu0 0
    %2846 = vmatpush1.bf16.msra.mxu0 0
    %2847 = vmatprep.subr.bf16.mxu0 0
    %2848 = vmatpush1.bf16.msra.mxu0 0
    %2849 = vmatprep.subr.bf16.mxu0 0
    %2850 = vmatpush1.bf16.msra.mxu0 0
    %2851 = vmatprep.subr.bf16.mxu0 0
    %2852 = vmatpush1.bf16.msra.mxu0 %v2835
    %2853 = vmatprep.subr.bf16.mxu0 0
    %2854 = vmatpush2.bf16.msra.mxu0 0
    %2855 = vmatprep.subr.bf16.mxu0 0
    %2856 = vmatpush2.bf16.msra.mxu0 0
    %2857 = vmatprep.subr.bf16.mxu0 0
    %2858 = vmatpush2.bf16.msra.mxu0 0
    %2859 = vmatprep.subr.bf16.mxu0 0
    %2860 = vmatpush2.bf16.msra.mxu0 0
    %2861 = vmatprep.subr.bf16.mxu0 0
    %2862 = vmatpush2.bf16.msra.mxu0 0
    %2863 = vmatprep.subr.bf16.mxu0 0
    %2864 = vmatpush2.bf16.msra.mxu0 0
    %2865 = vmatprep.subr.bf16.mxu0 0
    %2866 = vmatpush2.bf16.msra.mxu0 0
    %2867 = vmatprep.subr.bf16.mxu0 0
    %2868 = vmatpush2.bf16.msra.mxu0 0
    %2869 = vmatprep.mubr.bf16.mxu0 0
    %2870 = vmatmul.mubr.bf16.gmra.mxu0 %v2831
    %v2871 = vpop.f32.mrf.mxu0
    %v2872 = vadd.f32 %v2828, %v2871
    %v2873 = vpop.f32.mrf.mxu0
    %v2874 = vpop.f32.mrf.mxu0
    %v2875 = vpop.f32.mrf.mxu0
    %2876 = vdwg.mxu0
    %v2877 = vld [vmem:[#allocation6 + $0x200] sm:$0xff]
    %v2878 = vld [vmem:[#allocation6 + $0x208] sm:$0xff]
    %v2879 = vld [vmem:[#allocation6 + $0x210] sm:$0xff]
    %v2880 = vld [vmem:[#allocation6 + $0x218] sm:$0xff]
    %v2881 = vld [vmem:[#allocation6 + $0x220] sm:$0xff]
    %v2882 = vld [vmem:[#allocation6 + $0x228] sm:$0xff]
    %v2883 = vld [vmem:[#allocation6 + $0x230] sm:$0xff]
    %v2884 = vld [vmem:[#allocation6 + $0x238] sm:$0xff]
    %v2885 = vld [vmem:[#allocation6 + $0x240] sm:$0xff]
    %v2886 = vld [vmem:[#allocation6 + $0x248] sm:$0xff]
    %v2887 = vld [vmem:[#allocation6 + $0x250] sm:$0xff]
    %v2888 = vld [vmem:[#allocation6 + $0x258] sm:$0xff]
    %v2889 = vld [vmem:[#allocation6 + $0x260] sm:$0xff]
    %v2890 = vld [vmem:[#allocation6 + $0x268] sm:$0xff]
    %v2891 = vld [vmem:[#allocation6 + $0x270] sm:$0xff]
    %v2892 = vld [vmem:[#allocation6 + $0x278] sm:$0xff]
    %v2893 = vpack.c.bf16 %v2872, %v2872
    %v2894 = vlaneseq
    %v2895 = vshrl.u32 %v2894, 7
    %v2896 = vsub.s32 5, %v2895
    %v2897 = vrot.slane %v105, %v2896
    %v2898 = vlaneseq
    %v2899 = vshrl.u32 %v2898, 7
    %v2900 = vsub.s32 5, %v2899
    %v2901 = vrot.slane %v106, %v2900
    %v2918 = vunpack.c.l.b16 %v2877
    %v2919 = vunpack.c.h.b16 %v2877
    %v2920 = vunpack.c.l.b16 %v2878
    %v2921 = vunpack.c.h.b16 %v2878
    %v2922 = vunpack.c.l.b16 %v2879
    %v2923 = vunpack.c.h.b16 %v2879
    %v2924 = vunpack.c.l.b16 %v2880
    %v2925 = vunpack.c.h.b16 %v2880
    %v2926 = vunpack.c.l.b16 %v2881
    %v2927 = vunpack.c.h.b16 %v2881
    %v2928 = vunpack.c.l.b16 %v2882
    %v2929 = vunpack.c.h.b16 %v2882
    %v2930 = vunpack.c.l.b16 %v2883
    %v2931 = vunpack.c.h.b16 %v2883
    %v2932 = vunpack.c.l.b16 %v2884
    %v2933 = vunpack.c.h.b16 %v2884
    %v2934 = vunpack.c.l.b16 %v2885
    %v2935 = vunpack.c.h.b16 %v2885
    %v2936 = vunpack.c.l.b16 %v2886
    %v2937 = vunpack.c.h.b16 %v2886
    %v2938 = vunpack.c.l.b16 %v2887
    %v2939 = vunpack.c.h.b16 %v2887
    %v2940 = vunpack.c.l.b16 %v2888
    %v2941 = vunpack.c.h.b16 %v2888
    %v2942 = vunpack.c.l.b16 %v2889
    %v2943 = vunpack.c.h.b16 %v2889
    %v2944 = vunpack.c.l.b16 %v2890
    %v2945 = vunpack.c.h.b16 %v2890
    %v2946 = vunpack.c.l.b16 %v2891
    %v2947 = vunpack.c.h.b16 %v2891
    %v2948 = vunpack.c.l.b16 %v2892
    %v2949 = vunpack.c.h.b16 %v2892
    %v2950 = vpack.c.b16 %v2920, %v2918
    %v2951 = vpack.c.b16 %v2921, %v2919
    %v2952 = vpack.c.b16 %v2924, %v2922
    %v2953 = vpack.c.b16 %v2925, %v2923
    %v2954 = vpack.c.b16 %v2928, %v2926
    %v2955 = vpack.c.b16 %v2929, %v2927
    %v2956 = vpack.c.b16 %v2932, %v2930
    %v2957 = vpack.c.b16 %v2933, %v2931
    %v2958 = vpack.c.b16 %v2936, %v2934
    %v2959 = vpack.c.b16 %v2937, %v2935
    %v2960 = vpack.c.b16 %v2940, %v2938
    %v2961 = vpack.c.b16 %v2941, %v2939
    %v2962 = vpack.c.b16 %v2944, %v2942
    %v2963 = vpack.c.b16 %v2945, %v2943
    %v2964 = vpack.c.b16 %v2948, %v2946
    %v2965 = vpack.c.b16 %v2949, %v2947
    %2982 = vmatprep.subr.bf16.mxu0 %v2965
    %2983 = vmatpush1.bf16.msra.mxu0 %v2964
    %2984 = vmatprep.subr.bf16.mxu0 %v2963
    %2985 = vmatpush1.bf16.msra.mxu0 %v2962
    %2986 = vmatprep.subr.bf16.mxu0 %v2961
    %2987 = vmatpush1.bf16.msra.mxu0 %v2960
    %2988 = vmatprep.subr.bf16.mxu0 %v2959
    %2989 = vmatpush1.bf16.msra.mxu0 %v2958
    %2990 = vmatprep.subr.bf16.mxu0 %v2957
    %2991 = vmatpush1.bf16.msra.mxu0 %v2956
    %2992 = vmatprep.subr.bf16.mxu0 %v2955
    %2993 = vmatpush1.bf16.msra.mxu0 %v2954
    %2994 = vmatprep.subr.bf16.mxu0 %v2953
    %2995 = vmatpush1.bf16.msra.mxu0 %v2952
    %2996 = vmatprep.subr.bf16.mxu0 %v2951
    %2997 = vmatpush1.bf16.msra.mxu0 %v2950
    %2998 = vmatprep.subr.bf16.mxu0 0
    %2999 = vmatpush2.bf16.msra.mxu0 0
    %3000 = vmatprep.subr.bf16.mxu0 0
    %3001 = vmatpush2.bf16.msra.mxu0 0
    %3002 = vmatprep.subr.bf16.mxu0 0
    %3003 = vmatpush2.bf16.msra.mxu0 0
    %3004 = vmatprep.subr.bf16.mxu0 0
    %3005 = vmatpush2.bf16.msra.mxu0 0
    %3006 = vmatprep.subr.bf16.mxu0 0
    %3007 = vmatpush2.bf16.msra.mxu0 0
    %3008 = vmatprep.subr.bf16.mxu0 0
    %3009 = vmatpush2.bf16.msra.mxu0 0
    %3010 = vmatprep.subr.bf16.mxu0 0
    %3011 = vmatpush2.bf16.msra.mxu0 0
    %3012 = vmatprep.subr.bf16.mxu0 0
    %3013 = vmatpush2.bf16.msra.mxu0 0
    %3014 = vmatprep.mubr.bf16.mxu0 0
    %3015 = vmatmul.mubr.bf16.gmra.mxu0 %v2893
    %v3016 = vpop.f32.mrf.mxu0
    %v3017 = vadd.f32 %v2897, %v3016
    %v3018 = vpop.f32.mrf.mxu0
    %v3019 = vadd.f32 %v2901, %v3018
    %v3020 = vpop.f32.mrf.mxu0
    %v3021 = vpop.f32.mrf.mxu0
    %3022 = vdwg.mxu0
    %v3023 = vmax.f32 %v3017, 0.0
    %v3024 = vmax.f32 %v3019, 0.0
    %v3025 = vld [vmem:[#allocation4 + $0x800] sm:$0xff]
    %v3026 = vld [vmem:[#allocation4 + $0x808] sm:$0xff]
    %v3027 = vld [vmem:[#allocation4 + $0x810] sm:$0xff]
    %v3028 = vld [vmem:[#allocation4 + $0x818] sm:$0xff]
    %v3029 = vld [vmem:[#allocation4 + $0x820] sm:$0xff]
    %v3030 = vld [vmem:[#allocation4 + $0x828] sm:$0xff]
    %v3031 = vld [vmem:[#allocation4 + $0x830] sm:$0xff]
    %v3032 = vld [vmem:[#allocation4 + $0x838] sm:$0xff]
    %v3033 = vld [vmem:[#allocation4 + $0x840] sm:$0xff]
    %v3034 = vld [vmem:[#allocation4 + $0x848] sm:$0xff]
    %v3035 = vld [vmem:[#allocation4 + $0x850] sm:$0xff]
    %v3036 = vld [vmem:[#allocation4 + $0x858] sm:$0xff]
    %v3037 = vld [vmem:[#allocation4 + $0x860] sm:$0xff]
    %v3038 = vld [vmem:[#allocation4 + $0x868] sm:$0xff]
    %v3039 = vld [vmem:[#allocation4 + $0x870] sm:$0xff]
    %v3040 = vld [vmem:[#allocation4 + $0x878] sm:$0xff]
    %v3041 = vld [vmem:[#allocation4 + $0x880] sm:$0xff]
    %v3042 = vld [vmem:[#allocation4 + $0x888] sm:$0xff]
    %v3043 = vld [vmem:[#allocation4 + $0x890] sm:$0xff]
    %v3044 = vld [vmem:[#allocation4 + $0x898] sm:$0xff]
    %v3045 = vld [vmem:[#allocation4 + $0x8a0] sm:$0xff]
    %v3046 = vld [vmem:[#allocation4 + $0x8a8] sm:$0xff]
    %v3047 = vld [vmem:[#allocation4 + $0x8b0] sm:$0xff]
    %v3048 = vld [vmem:[#allocation4 + $0x8b8] sm:$0xff]
    %v3049 = vld [vmem:[#allocation4 + $0x8c0] sm:$0xff]
    %v3050 = vld [vmem:[#allocation4 + $0x8c8] sm:$0xff]
    %v3051 = vld [vmem:[#allocation4 + $0x8d0] sm:$0xff]
    %v3052 = vld [vmem:[#allocation4 + $0x8d8] sm:$0xff]
    %v3053 = vld [vmem:[#allocation4 + $0x8e0] sm:$0xff]
    %v3054 = vld [vmem:[#allocation4 + $0x8e8] sm:$0xff]
    %v3055 = vld [vmem:[#allocation4 + $0x8f0] sm:$0xff]
    %v3056 = vld [vmem:[#allocation4 + $0x8f8] sm:$0xff]
    %v3057 = vld [vmem:[#allocation4 + $0x900] sm:$0xff]
    %v3058 = vld [vmem:[#allocation4 + $0x908] sm:$0xff]
    %v3059 = vld [vmem:[#allocation4 + $0x910] sm:$0xff]
    %v3060 = vld [vmem:[#allocation4 + $0x918] sm:$0xff]
    %v3061 = vld [vmem:[#allocation4 + $0x920] sm:$0xff]
    %v3062 = vld [vmem:[#allocation4 + $0x928] sm:$0xff]
    %v3063 = vld [vmem:[#allocation4 + $0x930] sm:$0xff]
    %v3064 = vld [vmem:[#allocation4 + $0x938] sm:$0xff]
    %v3065 = vld [vmem:[#allocation4 + $0x940] sm:$0xff]
    %v3066 = vld [vmem:[#allocation4 + $0x948] sm:$0xff]
    %v3067 = vld [vmem:[#allocation4 + $0x950] sm:$0xff]
    %v3068 = vld [vmem:[#allocation4 + $0x958] sm:$0xff]
    %v3069 = vld [vmem:[#allocation4 + $0x960] sm:$0xff]
    %v3070 = vld [vmem:[#allocation4 + $0x968] sm:$0xff]
    %v3071 = vld [vmem:[#allocation4 + $0x970] sm:$0xff]
    %v3072 = vld [vmem:[#allocation4 + $0x978] sm:$0xff]
    %v3073 = vld [vmem:[#allocation4 + $0x980] sm:$0xff]
    %v3074 = vld [vmem:[#allocation4 + $0x988] sm:$0xff]
    %v3075 = vld [vmem:[#allocation4 + $0x990] sm:$0xff]
    %v3076 = vld [vmem:[#allocation4 + $0x998] sm:$0xff]
    %v3077 = vld [vmem:[#allocation4 + $0x9a0] sm:$0xff]
    %v3078 = vld [vmem:[#allocation4 + $0x9a8] sm:$0xff]
    %v3079 = vld [vmem:[#allocation4 + $0x9b0] sm:$0xff]
    %v3080 = vld [vmem:[#allocation4 + $0x9b8] sm:$0xff]
    %v3081 = vld [vmem:[#allocation4 + $0x9c0] sm:$0xff]
    %v3082 = vld [vmem:[#allocation4 + $0x9c8] sm:$0xff]
    %v3083 = vld [vmem:[#allocation4 + $0x9d0] sm:$0xff]
    %v3084 = vld [vmem:[#allocation4 + $0x9d8] sm:$0xff]
    %v3085 = vld [vmem:[#allocation4 + $0x9e0] sm:$0xff]
    %v3086 = vld [vmem:[#allocation4 + $0x9e8] sm:$0xff]
    %v3087 = vld [vmem:[#allocation4 + $0x9f0] sm:$0xff]
    %v3088 = vld [vmem:[#allocation4 + $0x9f8] sm:$0xff]
    %v3089 = vpack.c.bf16 %v3023, %v3023
    %v3090 = vpack.c.bf16 %v3024, %v3024
    %v3091 = vlaneseq
    %v3092 = vshrl.u32 %v3091, 7
    %v3093 = vsub.s32 6, %v3092
    %v3094 = vrot.slane %v105, %v3093
    %v3095 = vlaneseq
    %v3096 = vshrl.u32 %v3095, 7
    %v3097 = vsub.s32 6, %v3096
    %v3098 = vrot.slane %v106, %v3097
    %v3099 = vlaneseq
    %v3100 = vshrl.u32 %v3099, 7
    %v3101 = vsub.s32 6, %v3100
    %v3102 = vrot.slane %v107, %v3101
    %v3103 = vlaneseq
    %v3104 = vshrl.u32 %v3103, 7
    %v3105 = vsub.s32 6, %v3104
    %v3106 = vrot.slane %v108, %v3105
    %v3171 = vunpack.c.l.b16 %v3025
    %v3172 = vunpack.c.h.b16 %v3025
    %v3173 = vunpack.c.l.b16 %v3026
    %v3174 = vunpack.c.h.b16 %v3026
    %v3175 = vunpack.c.l.b16 %v3027
    %v3176 = vunpack.c.h.b16 %v3027
    %v3177 = vunpack.c.l.b16 %v3028
    %v3178 = vunpack.c.h.b16 %v3028
    %v3179 = vunpack.c.l.b16 %v3029
    %v3180 = vunpack.c.h.b16 %v3029
    %v3181 = vunpack.c.l.b16 %v3030
    %v3182 = vunpack.c.h.b16 %v3030
    %v3183 = vunpack.c.l.b16 %v3031
    %v3184 = vunpack.c.h.b16 %v3031
    %v3185 = vunpack.c.l.b16 %v3032
    %v3186 = vunpack.c.h.b16 %v3032
    %v3187 = vunpack.c.l.b16 %v3033
    %v3188 = vunpack.c.h.b16 %v3033
    %v3189 = vunpack.c.l.b16 %v3034
    %v3190 = vunpack.c.h.b16 %v3034
    %v3191 = vunpack.c.l.b16 %v3035
    %v3192 = vunpack.c.h.b16 %v3035
    %v3193 = vunpack.c.l.b16 %v3036
    %v3194 = vunpack.c.h.b16 %v3036
    %v3195 = vunpack.c.l.b16 %v3037
    %v3196 = vunpack.c.h.b16 %v3037
    %v3197 = vunpack.c.l.b16 %v3038
    %v3198 = vunpack.c.h.b16 %v3038
    %v3199 = vunpack.c.l.b16 %v3039
    %v3200 = vunpack.c.h.b16 %v3039
    %v3201 = vunpack.c.l.b16 %v3040
    %v3202 = vunpack.c.h.b16 %v3040
    %v3203 = vunpack.c.l.b16 %v3041
    %v3204 = vunpack.c.h.b16 %v3041
    %v3205 = vunpack.c.l.b16 %v3042
    %v3206 = vunpack.c.h.b16 %v3042
    %v3207 = vunpack.c.l.b16 %v3043
    %v3208 = vunpack.c.h.b16 %v3043
    %v3209 = vunpack.c.l.b16 %v3044
    %v3210 = vunpack.c.h.b16 %v3044
    %v3211 = vunpack.c.l.b16 %v3045
    %v3212 = vunpack.c.h.b16 %v3045
    %v3213 = vunpack.c.l.b16 %v3046
    %v3214 = vunpack.c.h.b16 %v3046
    %v3215 = vunpack.c.l.b16 %v3047
    %v3216 = vunpack.c.h.b16 %v3047
    %v3217 = vunpack.c.l.b16 %v3048
    %v3218 = vunpack.c.h.b16 %v3048
    %v3219 = vunpack.c.l.b16 %v3049
    %v3220 = vunpack.c.h.b16 %v3049
    %v3221 = vunpack.c.l.b16 %v3050
    %v3222 = vunpack.c.h.b16 %v3050
    %v3223 = vunpack.c.l.b16 %v3051
    %v3224 = vunpack.c.h.b16 %v3051
    %v3225 = vunpack.c.l.b16 %v3052
    %v3226 = vunpack.c.h.b16 %v3052
    %v3227 = vunpack.c.l.b16 %v3053
    %v3228 = vunpack.c.h.b16 %v3053
    %v3229 = vunpack.c.l.b16 %v3054
    %v3230 = vunpack.c.h.b16 %v3054
    %v3231 = vunpack.c.l.b16 %v3055
    %v3232 = vunpack.c.h.b16 %v3055
    %v3233 = vunpack.c.l.b16 %v3056
    %v3234 = vunpack.c.h.b16 %v3056
    %v3235 = vunpack.c.l.b16 %v3057
    %v3236 = vunpack.c.h.b16 %v3057
    %v3237 = vunpack.c.l.b16 %v3058
    %v3238 = vunpack.c.h.b16 %v3058
    %v3239 = vunpack.c.l.b16 %v3059
    %v3240 = vunpack.c.h.b16 %v3059
    %v3241 = vunpack.c.l.b16 %v3060
    %v3242 = vunpack.c.h.b16 %v3060
    %v3243 = vunpack.c.l.b16 %v3061
    %v3244 = vunpack.c.h.b16 %v3061
    %v3245 = vunpack.c.l.b16 %v3062
    %v3246 = vunpack.c.h.b16 %v3062
    %v3247 = vunpack.c.l.b16 %v3063
    %v3248 = vunpack.c.h.b16 %v3063
    %v3249 = vunpack.c.l.b16 %v3064
    %v3250 = vunpack.c.h.b16 %v3064
    %v3251 = vunpack.c.l.b16 %v3065
    %v3252 = vunpack.c.h.b16 %v3065
    %v3253 = vunpack.c.l.b16 %v3066
    %v3254 = vunpack.c.h.b16 %v3066
    %v3255 = vunpack.c.l.b16 %v3067
    %v3256 = vunpack.c.h.b16 %v3067
    %v3257 = vunpack.c.l.b16 %v3068
    %v3258 = vunpack.c.h.b16 %v3068
    %v3259 = vunpack.c.l.b16 %v3069
    %v3260 = vunpack.c.h.b16 %v3069
    %v3261 = vunpack.c.l.b16 %v3070
    %v3262 = vunpack.c.h.b16 %v3070
    %v3263 = vunpack.c.l.b16 %v3071
    %v3264 = vunpack.c.h.b16 %v3071
    %v3265 = vunpack.c.l.b16 %v3072
    %v3266 = vunpack.c.h.b16 %v3072
    %v3267 = vunpack.c.l.b16 %v3073
    %v3268 = vunpack.c.h.b16 %v3073
    %v3269 = vunpack.c.l.b16 %v3074
    %v3270 = vunpack.c.h.b16 %v3074
    %v3271 = vunpack.c.l.b16 %v3075
    %v3272 = vunpack.c.h.b16 %v3075
    %v3273 = vunpack.c.l.b16 %v3076
    %v3274 = vunpack.c.h.b16 %v3076
    %v3275 = vunpack.c.l.b16 %v3077
    %v3276 = vunpack.c.h.b16 %v3077
    %v3277 = vunpack.c.l.b16 %v3078
    %v3278 = vunpack.c.h.b16 %v3078
    %v3279 = vunpack.c.l.b16 %v3079
    %v3280 = vunpack.c.h.b16 %v3079
    %v3281 = vunpack.c.l.b16 %v3080
    %v3282 = vunpack.c.h.b16 %v3080
    %v3283 = vunpack.c.l.b16 %v3081
    %v3284 = vunpack.c.h.b16 %v3081
    %v3285 = vunpack.c.l.b16 %v3082
    %v3286 = vunpack.c.h.b16 %v3082
    %v3287 = vunpack.c.l.b16 %v3083
    %v3288 = vunpack.c.h.b16 %v3083
    %v3289 = vunpack.c.l.b16 %v3084
    %v3290 = vunpack.c.h.b16 %v3084
    %v3291 = vunpack.c.l.b16 %v3085
    %v3292 = vunpack.c.h.b16 %v3085
    %v3293 = vunpack.c.l.b16 %v3086
    %v3294 = vunpack.c.h.b16 %v3086
    %v3295 = vunpack.c.l.b16 %v3087
    %v3296 = vunpack.c.h.b16 %v3087
    %v3297 = vunpack.c.l.b16 %v3088
    %v3298 = vunpack.c.h.b16 %v3088
    %v3299 = vpack.c.b16 %v3175, %v3171
    %v3300 = vpack.c.b16 %v3176, %v3172
    %v3301 = vpack.c.b16 %v3177, %v3173
    %v3302 = vpack.c.b16 %v3178, %v3174
    %v3303 = vpack.c.b16 %v3183, %v3179
    %v3304 = vpack.c.b16 %v3184, %v3180
    %v3305 = vpack.c.b16 %v3185, %v3181
    %v3306 = vpack.c.b16 %v3186, %v3182
    %v3307 = vpack.c.b16 %v3191, %v3187
    %v3308 = vpack.c.b16 %v3192, %v3188
    %v3309 = vpack.c.b16 %v3193, %v3189
    %v3310 = vpack.c.b16 %v3194, %v3190
    %v3311 = vpack.c.b16 %v3199, %v3195
    %v3312 = vpack.c.b16 %v3200, %v3196
    %v3313 = vpack.c.b16 %v3201, %v3197
    %v3314 = vpack.c.b16 %v3202, %v3198
    %v3315 = vpack.c.b16 %v3207, %v3203
    %v3316 = vpack.c.b16 %v3208, %v3204
    %v3317 = vpack.c.b16 %v3209, %v3205
    %v3318 = vpack.c.b16 %v3210, %v3206
    %v3319 = vpack.c.b16 %v3215, %v3211
    %v3320 = vpack.c.b16 %v3216, %v3212
    %v3321 = vpack.c.b16 %v3217, %v3213
    %v3322 = vpack.c.b16 %v3218, %v3214
    %v3323 = vpack.c.b16 %v3223, %v3219
    %v3324 = vpack.c.b16 %v3224, %v3220
    %v3325 = vpack.c.b16 %v3225, %v3221
    %v3326 = vpack.c.b16 %v3226, %v3222
    %v3327 = vpack.c.b16 %v3231, %v3227
    %v3328 = vpack.c.b16 %v3232, %v3228
    %v3329 = vpack.c.b16 %v3233, %v3229
    %v3330 = vpack.c.b16 %v3234, %v3230
    %v3331 = vpack.c.b16 %v3239, %v3235
    %v3332 = vpack.c.b16 %v3240, %v3236
    %v3333 = vpack.c.b16 %v3241, %v3237
    %v3334 = vpack.c.b16 %v3242, %v3238
    %v3335 = vpack.c.b16 %v3247, %v3243
    %v3336 = vpack.c.b16 %v3248, %v3244
    %v3337 = vpack.c.b16 %v3249, %v3245
    %v3338 = vpack.c.b16 %v3250, %v3246
    %v3339 = vpack.c.b16 %v3255, %v3251
    %v3340 = vpack.c.b16 %v3256, %v3252
    %v3341 = vpack.c.b16 %v3257, %v3253
    %v3342 = vpack.c.b16 %v3258, %v3254
    %v3343 = vpack.c.b16 %v3263, %v3259
    %v3344 = vpack.c.b16 %v3264, %v3260
    %v3345 = vpack.c.b16 %v3265, %v3261
    %v3346 = vpack.c.b16 %v3266, %v3262
    %v3347 = vpack.c.b16 %v3271, %v3267
    %v3348 = vpack.c.b16 %v3272, %v3268
    %v3349 = vpack.c.b16 %v3273, %v3269
    %v3350 = vpack.c.b16 %v3274, %v3270
    %v3351 = vpack.c.b16 %v3279, %v3275
    %v3352 = vpack.c.b16 %v3280, %v3276
    %v3353 = vpack.c.b16 %v3281, %v3277
    %v3354 = vpack.c.b16 %v3282, %v3278
    %v3355 = vpack.c.b16 %v3287, %v3283
    %v3356 = vpack.c.b16 %v3288, %v3284
    %v3357 = vpack.c.b16 %v3289, %v3285
    %v3358 = vpack.c.b16 %v3290, %v3286
    %v3359 = vpack.c.b16 %v3295, %v3291
    %v3360 = vpack.c.b16 %v3296, %v3292
    %v3361 = vpack.c.b16 %v3297, %v3293
    %v3362 = vpack.c.b16 %v3298, %v3294
    %3427 = vmatprep.subr.bf16.mxu0 %v3328
    %3428 = vmatpush1.bf16.msra.mxu0 %v3327
    %3429 = vmatprep.subr.bf16.mxu0 %v3324
    %3430 = vmatpush1.bf16.msra.mxu0 %v3323
    %3431 = vmatprep.subr.bf16.mxu0 %v3320
    %3432 = vmatpush1.bf16.msra.mxu0 %v3319
    %3433 = vmatprep.subr.bf16.mxu0 %v3316
    %3434 = vmatpush1.bf16.msra.mxu0 %v3315
    %3435 = vmatprep.subr.bf16.mxu0 %v3312
    %3436 = vmatpush1.bf16.msra.mxu0 %v3311
    %3437 = vmatprep.subr.bf16.mxu0 %v3308
    %3438 = vmatpush1.bf16.msra.mxu0 %v3307
    %3439 = vmatprep.subr.bf16.mxu0 %v3304
    %3440 = vmatpush1.bf16.msra.mxu0 %v3303
    %3441 = vmatprep.subr.bf16.mxu0 %v3300
    %3442 = vmatpush1.bf16.msra.mxu0 %v3299
    %3443 = vmatprep.subr.bf16.mxu0 %v3360
    %3444 = vmatpush2.bf16.msra.mxu0 %v3359
    %3445 = vmatprep.subr.bf16.mxu0 %v3356
    %3446 = vmatpush2.bf16.msra.mxu0 %v3355
    %3447 = vmatprep.subr.bf16.mxu0 %v3352
    %3448 = vmatpush2.bf16.msra.mxu0 %v3351
    %3449 = vmatprep.subr.bf16.mxu0 %v3348
    %3450 = vmatpush2.bf16.msra.mxu0 %v3347
    %3451 = vmatprep.subr.bf16.mxu0 %v3344
    %3452 = vmatpush2.bf16.msra.mxu0 %v3343
    %3453 = vmatprep.subr.bf16.mxu0 %v3340
    %3454 = vmatpush2.bf16.msra.mxu0 %v3339
    %3455 = vmatprep.subr.bf16.mxu0 %v3336
    %3456 = vmatpush2.bf16.msra.mxu0 %v3335
    %3457 = vmatprep.subr.bf16.mxu0 %v3332
    %3458 = vmatpush2.bf16.msra.mxu0 %v3331
    %3459 = vmatprep.mubr.bf16.mxu0 %v3090
    %3460 = vmatmul.mubr.bf16.gmra.mxu0 %v3089
    %v3461 = vpop.f32.mrf.mxu0
    %v3462 = vadd.f32 %v3094, %v3461
    %v3463 = vpop.f32.mrf.mxu0
    %v3464 = vadd.f32 %v3098, %v3463
    %v3465 = vpop.f32.mrf.mxu0
    %v3466 = vpop.f32.mrf.mxu0
    %3467 = vdwg.mxu0
    %3468 = vmatprep.subr.bf16.mxu0 %v3330
    %3469 = vmatpush1.bf16.msra.mxu0 %v3329
    %3470 = vmatprep.subr.bf16.mxu0 %v3326
    %3471 = vmatpush1.bf16.msra.mxu0 %v3325
    %3472 = vmatprep.subr.bf16.mxu0 %v3322
    %3473 = vmatpush1.bf16.msra.mxu0 %v3321
    %3474 = vmatprep.subr.bf16.mxu0 %v3318
    %3475 = vmatpush1.bf16.msra.mxu0 %v3317
    %3476 = vmatprep.subr.bf16.mxu0 %v3314
    %3477 = vmatpush1.bf16.msra.mxu0 %v3313
    %3478 = vmatprep.subr.bf16.mxu0 %v3310
    %3479 = vmatpush1.bf16.msra.mxu0 %v3309
    %3480 = vmatprep.subr.bf16.mxu0 %v3306
    %3481 = vmatpush1.bf16.msra.mxu0 %v3305
    %3482 = vmatprep.subr.bf16.mxu0 %v3302
    %3483 = vmatpush1.bf16.msra.mxu0 %v3301
    %3484 = vmatprep.subr.bf16.mxu0 %v3362
    %3485 = vmatpush2.bf16.msra.mxu0 %v3361
    %3486 = vmatprep.subr.bf16.mxu0 %v3358
    %3487 = vmatpush2.bf16.msra.mxu0 %v3357
    %3488 = vmatprep.subr.bf16.mxu0 %v3354
    %3489 = vmatpush2.bf16.msra.mxu0 %v3353
    %3490 = vmatprep.subr.bf16.mxu0 %v3350
    %3491 = vmatpush2.bf16.msra.mxu0 %v3349
    %3492 = vmatprep.subr.bf16.mxu0 %v3346
    %3493 = vmatpush2.bf16.msra.mxu0 %v3345
    %3494 = vmatprep.subr.bf16.mxu0 %v3342
    %3495 = vmatpush2.bf16.msra.mxu0 %v3341
    %3496 = vmatprep.subr.bf16.mxu0 %v3338
    %3497 = vmatpush2.bf16.msra.mxu0 %v3337
    %3498 = vmatprep.subr.bf16.mxu0 %v3334
    %3499 = vmatpush2.bf16.msra.mxu0 %v3333
    %3500 = vmatprep.mubr.bf16.mxu0 %v3090
    %3501 = vmatmul.mubr.bf16.gmra.mxu0 %v3089
    %v3502 = vpop.f32.mrf.mxu0
    %v3503 = vadd.f32 %v3102, %v3502
    %v3504 = vpop.f32.mrf.mxu0
    %v3505 = vadd.f32 %v3106, %v3504
    %v3506 = vpop.f32.mrf.mxu0
    %v3507 = vpop.f32.mrf.mxu0
    %3508 = vdwg.mxu0
    %v3509 = vmax.f32 %v3462, 0.0
    %v3510 = vmax.f32 %v3464, 0.0
    %v3511 = vmax.f32 %v3503, 0.0
    %v3512 = vmax.f32 %v3505, 0.0
    %v3513 = vld [vmem:[#allocation6 + $0x280] sm:$0xff]
    %v3514 = vld [vmem:[#allocation6 + $0x288] sm:$0xff]
    %v3515 = vld [vmem:[#allocation6 + $0x290] sm:$0xff]
    %v3516 = vld [vmem:[#allocation6 + $0x298] sm:$0xff]
    %v3517 = vld [vmem:[#allocation6 + $0x2a0] sm:$0xff]
    %v3518 = vld [vmem:[#allocation6 + $0x2a8] sm:$0xff]
    %v3519 = vld [vmem:[#allocation6 + $0x2b0] sm:$0xff]
    %v3520 = vld [vmem:[#allocation6 + $0x2b8] sm:$0xff]
    %v3521 = vld [vmem:[#allocation6 + $0x2c0] sm:$0xff]
    %v3522 = vld [vmem:[#allocation6 + $0x2c8] sm:$0xff]
    %v3523 = vld [vmem:[#allocation6 + $0x2d0] sm:$0xff]
    %v3524 = vld [vmem:[#allocation6 + $0x2d8] sm:$0xff]
    %v3525 = vld [vmem:[#allocation6 + $0x2e0] sm:$0xff]
    %v3526 = vld [vmem:[#allocation6 + $0x2e8] sm:$0xff]
    %v3527 = vld [vmem:[#allocation6 + $0x2f0] sm:$0xff]
    %v3528 = vld [vmem:[#allocation6 + $0x2f8] sm:$0xff]
    %v3529 = vld [vmem:[#allocation6 + $0x300] sm:$0xff]
    %v3530 = vld [vmem:[#allocation6 + $0x308] sm:$0xff]
    %v3531 = vld [vmem:[#allocation6 + $0x310] sm:$0xff]
    %v3532 = vld [vmem:[#allocation6 + $0x318] sm:$0xff]
    %v3533 = vld [vmem:[#allocation6 + $0x320] sm:$0xff]
    %v3534 = vld [vmem:[#allocation6 + $0x328] sm:$0xff]
    %v3535 = vld [vmem:[#allocation6 + $0x330] sm:$0xff]
    %v3536 = vld [vmem:[#allocation6 + $0x338] sm:$0xff]
    %v3537 = vld [vmem:[#allocation6 + $0x340] sm:$0xff]
    %v3538 = vld [vmem:[#allocation6 + $0x348] sm:$0xff]
    %v3539 = vld [vmem:[#allocation6 + $0x350] sm:$0xff]
    %v3540 = vld [vmem:[#allocation6 + $0x358] sm:$0xff]
    %v3541 = vld [vmem:[#allocation6 + $0x360] sm:$0xff]
    %v3542 = vld [vmem:[#allocation6 + $0x368] sm:$0xff]
    %v3543 = vld [vmem:[#allocation6 + $0x370] sm:$0xff]
    %v3544 = vld [vmem:[#allocation6 + $0x378] sm:$0xff]
    %v3545 = vld [vmem:[#allocation6 + $0x380] sm:$0xff]
    %v3546 = vld [vmem:[#allocation6 + $0x388] sm:$0xff]
    %v3547 = vld [vmem:[#allocation6 + $0x390] sm:$0xff]
    %v3548 = vld [vmem:[#allocation6 + $0x398] sm:$0xff]
    %v3549 = vld [vmem:[#allocation6 + $0x3a0] sm:$0xff]
    %v3550 = vld [vmem:[#allocation6 + $0x3a8] sm:$0xff]
    %v3551 = vld [vmem:[#allocation6 + $0x3b0] sm:$0xff]
    %v3552 = vld [vmem:[#allocation6 + $0x3b8] sm:$0xff]
    %v3553 = vld [vmem:[#allocation6 + $0x3c0] sm:$0xff]
    %v3554 = vld [vmem:[#allocation6 + $0x3c8] sm:$0xff]
    %v3555 = vld [vmem:[#allocation6 + $0x3d0] sm:$0xff]
    %v3556 = vld [vmem:[#allocation6 + $0x3d8] sm:$0xff]
    %v3557 = vld [vmem:[#allocation6 + $0x3e0] sm:$0xff]
    %v3558 = vld [vmem:[#allocation6 + $0x3e8] sm:$0xff]
    %v3559 = vld [vmem:[#allocation6 + $0x3f0] sm:$0xff]
    %v3560 = vld [vmem:[#allocation6 + $0x3f8] sm:$0xff]
    %v3561 = vld [vmem:[#allocation6 + $0x400] sm:$0xff]
    %v3562 = vld [vmem:[#allocation6 + $0x408] sm:$0xff]
    %v3563 = vld [vmem:[#allocation6 + $0x410] sm:$0xff]
    %v3564 = vld [vmem:[#allocation6 + $0x418] sm:$0xff]
    %v3565 = vld [vmem:[#allocation6 + $0x420] sm:$0xff]
    %v3566 = vld [vmem:[#allocation6 + $0x428] sm:$0xff]
    %v3567 = vld [vmem:[#allocation6 + $0x430] sm:$0xff]
    %v3568 = vld [vmem:[#allocation6 + $0x438] sm:$0xff]
    %v3569 = vld [vmem:[#allocation6 + $0x440] sm:$0xff]
    %v3570 = vld [vmem:[#allocation6 + $0x448] sm:$0xff]
    %v3571 = vld [vmem:[#allocation6 + $0x450] sm:$0xff]
    %v3572 = vld [vmem:[#allocation6 + $0x458] sm:$0xff]
    %v3573 = vld [vmem:[#allocation6 + $0x460] sm:$0xff]
    %v3574 = vld [vmem:[#allocation6 + $0x468] sm:$0xff]
    %v3575 = vld [vmem:[#allocation6 + $0x470] sm:$0xff]
    %v3576 = vld [vmem:[#allocation6 + $0x478] sm:$0xff]
    %v3577 = vpack.c.bf16 %v3509, %v3509
    %v3578 = vpack.c.bf16 %v3510, %v3510
    %v3579 = vpack.c.bf16 %v3511, %v3511
    %v3580 = vpack.c.bf16 %v3512, %v3512
    %v3581 = vlaneseq
    %v3582 = vshrl.u32 %v3581, 7
    %v3583 = vsub.s32 7, %v3582
    %v3584 = vrot.slane %v105, %v3583
    %v3585 = vlaneseq
    %v3586 = vshrl.u32 %v3585, 7
    %v3587 = vsub.s32 7, %v3586
    %v3588 = vrot.slane %v106, %v3587
    %v3653 = vunpack.c.l.b16 %v3513
    %v3654 = vunpack.c.h.b16 %v3513
    %v3655 = vunpack.c.l.b16 %v3514
    %v3656 = vunpack.c.h.b16 %v3514
    %v3657 = vunpack.c.l.b16 %v3515
    %v3658 = vunpack.c.h.b16 %v3515
    %v3659 = vunpack.c.l.b16 %v3516
    %v3660 = vunpack.c.h.b16 %v3516
    %v3661 = vunpack.c.l.b16 %v3517
    %v3662 = vunpack.c.h.b16 %v3517
    %v3663 = vunpack.c.l.b16 %v3518
    %v3664 = vunpack.c.h.b16 %v3518
    %v3665 = vunpack.c.l.b16 %v3519
    %v3666 = vunpack.c.h.b16 %v3519
    %v3667 = vunpack.c.l.b16 %v3520
    %v3668 = vunpack.c.h.b16 %v3520
    %v3669 = vunpack.c.l.b16 %v3521
    %v3670 = vunpack.c.h.b16 %v3521
    %v3671 = vunpack.c.l.b16 %v3522
    %v3672 = vunpack.c.h.b16 %v3522
    %v3673 = vunpack.c.l.b16 %v3523
    %v3674 = vunpack.c.h.b16 %v3523
    %v3675 = vunpack.c.l.b16 %v3524
    %v3676 = vunpack.c.h.b16 %v3524
    %v3677 = vunpack.c.l.b16 %v3525
    %v3678 = vunpack.c.h.b16 %v3525
    %v3679 = vunpack.c.l.b16 %v3526
    %v3680 = vunpack.c.h.b16 %v3526
    %v3681 = vunpack.c.l.b16 %v3527
    %v3682 = vunpack.c.h.b16 %v3527
    %v3683 = vunpack.c.l.b16 %v3528
    %v3684 = vunpack.c.h.b16 %v3528
    %v3685 = vunpack.c.l.b16 %v3529
    %v3686 = vunpack.c.h.b16 %v3529
    %v3687 = vunpack.c.l.b16 %v3530
    %v3688 = vunpack.c.h.b16 %v3530
    %v3689 = vunpack.c.l.b16 %v3531
    %v3690 = vunpack.c.h.b16 %v3531
    %v3691 = vunpack.c.l.b16 %v3532
    %v3692 = vunpack.c.h.b16 %v3532
    %v3693 = vunpack.c.l.b16 %v3533
    %v3694 = vunpack.c.h.b16 %v3533
    %v3695 = vunpack.c.l.b16 %v3534
    %v3696 = vunpack.c.h.b16 %v3534
    %v3697 = vunpack.c.l.b16 %v3535
    %v3698 = vunpack.c.h.b16 %v3535
    %v3699 = vunpack.c.l.b16 %v3536
    %v3700 = vunpack.c.h.b16 %v3536
    %v3701 = vunpack.c.l.b16 %v3537
    %v3702 = vunpack.c.h.b16 %v3537
    %v3703 = vunpack.c.l.b16 %v3538
    %v3704 = vunpack.c.h.b16 %v3538
    %v3705 = vunpack.c.l.b16 %v3539
    %v3706 = vunpack.c.h.b16 %v3539
    %v3707 = vunpack.c.l.b16 %v3540
    %v3708 = vunpack.c.h.b16 %v3540
    %v3709 = vunpack.c.l.b16 %v3541
    %v3710 = vunpack.c.h.b16 %v3541
    %v3711 = vunpack.c.l.b16 %v3542
    %v3712 = vunpack.c.h.b16 %v3542
    %v3713 = vunpack.c.l.b16 %v3543
    %v3714 = vunpack.c.h.b16 %v3543
    %v3715 = vunpack.c.l.b16 %v3544
    %v3716 = vunpack.c.h.b16 %v3544
    %v3717 = vunpack.c.l.b16 %v3545
    %v3718 = vunpack.c.h.b16 %v3545
    %v3719 = vunpack.c.l.b16 %v3546
    %v3720 = vunpack.c.h.b16 %v3546
    %v3721 = vunpack.c.l.b16 %v3547
    %v3722 = vunpack.c.h.b16 %v3547
    %v3723 = vunpack.c.l.b16 %v3548
    %v3724 = vunpack.c.h.b16 %v3548
    %v3725 = vunpack.c.l.b16 %v3549
    %v3726 = vunpack.c.h.b16 %v3549
    %v3727 = vunpack.c.l.b16 %v3550
    %v3728 = vunpack.c.h.b16 %v3550
    %v3729 = vunpack.c.l.b16 %v3551
    %v3730 = vunpack.c.h.b16 %v3551
    %v3731 = vunpack.c.l.b16 %v3552
    %v3732 = vunpack.c.h.b16 %v3552
    %v3733 = vunpack.c.l.b16 %v3553
    %v3734 = vunpack.c.h.b16 %v3553
    %v3735 = vunpack.c.l.b16 %v3554
    %v3736 = vunpack.c.h.b16 %v3554
    %v3737 = vunpack.c.l.b16 %v3555
    %v3738 = vunpack.c.h.b16 %v3555
    %v3739 = vunpack.c.l.b16 %v3556
    %v3740 = vunpack.c.h.b16 %v3556
    %v3741 = vunpack.c.l.b16 %v3557
    %v3742 = vunpack.c.h.b16 %v3557
    %v3743 = vunpack.c.l.b16 %v3558
    %v3744 = vunpack.c.h.b16 %v3558
    %v3745 = vunpack.c.l.b16 %v3559
    %v3746 = vunpack.c.h.b16 %v3559
    %v3747 = vunpack.c.l.b16 %v3560
    %v3748 = vunpack.c.h.b16 %v3560
    %v3749 = vunpack.c.l.b16 %v3561
    %v3750 = vunpack.c.h.b16 %v3561
    %v3751 = vunpack.c.l.b16 %v3562
    %v3752 = vunpack.c.h.b16 %v3562
    %v3753 = vunpack.c.l.b16 %v3563
    %v3754 = vunpack.c.h.b16 %v3563
    %v3755 = vunpack.c.l.b16 %v3564
    %v3756 = vunpack.c.h.b16 %v3564
    %v3757 = vunpack.c.l.b16 %v3565
    %v3758 = vunpack.c.h.b16 %v3565
    %v3759 = vunpack.c.l.b16 %v3566
    %v3760 = vunpack.c.h.b16 %v3566
    %v3761 = vunpack.c.l.b16 %v3567
    %v3762 = vunpack.c.h.b16 %v3567
    %v3763 = vunpack.c.l.b16 %v3568
    %v3764 = vunpack.c.h.b16 %v3568
    %v3765 = vunpack.c.l.b16 %v3569
    %v3766 = vunpack.c.h.b16 %v3569
    %v3767 = vunpack.c.l.b16 %v3570
    %v3768 = vunpack.c.h.b16 %v3570
    %v3769 = vunpack.c.l.b16 %v3571
    %v3770 = vunpack.c.h.b16 %v3571
    %v3771 = vunpack.c.l.b16 %v3572
    %v3772 = vunpack.c.h.b16 %v3572
    %v3773 = vunpack.c.l.b16 %v3573
    %v3774 = vunpack.c.h.b16 %v3573
    %v3775 = vunpack.c.l.b16 %v3574
    %v3776 = vunpack.c.h.b16 %v3574
    %v3777 = vunpack.c.l.b16 %v3575
    %v3778 = vunpack.c.h.b16 %v3575
    %v3779 = vunpack.c.l.b16 %v3576
    %v3780 = vunpack.c.h.b16 %v3576
    %v3781 = vpack.c.b16 %v3655, %v3653
    %v3782 = vpack.c.b16 %v3656, %v3654
    %v3783 = vpack.c.b16 %v3659, %v3657
    %v3784 = vpack.c.b16 %v3660, %v3658
    %v3785 = vpack.c.b16 %v3663, %v3661
    %v3786 = vpack.c.b16 %v3664, %v3662
    %v3787 = vpack.c.b16 %v3667, %v3665
    %v3788 = vpack.c.b16 %v3668, %v3666
    %v3789 = vpack.c.b16 %v3671, %v3669
    %v3790 = vpack.c.b16 %v3672, %v3670
    %v3791 = vpack.c.b16 %v3675, %v3673
    %v3792 = vpack.c.b16 %v3676, %v3674
    %v3793 = vpack.c.b16 %v3679, %v3677
    %v3794 = vpack.c.b16 %v3680, %v3678
    %v3795 = vpack.c.b16 %v3683, %v3681
    %v3796 = vpack.c.b16 %v3684, %v3682
    %v3797 = vpack.c.b16 %v3687, %v3685
    %v3798 = vpack.c.b16 %v3688, %v3686
    %v3799 = vpack.c.b16 %v3691, %v3689
    %v3800 = vpack.c.b16 %v3692, %v3690
    %v3801 = vpack.c.b16 %v3695, %v3693
    %v3802 = vpack.c.b16 %v3696, %v3694
    %v3803 = vpack.c.b16 %v3699, %v3697
    %v3804 = vpack.c.b16 %v3700, %v3698
    %v3805 = vpack.c.b16 %v3703, %v3701
    %v3806 = vpack.c.b16 %v3704, %v3702
    %v3807 = vpack.c.b16 %v3707, %v3705
    %v3808 = vpack.c.b16 %v3708, %v3706
    %v3809 = vpack.c.b16 %v3711, %v3709
    %v3810 = vpack.c.b16 %v3712, %v3710
    %v3811 = vpack.c.b16 %v3715, %v3713
    %v3812 = vpack.c.b16 %v3716, %v3714
    %v3813 = vpack.c.b16 %v3719, %v3717
    %v3814 = vpack.c.b16 %v3720, %v3718
    %v3815 = vpack.c.b16 %v3723, %v3721
    %v3816 = vpack.c.b16 %v3724, %v3722
    %v3817 = vpack.c.b16 %v3727, %v3725
    %v3818 = vpack.c.b16 %v3728, %v3726
    %v3819 = vpack.c.b16 %v3731, %v3729
    %v3820 = vpack.c.b16 %v3732, %v3730
    %v3821 = vpack.c.b16 %v3735, %v3733
    %v3822 = vpack.c.b16 %v3736, %v3734
    %v3823 = vpack.c.b16 %v3739, %v3737
    %v3824 = vpack.c.b16 %v3740, %v3738
    %v3825 = vpack.c.b16 %v3743, %v3741
    %v3826 = vpack.c.b16 %v3744, %v3742
    %v3827 = vpack.c.b16 %v3747, %v3745
    %v3828 = vpack.c.b16 %v3748, %v3746
    %v3829 = vpack.c.b16 %v3751, %v3749
    %v3830 = vpack.c.b16 %v3752, %v3750
    %v3831 = vpack.c.b16 %v3755, %v3753
    %v3832 = vpack.c.b16 %v3756, %v3754
    %v3833 = vpack.c.b16 %v3759, %v3757
    %v3834 = vpack.c.b16 %v3760, %v3758
    %v3835 = vpack.c.b16 %v3763, %v3761
    %v3836 = vpack.c.b16 %v3764, %v3762
    %v3837 = vpack.c.b16 %v3767, %v3765
    %v3838 = vpack.c.b16 %v3768, %v3766
    %v3839 = vpack.c.b16 %v3771, %v3769
    %v3840 = vpack.c.b16 %v3772, %v3770
    %v3841 = vpack.c.b16 %v3775, %v3773
    %v3842 = vpack.c.b16 %v3776, %v3774
    %v3843 = vpack.c.b16 %v3779, %v3777
    %v3844 = vpack.c.b16 %v3780, %v3778
    %3909 = vmatprep.subr.bf16.mxu0 %v3796
    %3910 = vmatpush1.bf16.msra.mxu0 %v3795
    %3911 = vmatprep.subr.bf16.mxu0 %v3794
    %3912 = vmatpush1.bf16.msra.mxu0 %v3793
    %3913 = vmatprep.subr.bf16.mxu0 %v3792
    %3914 = vmatpush1.bf16.msra.mxu0 %v3791
    %3915 = vmatprep.subr.bf16.mxu0 %v3790
    %3916 = vmatpush1.bf16.msra.mxu0 %v3789
    %3917 = vmatprep.subr.bf16.mxu0 %v3788
    %3918 = vmatpush1.bf16.msra.mxu0 %v3787
    %3919 = vmatprep.subr.bf16.mxu0 %v3786
    %3920 = vmatpush1.bf16.msra.mxu0 %v3785
    %3921 = vmatprep.subr.bf16.mxu0 %v3784
    %3922 = vmatpush1.bf16.msra.mxu0 %v3783
    %3923 = vmatprep.subr.bf16.mxu0 %v3782
    %3924 = vmatpush1.bf16.msra.mxu0 %v3781
    %3925 = vmatprep.subr.bf16.mxu0 %v3812
    %3926 = vmatpush2.bf16.msra.mxu0 %v3811
    %3927 = vmatprep.subr.bf16.mxu0 %v3810
    %3928 = vmatpush2.bf16.msra.mxu0 %v3809
    %3929 = vmatprep.subr.bf16.mxu0 %v3808
    %3930 = vmatpush2.bf16.msra.mxu0 %v3807
    %3931 = vmatprep.subr.bf16.mxu0 %v3806
    %3932 = vmatpush2.bf16.msra.mxu0 %v3805
    %3933 = vmatprep.subr.bf16.mxu0 %v3804
    %3934 = vmatpush2.bf16.msra.mxu0 %v3803
    %3935 = vmatprep.subr.bf16.mxu0 %v3802
    %3936 = vmatpush2.bf16.msra.mxu0 %v3801
    %3937 = vmatprep.subr.bf16.mxu0 %v3800
    %3938 = vmatpush2.bf16.msra.mxu0 %v3799
    %3939 = vmatprep.subr.bf16.mxu0 %v3798
    %3940 = vmatpush2.bf16.msra.mxu0 %v3797
    %3941 = vmatprep.mubr.bf16.mxu0 %v3578
    %3942 = vmatmul.mubr.bf16.gmra.mxu0 %v3577
    %v3943 = vpop.f32.mrf.mxu0
    %v3944 = vadd.f32 %v3584, %v3943
    %v3945 = vpop.f32.mrf.mxu0
    %v3946 = vadd.f32 %v3588, %v3945
    %v3947 = vpop.f32.mrf.mxu0
    %v3948 = vpop.f32.mrf.mxu0
    %3949 = vdwg.mxu0
    %3950 = vmatprep.subr.bf16.mxu0 %v3828
    %3951 = vmatpush1.bf16.msra.mxu0 %v3827
    %3952 = vmatprep.subr.bf16.mxu0 %v3826
    %3953 = vmatpush1.bf16.msra.mxu0 %v3825
    %3954 = vmatprep.subr.bf16.mxu0 %v3824
    %3955 = vmatpush1.bf16.msra.mxu0 %v3823
    %3956 = vmatprep.subr.bf16.mxu0 %v3822
    %3957 = vmatpush1.bf16.msra.mxu0 %v3821
    %3958 = vmatprep.subr.bf16.mxu0 %v3820
    %3959 = vmatpush1.bf16.msra.mxu0 %v3819
    %3960 = vmatprep.subr.bf16.mxu0 %v3818
    %3961 = vmatpush1.bf16.msra.mxu0 %v3817
    %3962 = vmatprep.subr.bf16.mxu0 %v3816
    %3963 = vmatpush1.bf16.msra.mxu0 %v3815
    %3964 = vmatprep.subr.bf16.mxu0 %v3814
    %3965 = vmatpush1.bf16.msra.mxu0 %v3813
    %3966 = vmatprep.subr.bf16.mxu0 %v3844
    %3967 = vmatpush2.bf16.msra.mxu0 %v3843
    %3968 = vmatprep.subr.bf16.mxu0 %v3842
    %3969 = vmatpush2.bf16.msra.mxu0 %v3841
    %3970 = vmatprep.subr.bf16.mxu0 %v3840
    %3971 = vmatpush2.bf16.msra.mxu0 %v3839
    %3972 = vmatprep.subr.bf16.mxu0 %v3838
    %3973 = vmatpush2.bf16.msra.mxu0 %v3837
    %3974 = vmatprep.subr.bf16.mxu0 %v3836
    %3975 = vmatpush2.bf16.msra.mxu0 %v3835
    %3976 = vmatprep.subr.bf16.mxu0 %v3834
    %3977 = vmatpush2.bf16.msra.mxu0 %v3833
    %3978 = vmatprep.subr.bf16.mxu0 %v3832
    %3979 = vmatpush2.bf16.msra.mxu0 %v3831
    %3980 = vmatprep.subr.bf16.mxu0 %v3830
    %3981 = vmatpush2.bf16.msra.mxu0 %v3829
    %3982 = vmatprep.mubr.bf16.mxu0 %v3580
    %3983 = vmatmul.mubr.bf16.gmra.mxu0 %v3579
    %v3984 = vpop.f32.mrf.mxu0
    %v3985 = vadd.f32 %v3944, %v3984
    %v3986 = vpop.f32.mrf.mxu0
    %v3987 = vadd.f32 %v3946, %v3986
    %v3988 = vpop.f32.mrf.mxu0
    %v3989 = vpop.f32.mrf.mxu0
    %3990 = vdwg.mxu0
    %v3991 = vtanh.pop %v3985
    %v3992 = vtanh.pop %v3987
    %v3995 = vcombine.low %v3991, %v3992
    %v3997 = vunpack.c.l.s4 1983009808
    %v3998 = vunpack.c.0.s8 %v3997
    %v3999 = vlaneseq
    %v4000 = vshrl.u32 %v3999, 7
    %v4001 = vsub.s32 %v3998, %v4000
    %v4002 = vrot.slane %v3995, %v4001
    %4004 = vst [vmem:[%s7] sm:$0xf] %v4002
    %vm4005 = vcmask 58368
    %4006 = vst.msk [vmem:[%s8] sm:$0x3] %vm4005, %v2811
    %4008 = vrot.lane.b32.xlu0 %v2811, 120
    %v4009 = vpop.permute.xlu0 %4008
    %s4011 = scalar_lea.vmem %s8, 2
    %4012 = vst.msk [vmem:[%s4011] sm:$0x3] %vm4005, %v4009
    %s4013 = scalar_lea.vmem %s8, 4
    %4014 = vst.msk [vmem:[%s4013] sm:$0x3] %vm4005, %v2821
    // Predicated region
    $region54: #{vae_forward.1} parent=1 // pred_check
      _
    $region55: #{vae_forward.1} parent=1 // pred_check_branch
      %4016 = sbr.rel (0) target = $region57
    $region56: #{vae_forward.1} parent=1 // pred_region
      _
    $region57: #{vae_forward.1} parent=1 // pred_fallthru
      _
    // Predicated region
    $region58: #{vae_forward.1} parent=1 // pred_check
      _
    $region59: #{vae_forward.1} parent=1 // pred_check_branch
      %4018 = sbr.rel (0) target = $region61
    $region60: #{vae_forward.1} parent=1 // pred_region
      _
    $region61: #{vae_forward.1} parent=1 // pred_fallthru
      _
    // Predicated region
    $region62: #{vae_forward.1} parent=1 // pred_check
      _
    $region63: #{vae_forward.1} parent=1 // pred_check_branch
      %4020 = sbr.rel (0) target = $region65
    $region64: #{vae_forward.1} parent=1 // pred_region
      _
    $region65: #{vae_forward.1} parent=1 // pred_fallthru
      _
    // Predicated region
    $region66: #{vae_forward.1} parent=1 // pred_check
      _
    $region67: #{vae_forward.1} parent=1 // pred_check_branch
      %4022 = sbr.rel (0) target = $region69
    $region68: #{vae_forward.1} parent=1 // pred_region
      _
    $region69: #{vae_forward.1} parent=1 // pred_fallthru
      _
    %4023 = vsyncpa [#allocation3], 1
    %4024 = vsyncpa [#allocation5], 1
    %4025 = vsyncpa [#allocation8], 1
    %4026 = vsyncpa [#allocation11], 1

</llo_original>
